<compile_context>
chip_gen: v6e
topology: v6e:2x2x1
jax: 0.10.0
libtpu: 0.0.40
codegen_flags: <defaults>
</compile_context>

<pallas_src>
import jax
import jax.numpy as jnp
from jax.experimental import pallas as pl
from jax.experimental.pallas import tpu as pltpu

_WIN = 11            # SSIM Gaussian window (sigma = 1.5)
_COUT_PAD = 128      # lane-dense padded conv output channels


# ----------------------------------------------------------------------------
# Kernel A (fused image pass, grid over N):
#   image MSE sum, TV sums, per-tensor max, and perception (conv+ReLU6) MSE sum
# ----------------------------------------------------------------------------
def _fused_image_kernel(out_ref, tgt_ref, w_ref, b_ref, o_ref, acc_ref):
    i = pl.program_id(0)

    @pl.when(i == 0)
    def _init():
        acc_ref[0] = 0.0                       # image SSE
        acc_ref[1] = 0.0                       # h_tv
        acc_ref[2] = 0.0                       # w_tv
        acc_ref[3] = 0.0                       # perception SSE
        acc_ref[4] = jnp.float32(-jnp.inf)     # max(out)
        acc_ref[5] = jnp.float32(-jnp.inf)     # max(target)

    xo = out_ref[0].astype(jnp.float32)        # (H+2, W+2, C), zero halo
    xt = tgt_ref[0].astype(jnp.float32)
    Hp, Wp, C = xo.shape
    H, W = Hp - 2, Wp - 2

    # lane-dense 2-D views of the un-padded interiors: (H, W*C)
    xo2 = xo[1:H + 1, 1:W + 1, :].reshape(H, W * C)
    xt2 = xt[1:H + 1, 1:W + 1, :].reshape(H, W * C)

    d = xo2 - xt2
    acc_ref[0] = acc_ref[0] + jnp.sum(d * d)
    dh = xo2[1:, :] - xo2[:-1, :]              # TV along H (rows)
    dw = xo2[:, C:] - xo2[:, :-C]              # TV along W (stride-C lanes)
    acc_ref[1] = acc_ref[1] + jnp.sum(dh * dh)
    acc_ref[2] = acc_ref[2] + jnp.sum(dw * dw)
    acc_ref[4] = jnp.maximum(acc_ref[4], jnp.max(xo2))
    acc_ref[5] = jnp.maximum(acc_ref[5], jnp.max(xt2))

    # Conv3x3(pad=1) + ReLU6 via im2col: single (H*W, 9C) x (9C, 128) MXU matmul.
    def feats(x):
        cols = [x[kh:kh + H, kw:kw + W, :].reshape(H * W, C)
                for kh in range(3) for kw in range(3)]
        patches = jnp.concatenate(cols, axis=-1)                     # (H*W, 9C)
        f = jnp.dot(patches, w_ref[...],
                    preferred_element_type=jnp.float32) + b_ref[0]   # (H*W, 128)
        return jnp.clip(f, 0.0, 6.0)

    df = feats(xo) - feats(xt)   # padded channels are identically 0 for both
    acc_ref[3] = acc_ref[3] + jnp.sum(df * df)

    @pl.when(i == pl.num_programs(0) - 1)
    def _fin():
        o_ref[0] = acc_ref[0]
        o_ref[1] = acc_ref[1]
        o_ref[2] = acc_ref[2]
        o_ref[3] = acc_ref[3]
        o_ref[4] = acc_ref[4]
        o_ref[5] = acc_ref[5]
        o_ref[6] = 0.0
        o_ref[7] = 0.0


def _image_pass(out_pad, tgt_pad, w_pad, b_pad):
    N, Hp, Wp, C = out_pad.shape
    K, CP = w_pad.shape
    return pl.pallas_call(
        _fused_image_kernel,
        out_shape=jax.ShapeDtypeStruct((8,), jnp.float32),
        grid=(N,),
        in_specs=[
            pl.BlockSpec((1, Hp, Wp, C), lambda i: (i, 0, 0, 0)),
            pl.BlockSpec((1, Hp, Wp, C), lambda i: (i, 0, 0, 0)),
            pl.BlockSpec((K, CP), lambda i: (0, 0)),
            pl.BlockSpec((1, CP), lambda i: (0, 0)),
        ],
        out_specs=pl.BlockSpec((8,), lambda i: (0,),
                               memory_space=pltpu.MemorySpace.SMEM),
        scratch_shapes=[pltpu.SMEM((8,), jnp.float32)],
        compiler_params=pltpu.CompilerParams(
            dimension_semantics=("arbitrary",),
            vmem_limit_bytes=32 * 1024 * 1024),
    )(out_pad, tgt_pad, w_pad, b_pad)


# ----------------------------------------------------------------------------
# Kernel B: relativistic adversarial BCE-with-logits loss (tiny label tensors)
# ----------------------------------------------------------------------------
def _adv_kernel(out_lab_ref, real_lab_ref, o_ref):
    ol = out_lab_ref[...].astype(jnp.float32)
    rl = real_lab_ref[...].astype(jnp.float32)
    avg_ol = jnp.mean(ol)
    avg_rl = jnp.mean(rl)

    def softplus(z):  # numerically-stable log(1 + exp(z))
        return jnp.maximum(z, 0.0) + jnp.log(1.0 + jnp.exp(-jnp.abs(z)))

    fake_loss = jnp.mean(softplus(-(ol - avg_rl)))   # BCEWithLogits(target = 1)
    real_loss = jnp.mean(softplus(rl - avg_ol))      # BCEWithLogits(target = 0)
    o_ref[0] = 0.5 * (fake_loss + real_loss)


def _adversarial(out_labels, real_labels):
    return pl.pallas_call(
        _adv_kernel,
        out_shape=jax.ShapeDtypeStruct((1,), jnp.float32),
        in_specs=[pl.BlockSpec(memory_space=pltpu.MemorySpace.VMEM)] * 2,
        out_specs=pl.BlockSpec(memory_space=pltpu.MemorySpace.SMEM),
        compiler_params=pltpu.CompilerParams(vmem_limit_bytes=32 * 1024 * 1024),
    )(out_labels.astype(jnp.float32), real_labels.astype(jnp.float32))


# ----------------------------------------------------------------------------
# Kernel C: SSIM (11x11 Gaussian sigma=1.5, valid conv, K1=0.01, K2=0.03),
#   grid over B = N*C; both blur passes as banded-matrix MXU matmuls.
# ----------------------------------------------------------------------------
def _ssim_kernel(dr_ref, x_ref, y_ref, gv_ref, gh_ref, o_ref, acc_ref):
    b = pl.program_id(0)

    @pl.when(b == 0)
    def _init():
        acc_ref[0] = 0.0

    dr = dr_ref[0, 0]
    c1 = (0.01 * dr) ** 2
    c2 = (0.03 * dr) ** 2

    x = x_ref[0].astype(jnp.float32)   # (H, W)
    y = y_ref[0].astype(jnp.float32)
    gv = gv_ref[...]                   # (Hv, H) banded Gaussian (vertical pass)
    gh = gh_ref[...]                   # (W, Wv) banded Gaussian (horizontal pass)

    def blur(a):                       # valid 11x11 separable Gaussian on MXU
        va = jnp.dot(gv, a, preferred_element_type=jnp.float32)      # (Hv, W)
        return jnp.dot(va, gh, preferred_element_type=jnp.float32)   # (Hv, Wv)

    mu1 = blur(x)
    mu2 = blur(y)
    mu1_sq = mu1 * mu1
    mu2_sq = mu2 * mu2
    mu1_mu2 = mu1 * mu2
    s11 = blur(x * x) - mu1_sq
    s22 = blur(y * y) - mu2_sq
    s12 = blur(x * y) - mu1_mu2

    cs_map = (2.0 * s12 + c2) / (s11 + s22 + c2)
    ssim_map = ((2.0 * mu1_mu2 + c1) / (mu1_sq + mu2_sq + c1)) * cs_map
    acc_ref[0] = acc_ref[0] + jnp.sum(ssim_map)   # reduce immediately per block

    @pl.when(b == pl.num_programs(0) - 1)
    def _fin():
        o_ref[0] = acc_ref[0]


def _ssim(data_range, img1_nchw, img2_nchw):
    N, C, H, W = img1_nchw.shape
    B = N * C
    Hv, Wv = H - _WIN + 1, W - _WIN + 1

    coords = jnp.arange(_WIN, dtype=jnp.float32) - (_WIN // 2)
    g = jnp.exp(-(coords ** 2) / (2.0 * 1.5 ** 2))
    g = (g / jnp.sum(g)).astype(jnp.float32)
    off_v = jnp.arange(H)[None, :] - jnp.arange(Hv)[:, None]          # (Hv, H)
    Gv = jnp.where((off_v >= 0) & (off_v < _WIN),
                   g[jnp.clip(off_v, 0, _WIN - 1)], 0.0).astype(jnp.float32)
    off_h = jnp.arange(W)[:, None] - jnp.arange(Wv)[None, :]          # (W, Wv)
    Gh = jnp.where((off_h >= 0) & (off_h < _WIN),
                   g[jnp.clip(off_h, 0, _WIN - 1)], 0.0).astype(jnp.float32)

    x3 = img1_nchw.reshape(B, H, W).astype(jnp.float32)
    y3 = img2_nchw.reshape(B, H, W).astype(jnp.float32)
    dr = jnp.reshape(data_range, (1, 1)).astype(jnp.float32)

    ssim_sum = pl.pallas_call(
        _ssim_kernel,
        out_shape=jax.ShapeDtypeStruct((1,), jnp.float32),
        grid=(B,),
        in_specs=[
            pl.BlockSpec((1, 1), lambda b: (0, 0)),        # data_range
            pl.BlockSpec((1, H, W), lambda b: (b, 0, 0)),  # out image channel
            pl.BlockSpec((1, H, W), lambda b: (b, 0, 0)),  # target image channel
            pl.BlockSpec((Hv, H), lambda b: (0, 0)),       # vertical Gaussian
            pl.BlockSpec((W, Wv), lambda b: (0, 0)),       # horizontal Gaussian
        ],
        out_specs=pl.BlockSpec((1,), lambda b: (0,),
                               memory_space=pltpu.MemorySpace.SMEM),
        scratch_shapes=[pltpu.SMEM((1,), jnp.float32)],
        compiler_params=pltpu.CompilerParams(
            dimension_semantics=("arbitrary",),
            vmem_limit_bytes=32 * 1024 * 1024),
    )(dr, x3, y3, Gv, Gh)
    return ssim_sum[0] / float(B * Hv * Wv)


# ----------------------------------------------------------------------------
# GeneratorLoss forward
# ----------------------------------------------------------------------------
def generator_loss(out_labels, real_labels, out_images, target_images, params):
    w, b = params                       # w: (9*C, Cout) flattened conv taps, b: (Cout,)
    N, C, H, W = out_images.shape
    K, Cout = w.shape

    # lane-dense padded weight / bias (extra channels are exactly zero -> no
    # contribution to the perception MSE; normalize by the true Cout below).
    w_pad = jnp.zeros((K, _COUT_PAD), jnp.float32).at[:, :Cout].set(
        w.astype(jnp.float32))
    b_pad = jnp.zeros((1, _COUT_PAD), jnp.float32).at[0, :Cout].set(
        b.reshape(-1).astype(jnp.float32))

    # NHWC + 1-pixel zero halo for the fused conv/stats pass (done once).
    xo = jnp.pad(jnp.transpose(out_images, (0, 2, 3, 1)).astype(jnp.float32),
                 ((0, 0), (1, 1), (1, 1), (0, 0)))
    xt = jnp.pad(jnp.transpose(target_images, (0, 2, 3, 1)).astype(jnp.float32),
                 ((0, 0), (1, 1), (1, 1), (0, 0)))

    stats = _image_pass(xo, xt, w_pad, b_pad)
    img_sse, h_tv, w_tv, perc_sse = stats[0], stats[1], stats[2], stats[3]
    max_out, max_tgt = stats[4], stats[5]

    image_loss = img_sse / float(N * C * H * W)
    tv_loss = 2.0 * (h_tv / float(C * (H - 1) * W)
                     + w_tv / float(C * H * (W - 1))) / float(N)
    perception_loss = perc_sse / float(N * H * W * Cout)

    adversarial_loss = _adversarial(out_labels, real_labels)[0]

    # SSIM data_range selection (torch: if img_range > 10: 255 else img_range)
    img_range = jnp.maximum(max_out, max_tgt)
    data_range = jnp.where(img_range > 10.0, jnp.float32(255.0), img_range)
    ssim_val = _ssim(data_range, out_images, target_images)
    ssim_loss = 1.0 - ssim_val

    return (image_loss
            + 0.2 * ssim_loss
            + 0.0015 * adversarial_loss
            + 0.015 * perception_loss
            + 1e-06 * tv_loss)


if __name__ == "__main__":
    key = jax.random.PRNGKey(0)
    k1, k2, k3, k4, k5 = jax.random.split(key, 5)

    N, C, H, W = 2, 3, 16, 16
    out_images = jax.random.uniform(k1, (N, C, H, W), jnp.float32)
    target_images = jax.random.uniform(k2, (N, C, H, W), jnp.float32)
    out_labels = jax.random.normal(k3, (N, 1), jnp.float32)
    real_labels = jax.random.normal(k4, (N, 1), jnp.float32)

    # deterministic synthetic loss-network parameters: Conv3x3 (Cin=3 -> Cout=32)
    COUT = 32
    w = (jax.random.normal(k5, (3, 3, C, COUT), jnp.float32) * 0.1).reshape(9 * C, COUT)
    b = jnp.zeros((COUT,), jnp.float32)

    loss_fn = jax.jit(generator_loss)
    loss = loss_fn(out_labels, real_labels, out_images, target_images, (w, b))
    jax.block_until_ready(loss)
    print("KERNEL_OK")
</pallas_src>

<mosaic_0001>
module attributes {stable_mosaic.version = 11 : i64} {
  func.func @_fused_image_kernel(%arg0: i32, %arg1: memref<1x18x18x3xf32, #tpu.memory_space<vmem>>, %arg2: memref<1x18x18x3xf32, #tpu.memory_space<vmem>>, %arg3: memref<27x128xf32, #tpu.memory_space<vmem>>, %arg4: memref<1x128xf32, #tpu.memory_space<vmem>>, %arg5: memref<8xf32, #tpu.memory_space<smem>>, %arg6: memref<8xf32, #tpu.memory_space<smem>>) attributes {dimension_semantics = [#tpu.dimension_semantics<arbitrary>], iteration_bounds = array<i64: 2>, scalar_prefetch = 0 : i64, scratch_operands = 1 : i64, tpu.core_type = #tpu.core_type<tc>, window_params = [{transform_indices = @transform_0, window_bounds = array<i64: 1, 18, 18, 3>}, {transform_indices = @transform_1, window_bounds = array<i64: 1, 18, 18, 3>}, {pipeline_mode = #tpu.pipeline_mode<synchronous>, transform_indices = @transform_2, window_bounds = array<i64: 27, 128>}, {pipeline_mode = #tpu.pipeline_mode<synchronous>, transform_indices = @transform_3, window_bounds = array<i64: 1, 128>}, {transform_indices = @transform_4, window_bounds = array<i64: 8>}]} {
    %c0_i32 = arith.constant 0 : i32
    %0 = arith.cmpi eq, %arg0, %c0_i32 : i32
    %1 = arith.extui %0 : i1 to i32
    %c0_i32_0 = arith.constant 0 : i32
    %2 = arith.cmpi ne, %1, %c0_i32_0 : i32
    scf.if %2 {
      %cst_35 = arith.constant 0.000000e+00 : f32
      %c0_36 = arith.constant 0 : index
      %128 = memref.load %arg6[%c0_36] : memref<8xf32, #tpu.memory_space<smem>>
      memref.store %cst_35, %arg6[%c0_36] : memref<8xf32, #tpu.memory_space<smem>>
      %cst_37 = arith.constant 0.000000e+00 : f32
      %c1_38 = arith.constant 1 : index
      %129 = memref.load %arg6[%c1_38] : memref<8xf32, #tpu.memory_space<smem>>
      memref.store %cst_37, %arg6[%c1_38] : memref<8xf32, #tpu.memory_space<smem>>
      %cst_39 = arith.constant 0.000000e+00 : f32
      %c2_40 = arith.constant 2 : index
      %130 = memref.load %arg6[%c2_40] : memref<8xf32, #tpu.memory_space<smem>>
      memref.store %cst_39, %arg6[%c2_40] : memref<8xf32, #tpu.memory_space<smem>>
      %cst_41 = arith.constant 0.000000e+00 : f32
      %c3_42 = arith.constant 3 : index
      %131 = memref.load %arg6[%c3_42] : memref<8xf32, #tpu.memory_space<smem>>
      memref.store %cst_41, %arg6[%c3_42] : memref<8xf32, #tpu.memory_space<smem>>
      %cst_43 = arith.constant 0xFF800000 : f32
      %c4_44 = arith.constant 4 : index
      %132 = memref.load %arg6[%c4_44] : memref<8xf32, #tpu.memory_space<smem>>
      memref.store %cst_43, %arg6[%c4_44] : memref<8xf32, #tpu.memory_space<smem>>
      %cst_45 = arith.constant 0xFF800000 : f32
      %c5_46 = arith.constant 5 : index
      %133 = memref.load %arg6[%c5_46] : memref<8xf32, #tpu.memory_space<smem>>
      memref.store %cst_45, %arg6[%c5_46] : memref<8xf32, #tpu.memory_space<smem>>
    } else {
    }
    %c0 = arith.constant 0 : index
    %c0_1 = arith.constant 0 : index
    %c0_2 = arith.constant 0 : index
    %c0_3 = arith.constant 0 : index
    %3 = vector.load %arg1[%c0, %c0_1, %c0_2, %c0_3] : memref<1x18x18x3xf32, #tpu.memory_space<vmem>>, vector<1x18x18x3xf32>
    %4 = vector.shape_cast %3 : vector<1x18x18x3xf32> to vector<18x18x3xf32>
    %c0_4 = arith.constant 0 : index
    %c0_5 = arith.constant 0 : index
    %c0_6 = arith.constant 0 : index
    %c0_7 = arith.constant 0 : index
    %5 = vector.load %arg2[%c0_4, %c0_5, %c0_6, %c0_7] : memref<1x18x18x3xf32, #tpu.memory_space<vmem>>, vector<1x18x18x3xf32>
    %6 = vector.shape_cast %5 : vector<1x18x18x3xf32> to vector<18x18x3xf32>
    %7 = vector.extract_strided_slice %4 {offsets = [1, 1, 0], sizes = [16, 16, 3], strides = [1, 1, 1]} : vector<18x18x3xf32> to vector<16x16x3xf32>
    %8 = vector.shape_cast %7 : vector<16x16x3xf32> to vector<16x48xf32>
    %9 = vector.extract_strided_slice %6 {offsets = [1, 1, 0], sizes = [16, 16, 3], strides = [1, 1, 1]} : vector<18x18x3xf32> to vector<16x16x3xf32>
    %10 = vector.shape_cast %9 : vector<16x16x3xf32> to vector<16x48xf32>
    %11 = arith.subf %8, %10 : vector<16x48xf32>
    %c0_8 = arith.constant 0 : index
    %12 = memref.load %arg6[%c0_8] : memref<8xf32, #tpu.memory_space<smem>>
    %13 = arith.mulf %11, %11 : vector<16x48xf32>
    %14 = vector.shape_cast %13 : vector<16x48xf32> to vector<1x16x48xf32>
    %cst = arith.constant dense<0.000000e+00> : vector<1xf32>
    %15 = vector.multi_reduction <add>, %14, %cst [1, 2] : vector<1x16x48xf32> to vector<1xf32>
    %16 = vector.shape_cast %15 : vector<1xf32> to vector<1x1x1xf32>
    %17 = vector.extract %16[0, 0, 0] : f32 from vector<1x1x1xf32>
    %18 = arith.addf %12, %17 : f32
    %c0_9 = arith.constant 0 : index
    %19 = memref.load %arg6[%c0_9] : memref<8xf32, #tpu.memory_space<smem>>
    memref.store %18, %arg6[%c0_9] : memref<8xf32, #tpu.memory_space<smem>>
    %20 = vector.extract_strided_slice %8 {offsets = [1, 0], sizes = [15, 48], strides = [1, 1]} : vector<16x48xf32> to vector<15x48xf32>
    %21 = vector.extract_strided_slice %8 {offsets = [0, 0], sizes = [15, 48], strides = [1, 1]} : vector<16x48xf32> to vector<15x48xf32>
    %22 = arith.subf %20, %21 : vector<15x48xf32>
    %23 = vector.extract_strided_slice %8 {offsets = [0, 3], sizes = [16, 45], strides = [1, 1]} : vector<16x48xf32> to vector<16x45xf32>
    %24 = vector.extract_strided_slice %8 {offsets = [0, 0], sizes = [16, 45], strides = [1, 1]} : vector<16x48xf32> to vector<16x45xf32>
    %25 = arith.subf %23, %24 : vector<16x45xf32>
    %c1 = arith.constant 1 : index
    %26 = memref.load %arg6[%c1] : memref<8xf32, #tpu.memory_space<smem>>
    %27 = arith.mulf %22, %22 : vector<15x48xf32>
    %28 = vector.shape_cast %27 : vector<15x48xf32> to vector<1x15x48xf32>
    %cst_10 = arith.constant dense<0.000000e+00> : vector<1xf32>
    %29 = vector.multi_reduction <add>, %28, %cst_10 [1, 2] : vector<1x15x48xf32> to vector<1xf32>
    %30 = vector.shape_cast %29 : vector<1xf32> to vector<1x1x1xf32>
    %31 = vector.extract %30[0, 0, 0] : f32 from vector<1x1x1xf32>
    %32 = arith.addf %26, %31 : f32
    %c1_11 = arith.constant 1 : index
    %33 = memref.load %arg6[%c1_11] : memref<8xf32, #tpu.memory_space<smem>>
    memref.store %32, %arg6[%c1_11] : memref<8xf32, #tpu.memory_space<smem>>
    %c2 = arith.constant 2 : index
    %34 = memref.load %arg6[%c2] : memref<8xf32, #tpu.memory_space<smem>>
    %35 = arith.mulf %25, %25 : vector<16x45xf32>
    %36 = vector.shape_cast %35 : vector<16x45xf32> to vector<1x16x45xf32>
    %cst_12 = arith.constant dense<0.000000e+00> : vector<1xf32>
    %37 = vector.multi_reduction <add>, %36, %cst_12 [1, 2] : vector<1x16x45xf32> to vector<1xf32>
    %38 = vector.shape_cast %37 : vector<1xf32> to vector<1x1x1xf32>
    %39 = vector.extract %38[0, 0, 0] : f32 from vector<1x1x1xf32>
    %40 = arith.addf %34, %39 : f32
    %c2_13 = arith.constant 2 : index
    %41 = memref.load %arg6[%c2_13] : memref<8xf32, #tpu.memory_space<smem>>
    memref.store %40, %arg6[%c2_13] : memref<8xf32, #tpu.memory_space<smem>>
    %c4 = arith.constant 4 : index
    %42 = memref.load %arg6[%c4] : memref<8xf32, #tpu.memory_space<smem>>
    %43 = vector.shape_cast %8 : vector<16x48xf32> to vector<1x16x48xf32>
    %cst_14 = arith.constant dense<0xFF800000> : vector<1xf32>
    %44 = vector.multi_reduction <maximumf>, %43, %cst_14 [1, 2] : vector<1x16x48xf32> to vector<1xf32>
    %45 = vector.shape_cast %44 : vector<1xf32> to vector<1x1x1xf32>
    %46 = vector.extract %45[0, 0, 0] : f32 from vector<1x1x1xf32>
    %47 = arith.maximumf %42, %46 : f32
    %c4_15 = arith.constant 4 : index
    %48 = memref.load %arg6[%c4_15] : memref<8xf32, #tpu.memory_space<smem>>
    memref.store %47, %arg6[%c4_15] : memref<8xf32, #tpu.memory_space<smem>>
    %c5 = arith.constant 5 : index
    %49 = memref.load %arg6[%c5] : memref<8xf32, #tpu.memory_space<smem>>
    %50 = vector.shape_cast %10 : vector<16x48xf32> to vector<1x16x48xf32>
    %cst_16 = arith.constant dense<0xFF800000> : vector<1xf32>
    %51 = vector.multi_reduction <maximumf>, %50, %cst_16 [1, 2] : vector<1x16x48xf32> to vector<1xf32>
    %52 = vector.shape_cast %51 : vector<1xf32> to vector<1x1x1xf32>
    %53 = vector.extract %52[0, 0, 0] : f32 from vector<1x1x1xf32>
    %54 = arith.maximumf %49, %53 : f32
    %c5_17 = arith.constant 5 : index
    %55 = memref.load %arg6[%c5_17] : memref<8xf32, #tpu.memory_space<smem>>
    memref.store %54, %arg6[%c5_17] : memref<8xf32, #tpu.memory_space<smem>>
    %56 = vector.extract_strided_slice %4 {offsets = [0, 0, 0], sizes = [16, 16, 3], strides = [1, 1, 1]} : vector<18x18x3xf32> to vector<16x16x3xf32>
    %57 = vector.shape_cast %56 : vector<16x16x3xf32> to vector<256x3xf32>
    %58 = vector.extract_strided_slice %4 {offsets = [0, 1, 0], sizes = [16, 16, 3], strides = [1, 1, 1]} : vector<18x18x3xf32> to vector<16x16x3xf32>
    %59 = vector.shape_cast %58 : vector<16x16x3xf32> to vector<256x3xf32>
    %60 = vector.extract_strided_slice %4 {offsets = [0, 2, 0], sizes = [16, 16, 3], strides = [1, 1, 1]} : vector<18x18x3xf32> to vector<16x16x3xf32>
    %61 = vector.shape_cast %60 : vector<16x16x3xf32> to vector<256x3xf32>
    %62 = vector.extract_strided_slice %4 {offsets = [1, 0, 0], sizes = [16, 16, 3], strides = [1, 1, 1]} : vector<18x18x3xf32> to vector<16x16x3xf32>
    %63 = vector.shape_cast %62 : vector<16x16x3xf32> to vector<256x3xf32>
    %64 = vector.extract_strided_slice %4 {offsets = [1, 1, 0], sizes = [16, 16, 3], strides = [1, 1, 1]} : vector<18x18x3xf32> to vector<16x16x3xf32>
    %65 = vector.shape_cast %64 : vector<16x16x3xf32> to vector<256x3xf32>
    %66 = vector.extract_strided_slice %4 {offsets = [1, 2, 0], sizes = [16, 16, 3], strides = [1, 1, 1]} : vector<18x18x3xf32> to vector<16x16x3xf32>
    %67 = vector.shape_cast %66 : vector<16x16x3xf32> to vector<256x3xf32>
    %68 = vector.extract_strided_slice %4 {offsets = [2, 0, 0], sizes = [16, 16, 3], strides = [1, 1, 1]} : vector<18x18x3xf32> to vector<16x16x3xf32>
    %69 = vector.shape_cast %68 : vector<16x16x3xf32> to vector<256x3xf32>
    %70 = vector.extract_strided_slice %4 {offsets = [2, 1, 0], sizes = [16, 16, 3], strides = [1, 1, 1]} : vector<18x18x3xf32> to vector<16x16x3xf32>
    %71 = vector.shape_cast %70 : vector<16x16x3xf32> to vector<256x3xf32>
    %72 = vector.extract_strided_slice %4 {offsets = [2, 2, 0], sizes = [16, 16, 3], strides = [1, 1, 1]} : vector<18x18x3xf32> to vector<16x16x3xf32>
    %73 = vector.shape_cast %72 : vector<16x16x3xf32> to vector<256x3xf32>
    %74 = tpu.concatenate %57, %59, %61, %63, %65, %67, %69, %71, %73 in 1 : vector<256x3xf32>, vector<256x3xf32>, vector<256x3xf32>, vector<256x3xf32>, vector<256x3xf32>, vector<256x3xf32>, vector<256x3xf32>, vector<256x3xf32>, vector<256x3xf32> -> vector<256x27xf32>
    %c0_18 = arith.constant 0 : index
    %c0_19 = arith.constant 0 : index
    %75 = vector.load %arg3[%c0_18, %c0_19] : memref<27x128xf32, #tpu.memory_space<vmem>>, vector<27x128xf32>
    %cst_20 = arith.constant dense<0.000000e+00> : vector<256x128xf32>
    %76 = tpu.matmul %74, %75, %cst_20 {dimension_numbers = #tpu.dot_dimension_numbers<[1], [0], [0], [1], [0, 0, 1, 1], [], []>} : vector<256x27xf32>, vector<27x128xf32>, vector<256x128xf32> -> vector<256x128xf32>
    %c0_21 = arith.constant 0 : index
    %c0_22 = arith.constant 0 : index
    %77 = vector.load %arg4[%c0_21, %c0_22] : memref<1x128xf32, #tpu.memory_space<vmem>>, vector<1x128xf32>
    %78 = vector.shape_cast %77 : vector<1x128xf32> to vector<128xf32>
    %79 = vector.shape_cast %78 : vector<128xf32> to vector<1x128xf32>
    %80 = vector.broadcast %79 : vector<1x128xf32> to vector<256x128xf32>
    %81 = arith.addf %76, %80 : vector<256x128xf32>
    %cst_23 = arith.constant 0.000000e+00 : f32
    %cst_24 = arith.constant 6.000000e+00 : f32
    %82 = vector.broadcast %cst_23 : f32 to vector<256x128xf32>
    %83 = arith.maximumf %82, %81 : vector<256x128xf32>
    %84 = vector.broadcast %cst_24 : f32 to vector<256x128xf32>
    %85 = arith.minimumf %84, %83 : vector<256x128xf32>
    %86 = vector.extract_strided_slice %6 {offsets = [0, 0, 0], sizes = [16, 16, 3], strides = [1, 1, 1]} : vector<18x18x3xf32> to vector<16x16x3xf32>
    %87 = vector.shape_cast %86 : vector<16x16x3xf32> to vector<256x3xf32>
    %88 = vector.extract_strided_slice %6 {offsets = [0, 1, 0], sizes = [16, 16, 3], strides = [1, 1, 1]} : vector<18x18x3xf32> to vector<16x16x3xf32>
    %89 = vector.shape_cast %88 : vector<16x16x3xf32> to vector<256x3xf32>
    %90 = vector.extract_strided_slice %6 {offsets = [0, 2, 0], sizes = [16, 16, 3], strides = [1, 1, 1]} : vector<18x18x3xf32> to vector<16x16x3xf32>
    %91 = vector.shape_cast %90 : vector<16x16x3xf32> to vector<256x3xf32>
    %92 = vector.extract_strided_slice %6 {offsets = [1, 0, 0], sizes = [16, 16, 3], strides = [1, 1, 1]} : vector<18x18x3xf32> to vector<16x16x3xf32>
    %93 = vector.shape_cast %92 : vector<16x16x3xf32> to vector<256x3xf32>
    %94 = vector.extract_strided_slice %6 {offsets = [1, 1, 0], sizes = [16, 16, 3], strides = [1, 1, 1]} : vector<18x18x3xf32> to vector<16x16x3xf32>
    %95 = vector.shape_cast %94 : vector<16x16x3xf32> to vector<256x3xf32>
    %96 = vector.extract_strided_slice %6 {offsets = [1, 2, 0], sizes = [16, 16, 3], strides = [1, 1, 1]} : vector<18x18x3xf32> to vector<16x16x3xf32>
    %97 = vector.shape_cast %96 : vector<16x16x3xf32> to vector<256x3xf32>
    %98 = vector.extract_strided_slice %6 {offsets = [2, 0, 0], sizes = [16, 16, 3], strides = [1, 1, 1]} : vector<18x18x3xf32> to vector<16x16x3xf32>
    %99 = vector.shape_cast %98 : vector<16x16x3xf32> to vector<256x3xf32>
    %100 = vector.extract_strided_slice %6 {offsets = [2, 1, 0], sizes = [16, 16, 3], strides = [1, 1, 1]} : vector<18x18x3xf32> to vector<16x16x3xf32>
    %101 = vector.shape_cast %100 : vector<16x16x3xf32> to vector<256x3xf32>
    %102 = vector.extract_strided_slice %6 {offsets = [2, 2, 0], sizes = [16, 16, 3], strides = [1, 1, 1]} : vector<18x18x3xf32> to vector<16x16x3xf32>
    %103 = vector.shape_cast %102 : vector<16x16x3xf32> to vector<256x3xf32>
    %104 = tpu.concatenate %87, %89, %91, %93, %95, %97, %99, %101, %103 in 1 : vector<256x3xf32>, vector<256x3xf32>, vector<256x3xf32>, vector<256x3xf32>, vector<256x3xf32>, vector<256x3xf32>, vector<256x3xf32>, vector<256x3xf32>, vector<256x3xf32> -> vector<256x27xf32>
    %c0_25 = arith.constant 0 : index
    %c0_26 = arith.constant 0 : index
    %105 = vector.load %arg3[%c0_25, %c0_26] : memref<27x128xf32, #tpu.memory_space<vmem>>, vector<27x128xf32>
    %cst_27 = arith.constant dense<0.000000e+00> : vector<256x128xf32>
    %106 = tpu.matmul %104, %105, %cst_27 {dimension_numbers = #tpu.dot_dimension_numbers<[1], [0], [0], [1], [0, 0, 1, 1], [], []>} : vector<256x27xf32>, vector<27x128xf32>, vector<256x128xf32> -> vector<256x128xf32>
    %c0_28 = arith.constant 0 : index
    %c0_29 = arith.constant 0 : index
    %107 = vector.load %arg4[%c0_28, %c0_29] : memref<1x128xf32, #tpu.memory_space<vmem>>, vector<1x128xf32>
    %108 = vector.shape_cast %107 : vector<1x128xf32> to vector<128xf32>
    %109 = vector.shape_cast %108 : vector<128xf32> to vector<1x128xf32>
    %110 = vector.broadcast %109 : vector<1x128xf32> to vector<256x128xf32>
    %111 = arith.addf %106, %110 : vector<256x128xf32>
    %cst_30 = arith.constant 0.000000e+00 : f32
    %cst_31 = arith.constant 6.000000e+00 : f32
    %112 = vector.broadcast %cst_30 : f32 to vector<256x128xf32>
    %113 = arith.maximumf %112, %111 : vector<256x128xf32>
    %114 = vector.broadcast %cst_31 : f32 to vector<256x128xf32>
    %115 = arith.minimumf %114, %113 : vector<256x128xf32>
    %116 = arith.subf %85, %115 : vector<256x128xf32>
    %c3 = arith.constant 3 : index
    %117 = memref.load %arg6[%c3] : memref<8xf32, #tpu.memory_space<smem>>
    %118 = arith.mulf %116, %116 : vector<256x128xf32>
    %119 = vector.shape_cast %118 : vector<256x128xf32> to vector<1x256x128xf32>
    %cst_32 = arith.constant dense<0.000000e+00> : vector<1xf32>
    %120 = vector.multi_reduction <add>, %119, %cst_32 [1, 2] : vector<1x256x128xf32> to vector<1xf32>
    %121 = vector.shape_cast %120 : vector<1xf32> to vector<1x1x1xf32>
    %122 = vector.extract %121[0, 0, 0] : f32 from vector<1x1x1xf32>
    %123 = arith.addf %117, %122 : f32
    %c3_33 = arith.constant 3 : index
    %124 = memref.load %arg6[%c3_33] : memref<8xf32, #tpu.memory_space<smem>>
    memref.store %123, %arg6[%c3_33] : memref<8xf32, #tpu.memory_space<smem>>
    %c1_i32 = arith.constant 1 : i32
    %125 = arith.cmpi eq, %arg0, %c1_i32 : i32
    %126 = arith.extui %125 : i1 to i32
    %c0_i32_34 = arith.constant 0 : i32
    %127 = arith.cmpi ne, %126, %c0_i32_34 : i32
    scf.if %127 {
      %c0_35 = arith.constant 0 : index
      %128 = memref.load %arg6[%c0_35] : memref<8xf32, #tpu.memory_space<smem>>
      %c0_36 = arith.constant 0 : index
      %129 = memref.load %arg5[%c0_36] : memref<8xf32, #tpu.memory_space<smem>>
      memref.store %128, %arg5[%c0_36] : memref<8xf32, #tpu.memory_space<smem>>
      %c1_37 = arith.constant 1 : index
      %130 = memref.load %arg6[%c1_37] : memref<8xf32, #tpu.memory_space<smem>>
      %c1_38 = arith.constant 1 : index
      %131 = memref.load %arg5[%c1_38] : memref<8xf32, #tpu.memory_space<smem>>
      memref.store %130, %arg5[%c1_38] : memref<8xf32, #tpu.memory_space<smem>>
      %c2_39 = arith.constant 2 : index
      %132 = memref.load %arg6[%c2_39] : memref<8xf32, #tpu.memory_space<smem>>
      %c2_40 = arith.constant 2 : index
      %133 = memref.load %arg5[%c2_40] : memref<8xf32, #tpu.memory_space<smem>>
      memref.store %132, %arg5[%c2_40] : memref<8xf32, #tpu.memory_space<smem>>
      %c3_41 = arith.constant 3 : index
      %134 = memref.load %arg6[%c3_41] : memref<8xf32, #tpu.memory_space<smem>>
      %c3_42 = arith.constant 3 : index
      %135 = memref.load %arg5[%c3_42] : memref<8xf32, #tpu.memory_space<smem>>
      memref.store %134, %arg5[%c3_42] : memref<8xf32, #tpu.memory_space<smem>>
      %c4_43 = arith.constant 4 : index
      %136 = memref.load %arg6[%c4_43] : memref<8xf32, #tpu.memory_space<smem>>
      %c4_44 = arith.constant 4 : index
      %137 = memref.load %arg5[%c4_44] : memref<8xf32, #tpu.memory_space<smem>>
      memref.store %136, %arg5[%c4_44] : memref<8xf32, #tpu.memory_space<smem>>
      %c5_45 = arith.constant 5 : index
      %138 = memref.load %arg6[%c5_45] : memref<8xf32, #tpu.memory_space<smem>>
      %c5_46 = arith.constant 5 : index
      %139 = memref.load %arg5[%c5_46] : memref<8xf32, #tpu.memory_space<smem>>
      memref.store %138, %arg5[%c5_46] : memref<8xf32, #tpu.memory_space<smem>>
      %cst_47 = arith.constant 0.000000e+00 : f32
      %c6 = arith.constant 6 : index
      %140 = memref.load %arg5[%c6] : memref<8xf32, #tpu.memory_space<smem>>
      memref.store %cst_47, %arg5[%c6] : memref<8xf32, #tpu.memory_space<smem>>
      %cst_48 = arith.constant 0.000000e+00 : f32
      %c7 = arith.constant 7 : index
      %141 = memref.load %arg5[%c7] : memref<8xf32, #tpu.memory_space<smem>>
      memref.store %cst_48, %arg5[%c7] : memref<8xf32, #tpu.memory_space<smem>>
    } else {
    }
    return
  }
  func.func @transform_0(%arg0: i32) -> (i32, i32, i32, i32) {
    %c0_i32 = arith.constant 0 : i32
    %c0_i32_0 = arith.constant 0 : i32
    %c0_i32_1 = arith.constant 0 : i32
    %c0_i32_2 = arith.constant 0 : i32
    return %arg0, %c0_i32, %c0_i32_0, %c0_i32_1 : i32, i32, i32, i32
  }
  func.func @transform_1(%arg0: i32) -> (i32, i32, i32, i32) {
    %c0_i32 = arith.constant 0 : i32
    %c0_i32_0 = arith.constant 0 : i32
    %c0_i32_1 = arith.constant 0 : i32
    %c0_i32_2 = arith.constant 0 : i32
    return %arg0, %c0_i32, %c0_i32_0, %c0_i32_1 : i32, i32, i32, i32
  }
  func.func @transform_2(%arg0: i32) -> (i32, i32) {
    %c0_i32 = arith.constant 0 : i32
    %c0_i32_0 = arith.constant 0 : i32
    %c0_i32_1 = arith.constant 0 : i32
    return %c0_i32, %c0_i32_0 : i32, i32
  }
  func.func @transform_3(%arg0: i32) -> (i32, i32) {
    %c0_i32 = arith.constant 0 : i32
    %c0_i32_0 = arith.constant 0 : i32
    %c0_i32_1 = arith.constant 0 : i32
    return %c0_i32, %c0_i32_0 : i32, i32
  }
  func.func @transform_4(%arg0: i32) -> i32 {
    %c0_i32 = arith.constant 0 : i32
    %c0_i32_0 = arith.constant 0 : i32
    return %c0_i32 : i32
  }
}

module attributes {stable_mosaic.version = 11 : i64} {
  func.func @_ssim_kernel(%arg0: i32, %arg1: memref<1x1xf32, #tpu.memory_space<vmem>>, %arg2: memref<1x16x16xf32, #tpu.memory_space<vmem>>, %arg3: memref<1x16x16xf32, #tpu.memory_space<vmem>>, %arg4: memref<6x16xf32, #tpu.memory_space<vmem>>, %arg5: memref<16x6xf32, #tpu.memory_space<vmem>>, %arg6: memref<1xf32, #tpu.memory_space<smem>>, %arg7: memref<1xf32, #tpu.memory_space<smem>>) attributes {dimension_semantics = [#tpu.dimension_semantics<arbitrary>], iteration_bounds = array<i64: 6>, scalar_prefetch = 0 : i64, scratch_operands = 1 : i64, tpu.core_type = #tpu.core_type<tc>, window_params = [{pipeline_mode = #tpu.pipeline_mode<synchronous>, transform_indices = @transform_0, window_bounds = array<i64: 1, 1>}, {transform_indices = @transform_1, window_bounds = array<i64: 1, 16, 16>}, {transform_indices = @transform_2, window_bounds = array<i64: 1, 16, 16>}, {pipeline_mode = #tpu.pipeline_mode<synchronous>, transform_indices = @transform_3, window_bounds = array<i64: 6, 16>}, {pipeline_mode = #tpu.pipeline_mode<synchronous>, transform_indices = @transform_4, window_bounds = array<i64: 16, 6>}, {transform_indices = @transform_5, window_bounds = array<i64: 1>}]} {
    %c0_i32 = arith.constant 0 : i32
    %0 = arith.cmpi eq, %arg0, %c0_i32 : i32
    %1 = arith.extui %0 : i1 to i32
    %c0_i32_0 = arith.constant 0 : i32
    %2 = arith.cmpi ne, %1, %c0_i32_0 : i32
    scf.if %2 {
      %cst_29 = arith.constant 0.000000e+00 : f32
      %c0_30 = arith.constant 0 : index
      %61 = memref.load %arg7[%c0_30] : memref<1xf32, #tpu.memory_space<smem>>
      memref.store %cst_29, %arg7[%c0_30] : memref<1xf32, #tpu.memory_space<smem>>
    } else {
    }
    %c0 = arith.constant 0 : index
    %c0_1 = arith.constant 0 : index
    %3 = vector.load %arg1[%c0, %c0_1] : memref<1x1xf32, #tpu.memory_space<vmem>>, vector<1x1xf32>
    %4 = vector.extract %3[0, 0] : f32 from vector<1x1xf32>
    %cst = arith.constant 0.00999999977 : f32
    %5 = arith.mulf %cst, %4 : f32
    %6 = arith.mulf %5, %5 : f32
    %cst_2 = arith.constant 3.000000e-02 : f32
    %7 = arith.mulf %cst_2, %4 : f32
    %8 = arith.mulf %7, %7 : f32
    %c0_3 = arith.constant 0 : index
    %c0_4 = arith.constant 0 : index
    %c0_5 = arith.constant 0 : index
    %9 = vector.load %arg2[%c0_3, %c0_4, %c0_5] : memref<1x16x16xf32, #tpu.memory_space<vmem>>, vector<1x16x16xf32>
    %10 = vector.shape_cast %9 : vector<1x16x16xf32> to vector<16x16xf32>
    %c0_6 = arith.constant 0 : index
    %c0_7 = arith.constant 0 : index
    %c0_8 = arith.constant 0 : index
    %11 = vector.load %arg3[%c0_6, %c0_7, %c0_8] : memref<1x16x16xf32, #tpu.memory_space<vmem>>, vector<1x16x16xf32>
    %12 = vector.shape_cast %11 : vector<1x16x16xf32> to vector<16x16xf32>
    %c0_9 = arith.constant 0 : index
    %c0_10 = arith.constant 0 : index
    %13 = vector.load %arg4[%c0_9, %c0_10] : memref<6x16xf32, #tpu.memory_space<vmem>>, vector<6x16xf32>
    %c0_11 = arith.constant 0 : index
    %c0_12 = arith.constant 0 : index
    %14 = vector.load %arg5[%c0_11, %c0_12] : memref<16x6xf32, #tpu.memory_space<vmem>>, vector<16x6xf32>
    %cst_13 = arith.constant dense<0.000000e+00> : vector<6x16xf32>
    %15 = tpu.matmul %13, %10, %cst_13 {dimension_numbers = #tpu.dot_dimension_numbers<[1], [0], [0], [1], [0, 0, 1, 1], [], []>} : vector<6x16xf32>, vector<16x16xf32>, vector<6x16xf32> -> vector<6x16xf32>
    %cst_14 = arith.constant dense<0.000000e+00> : vector<6x6xf32>
    %16 = tpu.matmul %15, %14, %cst_14 {dimension_numbers = #tpu.dot_dimension_numbers<[1], [0], [0], [1], [0, 0, 1, 1], [], []>} : vector<6x16xf32>, vector<16x6xf32>, vector<6x6xf32> -> vector<6x6xf32>
    %cst_15 = arith.constant dense<0.000000e+00> : vector<6x16xf32>
    %17 = tpu.matmul %13, %12, %cst_15 {dimension_numbers = #tpu.dot_dimension_numbers<[1], [0], [0], [1], [0, 0, 1, 1], [], []>} : vector<6x16xf32>, vector<16x16xf32>, vector<6x16xf32> -> vector<6x16xf32>
    %cst_16 = arith.constant dense<0.000000e+00> : vector<6x6xf32>
    %18 = tpu.matmul %17, %14, %cst_16 {dimension_numbers = #tpu.dot_dimension_numbers<[1], [0], [0], [1], [0, 0, 1, 1], [], []>} : vector<6x16xf32>, vector<16x6xf32>, vector<6x6xf32> -> vector<6x6xf32>
    %19 = arith.mulf %16, %16 : vector<6x6xf32>
    %20 = arith.mulf %18, %18 : vector<6x6xf32>
    %21 = arith.mulf %16, %18 : vector<6x6xf32>
    %22 = arith.mulf %10, %10 : vector<16x16xf32>
    %cst_17 = arith.constant dense<0.000000e+00> : vector<6x16xf32>
    %23 = tpu.matmul %13, %22, %cst_17 {dimension_numbers = #tpu.dot_dimension_numbers<[1], [0], [0], [1], [0, 0, 1, 1], [], []>} : vector<6x16xf32>, vector<16x16xf32>, vector<6x16xf32> -> vector<6x16xf32>
    %cst_18 = arith.constant dense<0.000000e+00> : vector<6x6xf32>
    %24 = tpu.matmul %23, %14, %cst_18 {dimension_numbers = #tpu.dot_dimension_numbers<[1], [0], [0], [1], [0, 0, 1, 1], [], []>} : vector<6x16xf32>, vector<16x6xf32>, vector<6x6xf32> -> vector<6x6xf32>
    %25 = arith.subf %24, %19 : vector<6x6xf32>
    %26 = arith.mulf %12, %12 : vector<16x16xf32>
    %cst_19 = arith.constant dense<0.000000e+00> : vector<6x16xf32>
    %27 = tpu.matmul %13, %26, %cst_19 {dimension_numbers = #tpu.dot_dimension_numbers<[1], [0], [0], [1], [0, 0, 1, 1], [], []>} : vector<6x16xf32>, vector<16x16xf32>, vector<6x16xf32> -> vector<6x16xf32>
    %cst_20 = arith.constant dense<0.000000e+00> : vector<6x6xf32>
    %28 = tpu.matmul %27, %14, %cst_20 {dimension_numbers = #tpu.dot_dimension_numbers<[1], [0], [0], [1], [0, 0, 1, 1], [], []>} : vector<6x16xf32>, vector<16x6xf32>, vector<6x6xf32> -> vector<6x6xf32>
    %29 = arith.subf %28, %20 : vector<6x6xf32>
    %30 = arith.mulf %10, %12 : vector<16x16xf32>
    %cst_21 = arith.constant dense<0.000000e+00> : vector<6x16xf32>
    %31 = tpu.matmul %13, %30, %cst_21 {dimension_numbers = #tpu.dot_dimension_numbers<[1], [0], [0], [1], [0, 0, 1, 1], [], []>} : vector<6x16xf32>, vector<16x16xf32>, vector<6x16xf32> -> vector<6x16xf32>
    %cst_22 = arith.constant dense<0.000000e+00> : vector<6x6xf32>
    %32 = tpu.matmul %31, %14, %cst_22 {dimension_numbers = #tpu.dot_dimension_numbers<[1], [0], [0], [1], [0, 0, 1, 1], [], []>} : vector<6x16xf32>, vector<16x6xf32>, vector<6x6xf32> -> vector<6x6xf32>
    %33 = arith.subf %32, %21 : vector<6x6xf32>
    %cst_23 = arith.constant 2.000000e+00 : f32
    %34 = vector.broadcast %cst_23 : f32 to vector<6x6xf32>
    %35 = arith.mulf %34, %33 : vector<6x6xf32>
    %36 = vector.broadcast %8 : f32 to vector<6x6xf32>
    %37 = arith.addf %35, %36 : vector<6x6xf32>
    %38 = arith.addf %25, %29 : vector<6x6xf32>
    %39 = vector.broadcast %8 : f32 to vector<6x6xf32>
    %40 = arith.addf %38, %39 : vector<6x6xf32>
    %41 = arith.divf %37, %40 : vector<6x6xf32>
    %cst_24 = arith.constant 2.000000e+00 : f32
    %42 = vector.broadcast %cst_24 : f32 to vector<6x6xf32>
    %43 = arith.mulf %42, %21 : vector<6x6xf32>
    %44 = vector.broadcast %6 : f32 to vector<6x6xf32>
    %45 = arith.addf %43, %44 : vector<6x6xf32>
    %46 = arith.addf %19, %20 : vector<6x6xf32>
    %47 = vector.broadcast %6 : f32 to vector<6x6xf32>
    %48 = arith.addf %46, %47 : vector<6x6xf32>
    %49 = arith.divf %45, %48 : vector<6x6xf32>
    %50 = arith.mulf %49, %41 : vector<6x6xf32>
    %c0_25 = arith.constant 0 : index
    %51 = memref.load %arg7[%c0_25] : memref<1xf32, #tpu.memory_space<smem>>
    %52 = vector.shape_cast %50 : vector<6x6xf32> to vector<1x6x6xf32>
    %cst_26 = arith.constant dense<0.000000e+00> : vector<1xf32>
    %53 = vector.multi_reduction <add>, %52, %cst_26 [1, 2] : vector<1x6x6xf32> to vector<1xf32>
    %54 = vector.shape_cast %53 : vector<1xf32> to vector<1x1x1xf32>
    %55 = vector.extract %54[0, 0, 0] : f32 from vector<1x1x1xf32>
    %56 = arith.addf %51, %55 : f32
    %c0_27 = arith.constant 0 : index
    %57 = memref.load %arg7[%c0_27] : memref<1xf32, #tpu.memory_space<smem>>
    memref.store %56, %arg7[%c0_27] : memref<1xf32, #tpu.memory_space<smem>>
    %c5_i32 = arith.constant 5 : i32
    %58 = arith.cmpi eq, %arg0, %c5_i32 : i32
    %59 = arith.extui %58 : i1 to i32
    %c0_i32_28 = arith.constant 0 : i32
    %60 = arith.cmpi ne, %59, %c0_i32_28 : i32
    scf.if %60 {
      %c0_29 = arith.constant 0 : index
      %61 = memref.load %arg7[%c0_29] : memref<1xf32, #tpu.memory_space<smem>>
      %c0_30 = arith.constant 0 : index
      %62 = memref.load %arg6[%c0_30] : memref<1xf32, #tpu.memory_space<smem>>
      memref.store %61, %arg6[%c0_30] : memref<1xf32, #tpu.memory_space<smem>>
    } else {
    }
    return
  }
  func.func @transform_0(%arg0: i32) -> (i32, i32) {
    %c0_i32 = arith.constant 0 : i32
    %c0_i32_0 = arith.constant 0 : i32
    %c0_i32_1 = arith.constant 0 : i32
    return %c0_i32, %c0_i32_0 : i32, i32
  }
  func.func @transform_1(%arg0: i32) -> (i32, i32, i32) {
    %c0_i32 = arith.constant 0 : i32
    %c0_i32_0 = arith.constant 0 : i32
    %c0_i32_1 = arith.constant 0 : i32
    return %arg0, %c0_i32, %c0_i32_0 : i32, i32, i32
  }
  func.func @transform_2(%arg0: i32) -> (i32, i32, i32) {
    %c0_i32 = arith.constant 0 : i32
    %c0_i32_0 = arith.constant 0 : i32
    %c0_i32_1 = arith.constant 0 : i32
    return %arg0, %c0_i32, %c0_i32_0 : i32, i32, i32
  }
  func.func @transform_3(%arg0: i32) -> (i32, i32) {
    %c0_i32 = arith.constant 0 : i32
    %c0_i32_0 = arith.constant 0 : i32
    %c0_i32_1 = arith.constant 0 : i32
    return %c0_i32, %c0_i32_0 : i32, i32
  }
  func.func @transform_4(%arg0: i32) -> (i32, i32) {
    %c0_i32 = arith.constant 0 : i32
    %c0_i32_0 = arith.constant 0 : i32
    %c0_i32_1 = arith.constant 0 : i32
    return %c0_i32, %c0_i32_0 : i32, i32
  }
  func.func @transform_5(%arg0: i32) -> i32 {
    %c0_i32 = arith.constant 0 : i32
    %c0_i32_0 = arith.constant 0 : i32
    return %c0_i32 : i32
  }
}

module attributes {stable_mosaic.version = 11 : i64} {
  func.func @_adv_kernel(%arg0: memref<2x1xf32, #tpu.memory_space<vmem>>, %arg1: memref<2x1xf32, #tpu.memory_space<vmem>>, %arg2: memref<1xf32, #tpu.memory_space<smem>>) attributes {dimension_semantics = [], scalar_prefetch = 0 : i64, scratch_operands = 0 : i64, tpu.core_type = #tpu.core_type<tc>} {
    %c0 = arith.constant 0 : index
    %c0_0 = arith.constant 0 : index
    %0 = vector.load %arg0[%c0, %c0_0] : memref<2x1xf32, #tpu.memory_space<vmem>>, vector<2x1xf32>
    %c0_1 = arith.constant 0 : index
    %c0_2 = arith.constant 0 : index
    %1 = vector.load %arg1[%c0_1, %c0_2] : memref<2x1xf32, #tpu.memory_space<vmem>>, vector<2x1xf32>
    %2 = vector.shape_cast %0 : vector<2x1xf32> to vector<1x2x1xf32>
    %cst = arith.constant dense<0.000000e+00> : vector<1xf32>
    %3 = vector.multi_reduction <add>, %2, %cst [1, 2] : vector<1x2x1xf32> to vector<1xf32>
    %4 = vector.shape_cast %3 : vector<1xf32> to vector<1x1x1xf32>
    %5 = vector.extract %4[0, 0, 0] : f32 from vector<1x1x1xf32>
    %cst_3 = arith.constant 2.000000e+00 : f32
    %6 = arith.divf %5, %cst_3 : f32
    %7 = vector.shape_cast %1 : vector<2x1xf32> to vector<1x2x1xf32>
    %cst_4 = arith.constant dense<0.000000e+00> : vector<1xf32>
    %8 = vector.multi_reduction <add>, %7, %cst_4 [1, 2] : vector<1x2x1xf32> to vector<1xf32>
    %9 = vector.shape_cast %8 : vector<1xf32> to vector<1x1x1xf32>
    %10 = vector.extract %9[0, 0, 0] : f32 from vector<1x1x1xf32>
    %cst_5 = arith.constant 2.000000e+00 : f32
    %11 = arith.divf %10, %cst_5 : f32
    %12 = vector.broadcast %11 : f32 to vector<2x1xf32>
    %13 = arith.subf %0, %12 : vector<2x1xf32>
    %cst_6 = arith.constant 0.000000e+00 : f32
    %14 = vector.broadcast %cst_6 : f32 to vector<2x1xf32>
    %15 = arith.subf %14, %13 : vector<2x1xf32>
    %cst_7 = arith.constant 0.000000e+00 : f32
    %16 = vector.broadcast %cst_7 : f32 to vector<2x1xf32>
    %17 = arith.maximumf %15, %16 : vector<2x1xf32>
    %18 = math.absf %15 : vector<2x1xf32>
    %cst_8 = arith.constant 0.000000e+00 : f32
    %19 = vector.broadcast %cst_8 : f32 to vector<2x1xf32>
    %20 = arith.subf %19, %18 : vector<2x1xf32>
    %21 = math.exp %20 : vector<2x1xf32>
    %cst_9 = arith.constant 1.000000e+00 : f32
    %22 = vector.broadcast %cst_9 : f32 to vector<2x1xf32>
    %23 = arith.addf %22, %21 : vector<2x1xf32>
    %24 = math.log %23 : vector<2x1xf32>
    %25 = arith.addf %17, %24 : vector<2x1xf32>
    %26 = vector.shape_cast %25 : vector<2x1xf32> to vector<1x2x1xf32>
    %cst_10 = arith.constant dense<0.000000e+00> : vector<1xf32>
    %27 = vector.multi_reduction <add>, %26, %cst_10 [1, 2] : vector<1x2x1xf32> to vector<1xf32>
    %28 = vector.shape_cast %27 : vector<1xf32> to vector<1x1x1xf32>
    %29 = vector.extract %28[0, 0, 0] : f32 from vector<1x1x1xf32>
    %cst_11 = arith.constant 2.000000e+00 : f32
    %30 = arith.divf %29, %cst_11 : f32
    %31 = vector.broadcast %6 : f32 to vector<2x1xf32>
    %32 = arith.subf %1, %31 : vector<2x1xf32>
    %cst_12 = arith.constant 0.000000e+00 : f32
    %33 = vector.broadcast %cst_12 : f32 to vector<2x1xf32>
    %34 = arith.maximumf %32, %33 : vector<2x1xf32>
    %35 = math.absf %32 : vector<2x1xf32>
    %cst_13 = arith.constant 0.000000e+00 : f32
    %36 = vector.broadcast %cst_13 : f32 to vector<2x1xf32>
    %37 = arith.subf %36, %35 : vector<2x1xf32>
    %38 = math.exp %37 : vector<2x1xf32>
    %cst_14 = arith.constant 1.000000e+00 : f32
    %39 = vector.broadcast %cst_14 : f32 to vector<2x1xf32>
    %40 = arith.addf %39, %38 : vector<2x1xf32>
    %41 = math.log %40 : vector<2x1xf32>
    %42 = arith.addf %34, %41 : vector<2x1xf32>
    %43 = vector.shape_cast %42 : vector<2x1xf32> to vector<1x2x1xf32>
    %cst_15 = arith.constant dense<0.000000e+00> : vector<1xf32>
    %44 = vector.multi_reduction <add>, %43, %cst_15 [1, 2] : vector<1x2x1xf32> to vector<1xf32>
    %45 = vector.shape_cast %44 : vector<1xf32> to vector<1x1x1xf32>
    %46 = vector.extract %45[0, 0, 0] : f32 from vector<1x1x1xf32>
    %cst_16 = arith.constant 2.000000e+00 : f32
    %47 = arith.divf %46, %cst_16 : f32
    %48 = arith.addf %30, %47 : f32
    %cst_17 = arith.constant 5.000000e-01 : f32
    %49 = arith.mulf %cst_17, %48 : f32
    %c0_18 = arith.constant 0 : index
    %50 = memref.load %arg2[%c0_18] : memref<1xf32, #tpu.memory_space<smem>>
    memref.store %49, %arg2[%c0_18] : memref<1xf32, #tpu.memory_space<smem>>
    return
  }
}

</mosaic_0001>

<llo_original>
// kernel: generator_loss.5
$region0: #{generator_loss.5}
  #allocation0 [shape = 'u32[]', space=smem, size = 0x4, offset = 0x4, fixed_abs, tag = 'smem constant byte address 0x4 - core index']
  #allocation1 [shape = 'u32[144,128]{1,0:T(1,128)}', space=vmem, size = 0x12000, scoped, tag = 'internal scratch']
  #allocation2 [shape = 'f32[1]{0:T(128)}', space=smem, size = 0x200, scoped, tag = 'scratch operand']
  #allocation3 [shape = 'f32[1,1]{1,0:T(1,128)S(1)}', space=vmem, size = 0x200, scoped, tag = 'scoped memory for generator_loss.5']
  %s0 = inlined_call_operand.<no memory space> [shape: f32[1,1], index: 0, kind: input, shape index: {}]
  %s1 = inlined_call_operand.vmem [shape: f32[6,16,16], index: 1, kind: input, shape index: {}]
  %s2 = inlined_call_operand.vmem [shape: f32[6,16,16], index: 2, kind: input, shape index: {}]
  %s3 = inlined_call_operand.vmem [shape: f32[6,16], index: 3, kind: input, shape index: {}]
  %s4 = inlined_call_operand.vmem [shape: f32[16,6], index: 4, kind: input, shape index: {}]
  %s5 = inlined_call_operand.hbm [shape: f32[1], index: 5, kind: output, shape index: {}]
  %s6 = sld [smem:[#allocation0]]
  $region61: #{generator_loss.5} parent=0
    _
  %s8 = ssub.s32 1, %s6
  %s9 = scalar_select 0, %s8, %s6
  %v10 = vstv %s0
  %11 = vst [vmem:[#allocation3] sm:$0x1] %v10
  $region1: #{generator_loss.5} parent=0
    #allocation4 [shape = 'u8[512]{0}', space=smem, size = 0x200, scoped, tag = 'output window, operand 0, single buffered']
    #allocation5 [shape = 's32[2]{0}', space=sflag, size = 0x8, scoped, tag = 'scoped memory for generator_loss.5']
    %12 = vsyncpa [#allocation5], 0
    loop: start=0, step=1, limit=8
    $region2: #{generator_loss.5} parent=1 // loop_pre_header
      _
    $region3: #{generator_loss.5} parent=1 // loop_header
      %s14 = sphi 0, %s18
      %p15 = scmp.ge.s32.totalorder %s14, 8
      %s22 = sphi 0, %s22
      %s24 = sphi 0, %s22
      %s25 = sphi 0, %s24
      %s39 = sphi 0, %s25
      %s45 = sphi 0, %s47
      %s48 = sphi 0, %s45
      %s49 = sphi 0, %s48
      %s65 = sphi 0, %s49
      %s71 = sphi 0, %s73
      %s74 = sphi 0, %s71
      %s75 = sphi 0, %s74
      %s91 = sphi 0, %s75
      %s95 = sphi 0, %s95
      %s97 = sphi 0, %s95
      %s98 = sphi 0, %s97
      %s112 = sphi 0, %s98
      %s116 = sphi 0, %s116
      %s118 = sphi 0, %s116
      %s119 = sphi 0, %s118
      %s133 = sphi 0, %s119
      %s137 = sphi 0, %s137
      %s139 = sphi 0, %s137
      %s140 = sphi 0, %s139
      %s154 = sphi 0, %s140
    $region4: #{generator_loss.5} parent=1 // loop_header_branch
      %17 = sbr.rel (%p15) target = $region8
    $region5: #{generator_loss.5} parent=1 // loop_body
      %s19 = ssub.s32 %s14, 1
      %s20 = ssub.s32 %s14, 2
      %s21 = sadd.s32 %s14, 1
      %s23 = sadd.s32 %s22, 1
      %p26 = scmp.eq.s32.totalorder %s14, 5
      %p27 = scmp.ne.s32.totalorder %s22, %s24
      %p28 = scmp.eq.s32.totalorder %s14, 0
      %p29 = por %p27, %p28
      %p30 = scmp.ne.s32.totalorder %s22, %s24
      %p31 = scmp.eq.s32.totalorder %s19, 5
      %p32 = por %p30, %p31
      %p33 = scmp.ne.s32.totalorder %s24, %s25
      %p34 = scmp.eq.s32.totalorder %s19, 0
      %p35 = por %p33, %p34
      %p36 = scmp.ne.s32.totalorder %s24, %s25
      %p37 = scmp.eq.s32.totalorder %s20, 5
      %p38 = por %p36, %p37
      %p40 = scmp.ne.s32.totalorder %s25, %s39
      %p41 = scmp.eq.s32.totalorder %s20, 0
      %p42 = por %p40, %p41
      %s43 = ssub.s32 %s14, %s21
      %p44 = scmp.eq.s32.totalorder %s43, 0
      %s46 = sadd.s32 %s45, 1
      %s47 = scalar_select %p44, %s45, %s46
      %p50 = pneg %p44
      %p51 = scmp.eq.s32.totalorder %s14, 5
      %p52 = por %p50, %p51
      %p53 = scmp.ne.s32.totalorder %s45, %s48
      %p54 = scmp.eq.s32.totalorder %s14, 0
      %p55 = por %p53, %p54
      %p56 = scmp.ne.s32.totalorder %s45, %s48
      %p57 = scmp.eq.s32.totalorder %s19, 5
      %p58 = por %p56, %p57
      %p59 = scmp.ne.s32.totalorder %s48, %s49
      %p60 = scmp.eq.s32.totalorder %s19, 0
      %p61 = por %p59, %p60
      %p62 = scmp.ne.s32.totalorder %s48, %s49
      %p63 = scmp.eq.s32.totalorder %s20, 5
      %p64 = por %p62, %p63
      %p66 = scmp.ne.s32.totalorder %s49, %s65
      %p67 = scmp.eq.s32.totalorder %s20, 0
      %p68 = por %p66, %p67
      %s69 = ssub.s32 %s14, %s21
      %p70 = scmp.eq.s32.totalorder %s69, 0
      %s72 = sadd.s32 %s71, 1
      %s73 = scalar_select %p70, %s71, %s72
      %p76 = pneg %p70
      %p77 = scmp.eq.s32.totalorder %s14, 5
      %p78 = por %p76, %p77
      %p79 = scmp.ne.s32.totalorder %s71, %s74
      %p80 = scmp.eq.s32.totalorder %s14, 0
      %p81 = por %p79, %p80
      %p82 = scmp.ne.s32.totalorder %s71, %s74
      %p83 = scmp.eq.s32.totalorder %s19, 5
      %p84 = por %p82, %p83
      %p85 = scmp.ne.s32.totalorder %s74, %s75
      %p86 = scmp.eq.s32.totalorder %s19, 0
      %p87 = por %p85, %p86
      %p88 = scmp.ne.s32.totalorder %s74, %s75
      %p89 = scmp.eq.s32.totalorder %s20, 5
      %p90 = por %p88, %p89
      %p92 = scmp.ne.s32.totalorder %s75, %s91
      %p93 = scmp.eq.s32.totalorder %s20, 0
      %p94 = por %p92, %p93
      %s96 = sadd.s32 %s95, 1
      %p99 = scmp.eq.s32.totalorder %s14, 5
      %p100 = scmp.ne.s32.totalorder %s95, %s97
      %p101 = scmp.eq.s32.totalorder %s14, 0
      %p102 = por %p100, %p101
      %p103 = scmp.ne.s32.totalorder %s95, %s97
      %p104 = scmp.eq.s32.totalorder %s19, 5
      %p105 = por %p103, %p104
      %p106 = scmp.ne.s32.totalorder %s97, %s98
      %p107 = scmp.eq.s32.totalorder %s19, 0
      %p108 = por %p106, %p107
      %p109 = scmp.ne.s32.totalorder %s97, %s98
      %p110 = scmp.eq.s32.totalorder %s20, 5
      %p111 = por %p109, %p110
      %p113 = scmp.ne.s32.totalorder %s98, %s112
      %p114 = scmp.eq.s32.totalorder %s20, 0
      %p115 = por %p113, %p114
      %s117 = sadd.s32 %s116, 1
      %p120 = scmp.eq.s32.totalorder %s14, 5
      %p121 = scmp.ne.s32.totalorder %s116, %s118
      %p122 = scmp.eq.s32.totalorder %s14, 0
      %p123 = por %p121, %p122
      %p124 = scmp.ne.s32.totalorder %s116, %s118
      %p125 = scmp.eq.s32.totalorder %s19, 5
      %p126 = por %p124, %p125
      %p127 = scmp.ne.s32.totalorder %s118, %s119
      %p128 = scmp.eq.s32.totalorder %s19, 0
      %p129 = por %p127, %p128
      %p130 = scmp.ne.s32.totalorder %s118, %s119
      %p131 = scmp.eq.s32.totalorder %s20, 5
      %p132 = por %p130, %p131
      %p134 = scmp.ne.s32.totalorder %s119, %s133
      %p135 = scmp.eq.s32.totalorder %s20, 0
      %p136 = por %p134, %p135
      %s138 = sadd.s32 %s137, 1
      %p141 = scmp.eq.s32.totalorder %s14, 5
      %p142 = scmp.ne.s32.totalorder %s137, %s139
      %p143 = scmp.eq.s32.totalorder %s14, 0
      %p144 = por %p142, %p143
      %p145 = scmp.ne.s32.totalorder %s137, %s139
      %p146 = scmp.eq.s32.totalorder %s19, 5
      %p147 = por %p145, %p146
      %p148 = scmp.ne.s32.totalorder %s139, %s140
      %p149 = scmp.eq.s32.totalorder %s19, 0
      %p150 = por %p148, %p149
      %p151 = scmp.ne.s32.totalorder %s139, %s140
      %p152 = scmp.eq.s32.totalorder %s20, 5
      %p153 = por %p151, %p152
      %p155 = scmp.ne.s32.totalorder %s140, %s154
      %p156 = scmp.eq.s32.totalorder %s20, 0
      %p157 = por %p155, %p156
      %p158 = scmp.le.s32.totalorder 1, %s14
      %p159 = scmp.lt.s32.totalorder %s14, 7
      %p160 = pnand %p158, %p159
      %p161 = pneg %p160
      // Predicated region
      $region9: #{generator_loss.5} parent=5 // pred_check
        _
      $region10: #{generator_loss.5} parent=5 // pred_check_branch
        %163 = sbr.rel (%p160) target = $region12
      $region11: #{generator_loss.5} parent=5 // pred_region
        %s164 = ssub.s32 %s14, 1
        // Predicated region
        $region13: #{generator_loss.5} parent=11 // pred_check
          %p165 = pneg %p35
        $region14: #{generator_loss.5} parent=11 // pred_check_branch
          %167 = sbr.rel (%p165) target = $region16
        $region15: #{generator_loss.5} parent=11 // pred_region
          _
        $region16: #{generator_loss.5} parent=11 // pred_fallthru
          _
        // Predicated region
        $region17: #{generator_loss.5} parent=11 // pred_check
          %p168 = pneg %p108
        $region18: #{generator_loss.5} parent=11 // pred_check_branch
          %170 = sbr.rel (%p168) target = $region20
        $region19: #{generator_loss.5} parent=11 // pred_region
          _
        $region20: #{generator_loss.5} parent=11 // pred_fallthru
          _
        // Predicated region
        $region21: #{generator_loss.5} parent=11 // pred_check
          %p171 = pneg %p129
        $region22: #{generator_loss.5} parent=11 // pred_check_branch
          %173 = sbr.rel (%p171) target = $region24
        $region23: #{generator_loss.5} parent=11 // pred_region
          _
        $region24: #{generator_loss.5} parent=11 // pred_fallthru
          _
      $region12: #{generator_loss.5} parent=5 // pred_fallthru
        _
      %p174 = scmp.lt.s32.totalorder %s14, 6
      // Predicated region
      $region25: #{generator_loss.5} parent=5 // pred_check
        %p175 = pneg %p174
      $region26: #{generator_loss.5} parent=5 // pred_check_branch
        %177 = sbr.rel (%p175) target = $region28
      $region27: #{generator_loss.5} parent=5 // pred_region
        // Predicated region
        $region29: #{generator_loss.5} parent=27 // pred_check
          %p178 = pneg %p55
        $region30: #{generator_loss.5} parent=27 // pred_check_branch
          %180 = sbr.rel (%p178) target = $region32
        $region31: #{generator_loss.5} parent=27 // pred_region
          %p181 = scmp.lt.s32.totalorder %s14, 5
          %s182 = scalar_select %p181, %s14, 5
          %s183 = smul.addr %s182, 2
          %s184 = smul.addr %s183, 8
          %s185 = scalar_lea.vmem %s1, %s184
        $region32: #{generator_loss.5} parent=27 // pred_fallthru
          _
        // Predicated region
        $region33: #{generator_loss.5} parent=27 // pred_check
          %p186 = pneg %p81
        $region34: #{generator_loss.5} parent=27 // pred_check_branch
          %188 = sbr.rel (%p186) target = $region36
        $region35: #{generator_loss.5} parent=27 // pred_region
          %p189 = scmp.lt.s32.totalorder %s14, 5
          %s190 = scalar_select %p189, %s14, 5
          %s191 = smul.addr %s190, 2
          %s192 = smul.addr %s191, 8
          %s193 = scalar_lea.vmem %s2, %s192
        $region36: #{generator_loss.5} parent=27 // pred_fallthru
          _
      $region28: #{generator_loss.5} parent=5 // pred_fallthru
        _
      %p194 = scmp.le.s32.totalorder 1, %s14
      %p195 = scmp.lt.s32.totalorder %s14, 7
      %p196 = pnand %p194, %p195
      %p197 = pneg %p196
      // Predicated region
      $region37: #{generator_loss.5} parent=5 // pred_check
        _
      $region38: #{generator_loss.5} parent=5 // pred_check_branch
        %199 = sbr.rel (%p196) target = $region40
      $region39: #{generator_loss.5} parent=5 // pred_region
        %s200 = ssub.s32 %s14, 1
        %p201 = pneg %p35
        %p202 = pneg %p32
        %p203 = scmp.lt.s32.totalorder %s19, 5
        %s204 = scalar_select %p203, %s19, 5
        %s205 = smul.addr %s204, 2
        %s206 = smul.addr %s205, 8
        %s207 = scalar_lea.vmem %s1, %s206
        %p208 = pneg %p61
        %p209 = pneg %p58
        %p210 = scmp.lt.s32.totalorder %s19, 5
        %s211 = scalar_select %p210, %s19, 5
        %s212 = smul.addr %s211, 2
        %s213 = smul.addr %s212, 8
        %s214 = scalar_lea.vmem %s2, %s213
        %p215 = pneg %p87
        %p216 = pneg %p84
        %p217 = pneg %p108
        %p218 = pneg %p105
        %p219 = pneg %p129
        %p220 = pneg %p126
        %p221 = pneg %p150
        %p222 = pneg %p147
        %p223 = scmp.lt.s32.totalorder %s19, 5
        %s224 = scalar_select %p223, %s19, 5
        %s225 = smul.addr %s224, 2
        %s226 = smul.addr %s225, 8
        %s227 = scalar_lea.vmem %s1, %s226
        %p228 = scmp.lt.s32.totalorder %s19, 5
        %s229 = scalar_select %p228, %s19, 5
        %s230 = smul.addr %s229, 2
        %s231 = smul.addr %s230, 8
        %s232 = scalar_lea.vmem %s2, %s231
        %p233 = scmp.eq.s32.totalorder %s19, 0
        // Predicated region
        $region41: #{generator_loss.5} parent=39 // pred_check
          %p234 = pneg %p233
        $region42: #{generator_loss.5} parent=39 // pred_check_branch
          %236 = sbr.rel (%p234) target = $region44
        $region43: #{generator_loss.5} parent=39 // pred_region
          %s237 = scalar_lea.smem [#allocation2], 0
          %238 = sst [smem:[%s237]] 0.0
        $region44: #{generator_loss.5} parent=39 // pred_fallthru
          _
        %v239 = vld [vmem:[#allocation3] sm:$0x1]
        %s240 = vtos %v239
        %s241 = smul.f32 %s240, 0.01
        %s242 = smul.f32 %s241, %s241
        %s243 = smul.f32 %s240, 0.03
        %s244 = smul.f32 %s243, %s243
        %v245 = vld [vmem:[%s227] sm:$0xff]
        %v246 = vld [vmem:[%s227 + $0x8] sm:$0xff]
        %v247 = vld [vmem:[%s232] sm:$0xff]
        %v248 = vld [vmem:[%s232 + $0x8] sm:$0xff]
        %v249 = vld [vmem:[%s3] sm:$0x3f]
        %v250 = vld [vmem:[%s4] sm:$0xff]
        %v251 = vld [vmem:[%s4 + $0x8] sm:$0xff]
        %vm252 = vcmask 130048
        %v254 = vsel %vm252, %v249, 0
        %256 = vmatprep.subr.mxu0 0.0
        %257 = vmatpush1.msra.mxu0 0.0
        %258 = vmatprep.subr.mxu0 0.0
        %259 = vmatpush1.msra.mxu0 0.0
        %260 = vmatprep.subr.mxu0 0.0
        %261 = vmatpush1.msra.mxu0 0.0
        %262 = vmatprep.subr.mxu0 0.0
        %263 = vmatpush1.msra.mxu0 0.0
        %264 = vmatprep.subr.mxu0 0.0
        %265 = vmatpush1.msra.mxu0 0.0
        %266 = vmatprep.subr.mxu0 0.0
        %267 = vmatpush1.msra.mxu0 0.0
        %268 = vmatprep.subr.mxu0 0.0
        %269 = vmatpush1.msra.mxu0 0.0
        %270 = vmatprep.subr.mxu0 0.0
        %271 = vmatpush1.msra.mxu0 0.0
        %272 = vmatprep.subr.mxu0 0.0
        %273 = vmatpush1.msra.mxu0 0.0
        %274 = vmatprep.subr.mxu0 0.0
        %275 = vmatpush1.msra.mxu0 0.0
        %276 = vmatprep.subr.mxu0 0.0
        %277 = vmatpush1.msra.mxu0 0.0
        %278 = vmatprep.subr.mxu0 0.0
        %279 = vmatpush1.msra.mxu0 0.0
        %280 = vmatprep.subr.mxu0 0.0
        %281 = vmatpush1.msra.mxu0 0.0
        %282 = vmatprep.subr.mxu0 0.0
        %283 = vmatpush1.msra.mxu0 0.0
        %284 = vmatprep.subr.mxu0 0.0
        %285 = vmatpush1.msra.mxu0 %v246
        %286 = vmatprep.subr.mxu0 0.0
        %287 = vmatpush1.msra.mxu0 %v245
        %288 = vmatprep.subr.mxu0 0.0
        %289 = vmatpush2.msra.mxu0 0.0
        %290 = vmatprep.subr.mxu0 0.0
        %291 = vmatpush2.msra.mxu0 0.0
        %292 = vmatprep.subr.mxu0 0.0
        %293 = vmatpush2.msra.mxu0 0.0
        %294 = vmatprep.subr.mxu0 0.0
        %295 = vmatpush2.msra.mxu0 0.0
        %296 = vmatprep.subr.mxu0 0.0
        %297 = vmatpush2.msra.mxu0 0.0
        %298 = vmatprep.subr.mxu0 0.0
        %299 = vmatpush2.msra.mxu0 0.0
        %300 = vmatprep.subr.mxu0 0.0
        %301 = vmatpush2.msra.mxu0 0.0
        %302 = vmatprep.subr.mxu0 0.0
        %303 = vmatpush2.msra.mxu0 0.0
        %304 = vmatprep.subr.mxu0 0.0
        %305 = vmatpush2.msra.mxu0 0.0
        %306 = vmatprep.subr.mxu0 0.0
        %307 = vmatpush2.msra.mxu0 0.0
        %308 = vmatprep.subr.mxu0 0.0
        %309 = vmatpush2.msra.mxu0 0.0
        %310 = vmatprep.subr.mxu0 0.0
        %311 = vmatpush2.msra.mxu0 0.0
        %312 = vmatprep.subr.mxu0 0.0
        %313 = vmatpush2.msra.mxu0 0.0
        %314 = vmatprep.subr.mxu0 0.0
        %315 = vmatpush2.msra.mxu0 0.0
        %316 = vmatprep.subr.mxu0 0.0
        %317 = vmatpush2.msra.mxu0 0.0
        %318 = vmatprep.subr.mxu0 0.0
        %319 = vmatpush2.msra.mxu0 0.0
        %320 = vmatprep.mubr.f32.mxu0 0.0
        %321 = vmatmul.mubr.f32.gmra.mxu0 %v254
        %v322 = vpop.f32.mrf.mxu0
        %v323 = vadd.f32 0.0, %v322
        %v324 = vpop.f32.mrf.mxu0
        %325 = vdwg.mxu0
        %v327 = vsel %vm252, %v323, 0
        %329 = vmatprep.subr.mxu0 0.0
        %330 = vmatpush1.msra.mxu0 0.0
        %331 = vmatprep.subr.mxu0 0.0
        %332 = vmatpush1.msra.mxu0 0.0
        %333 = vmatprep.subr.mxu0 0.0
        %334 = vmatpush1.msra.mxu0 0.0
        %335 = vmatprep.subr.mxu0 0.0
        %336 = vmatpush1.msra.mxu0 0.0
        %337 = vmatprep.subr.mxu0 0.0
        %338 = vmatpush1.msra.mxu0 0.0
        %339 = vmatprep.subr.mxu0 0.0
        %340 = vmatpush1.msra.mxu0 0.0
        %341 = vmatprep.subr.mxu0 0.0
        %342 = vmatpush1.msra.mxu0 0.0
        %343 = vmatprep.subr.mxu0 0.0
        %344 = vmatpush1.msra.mxu0 0.0
        %345 = vmatprep.subr.mxu0 0.0
        %346 = vmatpush1.msra.mxu0 0.0
        %347 = vmatprep.subr.mxu0 0.0
        %348 = vmatpush1.msra.mxu0 0.0
        %349 = vmatprep.subr.mxu0 0.0
        %350 = vmatpush1.msra.mxu0 0.0
        %351 = vmatprep.subr.mxu0 0.0
        %352 = vmatpush1.msra.mxu0 0.0
        %353 = vmatprep.subr.mxu0 0.0
        %354 = vmatpush1.msra.mxu0 0.0
        %355 = vmatprep.subr.mxu0 0.0
        %356 = vmatpush1.msra.mxu0 0.0
        %357 = vmatprep.subr.mxu0 0.0
        %358 = vmatpush1.msra.mxu0 %v251
        %359 = vmatprep.subr.mxu0 0.0
        %360 = vmatpush1.msra.mxu0 %v250
        %361 = vmatprep.subr.mxu0 0.0
        %362 = vmatpush2.msra.mxu0 0.0
        %363 = vmatprep.subr.mxu0 0.0
        %364 = vmatpush2.msra.mxu0 0.0
        %365 = vmatprep.subr.mxu0 0.0
        %366 = vmatpush2.msra.mxu0 0.0
        %367 = vmatprep.subr.mxu0 0.0
        %368 = vmatpush2.msra.mxu0 0.0
        %369 = vmatprep.subr.mxu0 0.0
        %370 = vmatpush2.msra.mxu0 0.0
        %371 = vmatprep.subr.mxu0 0.0
        %372 = vmatpush2.msra.mxu0 0.0
        %373 = vmatprep.subr.mxu0 0.0
        %374 = vmatpush2.msra.mxu0 0.0
        %375 = vmatprep.subr.mxu0 0.0
        %376 = vmatpush2.msra.mxu0 0.0
        %377 = vmatprep.subr.mxu0 0.0
        %378 = vmatpush2.msra.mxu0 0.0
        %379 = vmatprep.subr.mxu0 0.0
        %380 = vmatpush2.msra.mxu0 0.0
        %381 = vmatprep.subr.mxu0 0.0
        %382 = vmatpush2.msra.mxu0 0.0
        %383 = vmatprep.subr.mxu0 0.0
        %384 = vmatpush2.msra.mxu0 0.0
        %385 = vmatprep.subr.mxu0 0.0
        %386 = vmatpush2.msra.mxu0 0.0
        %387 = vmatprep.subr.mxu0 0.0
        %388 = vmatpush2.msra.mxu0 0.0
        %389 = vmatprep.subr.mxu0 0.0
        %390 = vmatpush2.msra.mxu0 0.0
        %391 = vmatprep.subr.mxu0 0.0
        %392 = vmatpush2.msra.mxu0 0.0
        %393 = vmatprep.mubr.f32.mxu0 0.0
        %394 = vmatmul.mubr.f32.gmra.mxu0 %v327
        %v395 = vpop.f32.mrf.mxu0
        %v396 = vadd.f32 0.0, %v395
        %v397 = vpop.f32.mrf.mxu0
        %398 = vdwg.mxu0
        %399 = vmatprep.subr.mxu0 0.0
        %400 = vmatpush1.msra.mxu0 0.0
        %401 = vmatprep.subr.mxu0 0.0
        %402 = vmatpush1.msra.mxu0 0.0
        %403 = vmatprep.subr.mxu0 0.0
        %404 = vmatpush1.msra.mxu0 0.0
        %405 = vmatprep.subr.mxu0 0.0
        %406 = vmatpush1.msra.mxu0 0.0
        %407 = vmatprep.subr.mxu0 0.0
        %408 = vmatpush1.msra.mxu0 0.0
        %409 = vmatprep.subr.mxu0 0.0
        %410 = vmatpush1.msra.mxu0 0.0
        %411 = vmatprep.subr.mxu0 0.0
        %412 = vmatpush1.msra.mxu0 0.0
        %413 = vmatprep.subr.mxu0 0.0
        %414 = vmatpush1.msra.mxu0 0.0
        %415 = vmatprep.subr.mxu0 0.0
        %416 = vmatpush1.msra.mxu0 0.0
        %417 = vmatprep.subr.mxu0 0.0
        %418 = vmatpush1.msra.mxu0 0.0
        %419 = vmatprep.subr.mxu0 0.0
        %420 = vmatpush1.msra.mxu0 0.0
        %421 = vmatprep.subr.mxu0 0.0
        %422 = vmatpush1.msra.mxu0 0.0
        %423 = vmatprep.subr.mxu0 0.0
        %424 = vmatpush1.msra.mxu0 0.0
        %425 = vmatprep.subr.mxu0 0.0
        %426 = vmatpush1.msra.mxu0 0.0
        %427 = vmatprep.subr.mxu0 0.0
        %428 = vmatpush1.msra.mxu0 %v248
        %429 = vmatprep.subr.mxu0 0.0
        %430 = vmatpush1.msra.mxu0 %v247
        %431 = vmatprep.subr.mxu0 0.0
        %432 = vmatpush2.msra.mxu0 0.0
        %433 = vmatprep.subr.mxu0 0.0
        %434 = vmatpush2.msra.mxu0 0.0
        %435 = vmatprep.subr.mxu0 0.0
        %436 = vmatpush2.msra.mxu0 0.0
        %437 = vmatprep.subr.mxu0 0.0
        %438 = vmatpush2.msra.mxu0 0.0
        %439 = vmatprep.subr.mxu0 0.0
        %440 = vmatpush2.msra.mxu0 0.0
        %441 = vmatprep.subr.mxu0 0.0
        %442 = vmatpush2.msra.mxu0 0.0
        %443 = vmatprep.subr.mxu0 0.0
        %444 = vmatpush2.msra.mxu0 0.0
        %445 = vmatprep.subr.mxu0 0.0
        %446 = vmatpush2.msra.mxu0 0.0
        %447 = vmatprep.subr.mxu0 0.0
        %448 = vmatpush2.msra.mxu0 0.0
        %449 = vmatprep.subr.mxu0 0.0
        %450 = vmatpush2.msra.mxu0 0.0
        %451 = vmatprep.subr.mxu0 0.0
        %452 = vmatpush2.msra.mxu0 0.0
        %453 = vmatprep.subr.mxu0 0.0
        %454 = vmatpush2.msra.mxu0 0.0
        %455 = vmatprep.subr.mxu0 0.0
        %456 = vmatpush2.msra.mxu0 0.0
        %457 = vmatprep.subr.mxu0 0.0
        %458 = vmatpush2.msra.mxu0 0.0
        %459 = vmatprep.subr.mxu0 0.0
        %460 = vmatpush2.msra.mxu0 0.0
        %461 = vmatprep.subr.mxu0 0.0
        %462 = vmatpush2.msra.mxu0 0.0
        %463 = vmatprep.mubr.f32.mxu0 0.0
        %464 = vmatmul.mubr.f32.gmra.mxu0 %v254
        %v465 = vpop.f32.mrf.mxu0
        %v466 = vadd.f32 0.0, %v465
        %v467 = vpop.f32.mrf.mxu0
        %468 = vdwg.mxu0
        %v470 = vsel %vm252, %v466, 0
        %472 = vmatprep.subr.mxu0 0.0
        %473 = vmatpush1.msra.mxu0 0.0
        %474 = vmatprep.subr.mxu0 0.0
        %475 = vmatpush1.msra.mxu0 0.0
        %476 = vmatprep.subr.mxu0 0.0
        %477 = vmatpush1.msra.mxu0 0.0
        %478 = vmatprep.subr.mxu0 0.0
        %479 = vmatpush1.msra.mxu0 0.0
        %480 = vmatprep.subr.mxu0 0.0
        %481 = vmatpush1.msra.mxu0 0.0
        %482 = vmatprep.subr.mxu0 0.0
        %483 = vmatpush1.msra.mxu0 0.0
        %484 = vmatprep.subr.mxu0 0.0
        %485 = vmatpush1.msra.mxu0 0.0
        %486 = vmatprep.subr.mxu0 0.0
        %487 = vmatpush1.msra.mxu0 0.0
        %488 = vmatprep.subr.mxu0 0.0
        %489 = vmatpush1.msra.mxu0 0.0
        %490 = vmatprep.subr.mxu0 0.0
        %491 = vmatpush1.msra.mxu0 0.0
        %492 = vmatprep.subr.mxu0 0.0
        %493 = vmatpush1.msra.mxu0 0.0
        %494 = vmatprep.subr.mxu0 0.0
        %495 = vmatpush1.msra.mxu0 0.0
        %496 = vmatprep.subr.mxu0 0.0
        %497 = vmatpush1.msra.mxu0 0.0
        %498 = vmatprep.subr.mxu0 0.0
        %499 = vmatpush1.msra.mxu0 0.0
        %500 = vmatprep.subr.mxu0 0.0
        %501 = vmatpush1.msra.mxu0 %v251
        %502 = vmatprep.subr.mxu0 0.0
        %503 = vmatpush1.msra.mxu0 %v250
        %504 = vmatprep.subr.mxu0 0.0
        %505 = vmatpush2.msra.mxu0 0.0
        %506 = vmatprep.subr.mxu0 0.0
        %507 = vmatpush2.msra.mxu0 0.0
        %508 = vmatprep.subr.mxu0 0.0
        %509 = vmatpush2.msra.mxu0 0.0
        %510 = vmatprep.subr.mxu0 0.0
        %511 = vmatpush2.msra.mxu0 0.0
        %512 = vmatprep.subr.mxu0 0.0
        %513 = vmatpush2.msra.mxu0 0.0
        %514 = vmatprep.subr.mxu0 0.0
        %515 = vmatpush2.msra.mxu0 0.0
        %516 = vmatprep.subr.mxu0 0.0
        %517 = vmatpush2.msra.mxu0 0.0
        %518 = vmatprep.subr.mxu0 0.0
        %519 = vmatpush2.msra.mxu0 0.0
        %520 = vmatprep.subr.mxu0 0.0
        %521 = vmatpush2.msra.mxu0 0.0
        %522 = vmatprep.subr.mxu0 0.0
        %523 = vmatpush2.msra.mxu0 0.0
        %524 = vmatprep.subr.mxu0 0.0
        %525 = vmatpush2.msra.mxu0 0.0
        %526 = vmatprep.subr.mxu0 0.0
        %527 = vmatpush2.msra.mxu0 0.0
        %528 = vmatprep.subr.mxu0 0.0
        %529 = vmatpush2.msra.mxu0 0.0
        %530 = vmatprep.subr.mxu0 0.0
        %531 = vmatpush2.msra.mxu0 0.0
        %532 = vmatprep.subr.mxu0 0.0
        %533 = vmatpush2.msra.mxu0 0.0
        %534 = vmatprep.subr.mxu0 0.0
        %535 = vmatpush2.msra.mxu0 0.0
        %536 = vmatprep.mubr.f32.mxu0 0.0
        %537 = vmatmul.mubr.f32.gmra.mxu0 %v470
        %v538 = vpop.f32.mrf.mxu0
        %v539 = vadd.f32 0.0, %v538
        %v540 = vpop.f32.mrf.mxu0
        %541 = vdwg.mxu0
        %v542 = vmul.f32 %v396, %v396
        %v543 = vmul.f32 %v539, %v539
        %v544 = vmul.f32 %v396, %v539
        %v545 = vmul.f32 %v245, %v245
        %v546 = vmul.f32 %v246, %v246
        %547 = vmatprep.subr.mxu0 0.0
        %548 = vmatpush1.msra.mxu0 0.0
        %549 = vmatprep.subr.mxu0 0.0
        %550 = vmatpush1.msra.mxu0 0.0
        %551 = vmatprep.subr.mxu0 0.0
        %552 = vmatpush1.msra.mxu0 0.0
        %553 = vmatprep.subr.mxu0 0.0
        %554 = vmatpush1.msra.mxu0 0.0
        %555 = vmatprep.subr.mxu0 0.0
        %556 = vmatpush1.msra.mxu0 0.0
        %557 = vmatprep.subr.mxu0 0.0
        %558 = vmatpush1.msra.mxu0 0.0
        %559 = vmatprep.subr.mxu0 0.0
        %560 = vmatpush1.msra.mxu0 0.0
        %561 = vmatprep.subr.mxu0 0.0
        %562 = vmatpush1.msra.mxu0 0.0
        %563 = vmatprep.subr.mxu0 0.0
        %564 = vmatpush1.msra.mxu0 0.0
        %565 = vmatprep.subr.mxu0 0.0
        %566 = vmatpush1.msra.mxu0 0.0
        %567 = vmatprep.subr.mxu0 0.0
        %568 = vmatpush1.msra.mxu0 0.0
        %569 = vmatprep.subr.mxu0 0.0
        %570 = vmatpush1.msra.mxu0 0.0
        %571 = vmatprep.subr.mxu0 0.0
        %572 = vmatpush1.msra.mxu0 0.0
        %573 = vmatprep.subr.mxu0 0.0
        %574 = vmatpush1.msra.mxu0 0.0
        %575 = vmatprep.subr.mxu0 0.0
        %576 = vmatpush1.msra.mxu0 %v546
        %577 = vmatprep.subr.mxu0 0.0
        %578 = vmatpush1.msra.mxu0 %v545
        %579 = vmatprep.subr.mxu0 0.0
        %580 = vmatpush2.msra.mxu0 0.0
        %581 = vmatprep.subr.mxu0 0.0
        %582 = vmatpush2.msra.mxu0 0.0
        %583 = vmatprep.subr.mxu0 0.0
        %584 = vmatpush2.msra.mxu0 0.0
        %585 = vmatprep.subr.mxu0 0.0
        %586 = vmatpush2.msra.mxu0 0.0
        %587 = vmatprep.subr.mxu0 0.0
        %588 = vmatpush2.msra.mxu0 0.0
        %589 = vmatprep.subr.mxu0 0.0
        %590 = vmatpush2.msra.mxu0 0.0
        %591 = vmatprep.subr.mxu0 0.0
        %592 = vmatpush2.msra.mxu0 0.0
        %593 = vmatprep.subr.mxu0 0.0
        %594 = vmatpush2.msra.mxu0 0.0
        %595 = vmatprep.subr.mxu0 0.0
        %596 = vmatpush2.msra.mxu0 0.0
        %597 = vmatprep.subr.mxu0 0.0
        %598 = vmatpush2.msra.mxu0 0.0
        %599 = vmatprep.subr.mxu0 0.0
        %600 = vmatpush2.msra.mxu0 0.0
        %601 = vmatprep.subr.mxu0 0.0
        %602 = vmatpush2.msra.mxu0 0.0
        %603 = vmatprep.subr.mxu0 0.0
        %604 = vmatpush2.msra.mxu0 0.0
        %605 = vmatprep.subr.mxu0 0.0
        %606 = vmatpush2.msra.mxu0 0.0
        %607 = vmatprep.subr.mxu0 0.0
        %608 = vmatpush2.msra.mxu0 0.0
        %609 = vmatprep.subr.mxu0 0.0
        %610 = vmatpush2.msra.mxu0 0.0
        %611 = vmatprep.mubr.f32.mxu0 0.0
        %612 = vmatmul.mubr.f32.gmra.mxu0 %v254
        %v613 = vpop.f32.mrf.mxu0
        %v614 = vadd.f32 0.0, %v613
        %v615 = vpop.f32.mrf.mxu0
        %616 = vdwg.mxu0
        %v618 = vsel %vm252, %v614, 0
        %620 = vmatprep.subr.mxu0 0.0
        %621 = vmatpush1.msra.mxu0 0.0
        %622 = vmatprep.subr.mxu0 0.0
        %623 = vmatpush1.msra.mxu0 0.0
        %624 = vmatprep.subr.mxu0 0.0
        %625 = vmatpush1.msra.mxu0 0.0
        %626 = vmatprep.subr.mxu0 0.0
        %627 = vmatpush1.msra.mxu0 0.0
        %628 = vmatprep.subr.mxu0 0.0
        %629 = vmatpush1.msra.mxu0 0.0
        %630 = vmatprep.subr.mxu0 0.0
        %631 = vmatpush1.msra.mxu0 0.0
        %632 = vmatprep.subr.mxu0 0.0
        %633 = vmatpush1.msra.mxu0 0.0
        %634 = vmatprep.subr.mxu0 0.0
        %635 = vmatpush1.msra.mxu0 0.0
        %636 = vmatprep.subr.mxu0 0.0
        %637 = vmatpush1.msra.mxu0 0.0
        %638 = vmatprep.subr.mxu0 0.0
        %639 = vmatpush1.msra.mxu0 0.0
        %640 = vmatprep.subr.mxu0 0.0
        %641 = vmatpush1.msra.mxu0 0.0
        %642 = vmatprep.subr.mxu0 0.0
        %643 = vmatpush1.msra.mxu0 0.0
        %644 = vmatprep.subr.mxu0 0.0
        %645 = vmatpush1.msra.mxu0 0.0
        %646 = vmatprep.subr.mxu0 0.0
        %647 = vmatpush1.msra.mxu0 0.0
        %648 = vmatprep.subr.mxu0 0.0
        %649 = vmatpush1.msra.mxu0 %v251
        %650 = vmatprep.subr.mxu0 0.0
        %651 = vmatpush1.msra.mxu0 %v250
        %652 = vmatprep.subr.mxu0 0.0
        %653 = vmatpush2.msra.mxu0 0.0
        %654 = vmatprep.subr.mxu0 0.0
        %655 = vmatpush2.msra.mxu0 0.0
        %656 = vmatprep.subr.mxu0 0.0
        %657 = vmatpush2.msra.mxu0 0.0
        %658 = vmatprep.subr.mxu0 0.0
        %659 = vmatpush2.msra.mxu0 0.0
        %660 = vmatprep.subr.mxu0 0.0
        %661 = vmatpush2.msra.mxu0 0.0
        %662 = vmatprep.subr.mxu0 0.0
        %663 = vmatpush2.msra.mxu0 0.0
        %664 = vmatprep.subr.mxu0 0.0
        %665 = vmatpush2.msra.mxu0 0.0
        %666 = vmatprep.subr.mxu0 0.0
        %667 = vmatpush2.msra.mxu0 0.0
        %668 = vmatprep.subr.mxu0 0.0
        %669 = vmatpush2.msra.mxu0 0.0
        %670 = vmatprep.subr.mxu0 0.0
        %671 = vmatpush2.msra.mxu0 0.0
        %672 = vmatprep.subr.mxu0 0.0
        %673 = vmatpush2.msra.mxu0 0.0
        %674 = vmatprep.subr.mxu0 0.0
        %675 = vmatpush2.msra.mxu0 0.0
        %676 = vmatprep.subr.mxu0 0.0
        %677 = vmatpush2.msra.mxu0 0.0
        %678 = vmatprep.subr.mxu0 0.0
        %679 = vmatpush2.msra.mxu0 0.0
        %680 = vmatprep.subr.mxu0 0.0
        %681 = vmatpush2.msra.mxu0 0.0
        %682 = vmatprep.subr.mxu0 0.0
        %683 = vmatpush2.msra.mxu0 0.0
        %684 = vmatprep.mubr.f32.mxu0 0.0
        %685 = vmatmul.mubr.f32.gmra.mxu0 %v618
        %v686 = vpop.f32.mrf.mxu0
        %v687 = vadd.f32 0.0, %v686
        %v688 = vpop.f32.mrf.mxu0
        %689 = vdwg.mxu0
        %v690 = vsub.f32 %v687, %v542
        %v691 = vmul.f32 %v247, %v247
        %v692 = vmul.f32 %v248, %v248
        %693 = vmatprep.subr.mxu0 0.0
        %694 = vmatpush1.msra.mxu0 0.0
        %695 = vmatprep.subr.mxu0 0.0
        %696 = vmatpush1.msra.mxu0 0.0
        %697 = vmatprep.subr.mxu0 0.0
        %698 = vmatpush1.msra.mxu0 0.0
        %699 = vmatprep.subr.mxu0 0.0
        %700 = vmatpush1.msra.mxu0 0.0
        %701 = vmatprep.subr.mxu0 0.0
        %702 = vmatpush1.msra.mxu0 0.0
        %703 = vmatprep.subr.mxu0 0.0
        %704 = vmatpush1.msra.mxu0 0.0
        %705 = vmatprep.subr.mxu0 0.0
        %706 = vmatpush1.msra.mxu0 0.0
        %707 = vmatprep.subr.mxu0 0.0
        %708 = vmatpush1.msra.mxu0 0.0
        %709 = vmatprep.subr.mxu0 0.0
        %710 = vmatpush1.msra.mxu0 0.0
        %711 = vmatprep.subr.mxu0 0.0
        %712 = vmatpush1.msra.mxu0 0.0
        %713 = vmatprep.subr.mxu0 0.0
        %714 = vmatpush1.msra.mxu0 0.0
        %715 = vmatprep.subr.mxu0 0.0
        %716 = vmatpush1.msra.mxu0 0.0
        %717 = vmatprep.subr.mxu0 0.0
        %718 = vmatpush1.msra.mxu0 0.0
        %719 = vmatprep.subr.mxu0 0.0
        %720 = vmatpush1.msra.mxu0 0.0
        %721 = vmatprep.subr.mxu0 0.0
        %722 = vmatpush1.msra.mxu0 %v692
        %723 = vmatprep.subr.mxu0 0.0
        %724 = vmatpush1.msra.mxu0 %v691
        %725 = vmatprep.subr.mxu0 0.0
        %726 = vmatpush2.msra.mxu0 0.0
        %727 = vmatprep.subr.mxu0 0.0
        %728 = vmatpush2.msra.mxu0 0.0
        %729 = vmatprep.subr.mxu0 0.0
        %730 = vmatpush2.msra.mxu0 0.0
        %731 = vmatprep.subr.mxu0 0.0
        %732 = vmatpush2.msra.mxu0 0.0
        %733 = vmatprep.subr.mxu0 0.0
        %734 = vmatpush2.msra.mxu0 0.0
        %735 = vmatprep.subr.mxu0 0.0
        %736 = vmatpush2.msra.mxu0 0.0
        %737 = vmatprep.subr.mxu0 0.0
        %738 = vmatpush2.msra.mxu0 0.0
        %739 = vmatprep.subr.mxu0 0.0
        %740 = vmatpush2.msra.mxu0 0.0
        %741 = vmatprep.subr.mxu0 0.0
        %742 = vmatpush2.msra.mxu0 0.0
        %743 = vmatprep.subr.mxu0 0.0
        %744 = vmatpush2.msra.mxu0 0.0
        %745 = vmatprep.subr.mxu0 0.0
        %746 = vmatpush2.msra.mxu0 0.0
        %747 = vmatprep.subr.mxu0 0.0
        %748 = vmatpush2.msra.mxu0 0.0
        %749 = vmatprep.subr.mxu0 0.0
        %750 = vmatpush2.msra.mxu0 0.0
        %751 = vmatprep.subr.mxu0 0.0
        %752 = vmatpush2.msra.mxu0 0.0
        %753 = vmatprep.subr.mxu0 0.0
        %754 = vmatpush2.msra.mxu0 0.0
        %755 = vmatprep.subr.mxu0 0.0
        %756 = vmatpush2.msra.mxu0 0.0
        %757 = vmatprep.mubr.f32.mxu0 0.0
        %758 = vmatmul.mubr.f32.gmra.mxu0 %v254
        %v759 = vpop.f32.mrf.mxu0
        %v760 = vadd.f32 0.0, %v759
        %v761 = vpop.f32.mrf.mxu0
        %762 = vdwg.mxu0
        %v764 = vsel %vm252, %v760, 0
        %766 = vmatprep.subr.mxu0 0.0
        %767 = vmatpush1.msra.mxu0 0.0
        %768 = vmatprep.subr.mxu0 0.0
        %769 = vmatpush1.msra.mxu0 0.0
        %770 = vmatprep.subr.mxu0 0.0
        %771 = vmatpush1.msra.mxu0 0.0
        %772 = vmatprep.subr.mxu0 0.0
        %773 = vmatpush1.msra.mxu0 0.0
        %774 = vmatprep.subr.mxu0 0.0
        %775 = vmatpush1.msra.mxu0 0.0
        %776 = vmatprep.subr.mxu0 0.0
        %777 = vmatpush1.msra.mxu0 0.0
        %778 = vmatprep.subr.mxu0 0.0
        %779 = vmatpush1.msra.mxu0 0.0
        %780 = vmatprep.subr.mxu0 0.0
        %781 = vmatpush1.msra.mxu0 0.0
        %782 = vmatprep.subr.mxu0 0.0
        %783 = vmatpush1.msra.mxu0 0.0
        %784 = vmatprep.subr.mxu0 0.0
        %785 = vmatpush1.msra.mxu0 0.0
        %786 = vmatprep.subr.mxu0 0.0
        %787 = vmatpush1.msra.mxu0 0.0
        %788 = vmatprep.subr.mxu0 0.0
        %789 = vmatpush1.msra.mxu0 0.0
        %790 = vmatprep.subr.mxu0 0.0
        %791 = vmatpush1.msra.mxu0 0.0
        %792 = vmatprep.subr.mxu0 0.0
        %793 = vmatpush1.msra.mxu0 0.0
        %794 = vmatprep.subr.mxu0 0.0
        %795 = vmatpush1.msra.mxu0 %v251
        %796 = vmatprep.subr.mxu0 0.0
        %797 = vmatpush1.msra.mxu0 %v250
        %798 = vmatprep.subr.mxu0 0.0
        %799 = vmatpush2.msra.mxu0 0.0
        %800 = vmatprep.subr.mxu0 0.0
        %801 = vmatpush2.msra.mxu0 0.0
        %802 = vmatprep.subr.mxu0 0.0
        %803 = vmatpush2.msra.mxu0 0.0
        %804 = vmatprep.subr.mxu0 0.0
        %805 = vmatpush2.msra.mxu0 0.0
        %806 = vmatprep.subr.mxu0 0.0
        %807 = vmatpush2.msra.mxu0 0.0
        %808 = vmatprep.subr.mxu0 0.0
        %809 = vmatpush2.msra.mxu0 0.0
        %810 = vmatprep.subr.mxu0 0.0
        %811 = vmatpush2.msra.mxu0 0.0
        %812 = vmatprep.subr.mxu0 0.0
        %813 = vmatpush2.msra.mxu0 0.0
        %814 = vmatprep.subr.mxu0 0.0
        %815 = vmatpush2.msra.mxu0 0.0
        %816 = vmatprep.subr.mxu0 0.0
        %817 = vmatpush2.msra.mxu0 0.0
        %818 = vmatprep.subr.mxu0 0.0
        %819 = vmatpush2.msra.mxu0 0.0
        %820 = vmatprep.subr.mxu0 0.0
        %821 = vmatpush2.msra.mxu0 0.0
        %822 = vmatprep.subr.mxu0 0.0
        %823 = vmatpush2.msra.mxu0 0.0
        %824 = vmatprep.subr.mxu0 0.0
        %825 = vmatpush2.msra.mxu0 0.0
        %826 = vmatprep.subr.mxu0 0.0
        %827 = vmatpush2.msra.mxu0 0.0
        %828 = vmatprep.subr.mxu0 0.0
        %829 = vmatpush2.msra.mxu0 0.0
        %830 = vmatprep.mubr.f32.mxu0 0.0
        %831 = vmatmul.mubr.f32.gmra.mxu0 %v764
        %v832 = vpop.f32.mrf.mxu0
        %v833 = vadd.f32 0.0, %v832
        %v834 = vpop.f32.mrf.mxu0
        %835 = vdwg.mxu0
        %v836 = vsub.f32 %v833, %v543
        %v837 = vmul.f32 %v245, %v247
        %v838 = vmul.f32 %v246, %v248
        %839 = vmatprep.subr.mxu0 0.0
        %840 = vmatpush1.msra.mxu0 0.0
        %841 = vmatprep.subr.mxu0 0.0
        %842 = vmatpush1.msra.mxu0 0.0
        %843 = vmatprep.subr.mxu0 0.0
        %844 = vmatpush1.msra.mxu0 0.0
        %845 = vmatprep.subr.mxu0 0.0
        %846 = vmatpush1.msra.mxu0 0.0
        %847 = vmatprep.subr.mxu0 0.0
        %848 = vmatpush1.msra.mxu0 0.0
        %849 = vmatprep.subr.mxu0 0.0
        %850 = vmatpush1.msra.mxu0 0.0
        %851 = vmatprep.subr.mxu0 0.0
        %852 = vmatpush1.msra.mxu0 0.0
        %853 = vmatprep.subr.mxu0 0.0
        %854 = vmatpush1.msra.mxu0 0.0
        %855 = vmatprep.subr.mxu0 0.0
        %856 = vmatpush1.msra.mxu0 0.0
        %857 = vmatprep.subr.mxu0 0.0
        %858 = vmatpush1.msra.mxu0 0.0
        %859 = vmatprep.subr.mxu0 0.0
        %860 = vmatpush1.msra.mxu0 0.0
        %861 = vmatprep.subr.mxu0 0.0
        %862 = vmatpush1.msra.mxu0 0.0
        %863 = vmatprep.subr.mxu0 0.0
        %864 = vmatpush1.msra.mxu0 0.0
        %865 = vmatprep.subr.mxu0 0.0
        %866 = vmatpush1.msra.mxu0 0.0
        %867 = vmatprep.subr.mxu0 0.0
        %868 = vmatpush1.msra.mxu0 %v838
        %869 = vmatprep.subr.mxu0 0.0
        %870 = vmatpush1.msra.mxu0 %v837
        %871 = vmatprep.subr.mxu0 0.0
        %872 = vmatpush2.msra.mxu0 0.0
        %873 = vmatprep.subr.mxu0 0.0
        %874 = vmatpush2.msra.mxu0 0.0
        %875 = vmatprep.subr.mxu0 0.0
        %876 = vmatpush2.msra.mxu0 0.0
        %877 = vmatprep.subr.mxu0 0.0
        %878 = vmatpush2.msra.mxu0 0.0
        %879 = vmatprep.subr.mxu0 0.0
        %880 = vmatpush2.msra.mxu0 0.0
        %881 = vmatprep.subr.mxu0 0.0
        %882 = vmatpush2.msra.mxu0 0.0
        %883 = vmatprep.subr.mxu0 0.0
        %884 = vmatpush2.msra.mxu0 0.0
        %885 = vmatprep.subr.mxu0 0.0
        %886 = vmatpush2.msra.mxu0 0.0
        %887 = vmatprep.subr.mxu0 0.0
        %888 = vmatpush2.msra.mxu0 0.0
        %889 = vmatprep.subr.mxu0 0.0
        %890 = vmatpush2.msra.mxu0 0.0
        %891 = vmatprep.subr.mxu0 0.0
        %892 = vmatpush2.msra.mxu0 0.0
        %893 = vmatprep.subr.mxu0 0.0
        %894 = vmatpush2.msra.mxu0 0.0
        %895 = vmatprep.subr.mxu0 0.0
        %896 = vmatpush2.msra.mxu0 0.0
        %897 = vmatprep.subr.mxu0 0.0
        %898 = vmatpush2.msra.mxu0 0.0
        %899 = vmatprep.subr.mxu0 0.0
        %900 = vmatpush2.msra.mxu0 0.0
        %901 = vmatprep.subr.mxu0 0.0
        %902 = vmatpush2.msra.mxu0 0.0
        %903 = vmatprep.mubr.f32.mxu0 0.0
        %904 = vmatmul.mubr.f32.gmra.mxu0 %v254
        %v905 = vpop.f32.mrf.mxu0
        %v906 = vadd.f32 0.0, %v905
        %v907 = vpop.f32.mrf.mxu0
        %908 = vdwg.mxu0
        %v910 = vsel %vm252, %v906, 0
        %912 = vmatprep.subr.mxu0 0.0
        %913 = vmatpush1.msra.mxu0 0.0
        %914 = vmatprep.subr.mxu0 0.0
        %915 = vmatpush1.msra.mxu0 0.0
        %916 = vmatprep.subr.mxu0 0.0
        %917 = vmatpush1.msra.mxu0 0.0
        %918 = vmatprep.subr.mxu0 0.0
        %919 = vmatpush1.msra.mxu0 0.0
        %920 = vmatprep.subr.mxu0 0.0
        %921 = vmatpush1.msra.mxu0 0.0
        %922 = vmatprep.subr.mxu0 0.0
        %923 = vmatpush1.msra.mxu0 0.0
        %924 = vmatprep.subr.mxu0 0.0
        %925 = vmatpush1.msra.mxu0 0.0
        %926 = vmatprep.subr.mxu0 0.0
        %927 = vmatpush1.msra.mxu0 0.0
        %928 = vmatprep.subr.mxu0 0.0
        %929 = vmatpush1.msra.mxu0 0.0
        %930 = vmatprep.subr.mxu0 0.0
        %931 = vmatpush1.msra.mxu0 0.0
        %932 = vmatprep.subr.mxu0 0.0
        %933 = vmatpush1.msra.mxu0 0.0
        %934 = vmatprep.subr.mxu0 0.0
        %935 = vmatpush1.msra.mxu0 0.0
        %936 = vmatprep.subr.mxu0 0.0
        %937 = vmatpush1.msra.mxu0 0.0
        %938 = vmatprep.subr.mxu0 0.0
        %939 = vmatpush1.msra.mxu0 0.0
        %940 = vmatprep.subr.mxu0 0.0
        %941 = vmatpush1.msra.mxu0 %v251
        %942 = vmatprep.subr.mxu0 0.0
        %943 = vmatpush1.msra.mxu0 %v250
        %944 = vmatprep.subr.mxu0 0.0
        %945 = vmatpush2.msra.mxu0 0.0
        %946 = vmatprep.subr.mxu0 0.0
        %947 = vmatpush2.msra.mxu0 0.0
        %948 = vmatprep.subr.mxu0 0.0
        %949 = vmatpush2.msra.mxu0 0.0
        %950 = vmatprep.subr.mxu0 0.0
        %951 = vmatpush2.msra.mxu0 0.0
        %952 = vmatprep.subr.mxu0 0.0
        %953 = vmatpush2.msra.mxu0 0.0
        %954 = vmatprep.subr.mxu0 0.0
        %955 = vmatpush2.msra.mxu0 0.0
        %956 = vmatprep.subr.mxu0 0.0
        %957 = vmatpush2.msra.mxu0 0.0
        %958 = vmatprep.subr.mxu0 0.0
        %959 = vmatpush2.msra.mxu0 0.0
        %960 = vmatprep.subr.mxu0 0.0
        %961 = vmatpush2.msra.mxu0 0.0
        %962 = vmatprep.subr.mxu0 0.0
        %963 = vmatpush2.msra.mxu0 0.0
        %964 = vmatprep.subr.mxu0 0.0
        %965 = vmatpush2.msra.mxu0 0.0
        %966 = vmatprep.subr.mxu0 0.0
        %967 = vmatpush2.msra.mxu0 0.0
        %968 = vmatprep.subr.mxu0 0.0
        %969 = vmatpush2.msra.mxu0 0.0
        %970 = vmatprep.subr.mxu0 0.0
        %971 = vmatpush2.msra.mxu0 0.0
        %972 = vmatprep.subr.mxu0 0.0
        %973 = vmatpush2.msra.mxu0 0.0
        %974 = vmatprep.subr.mxu0 0.0
        %975 = vmatpush2.msra.mxu0 0.0
        %976 = vmatprep.mubr.f32.mxu0 0.0
        %977 = vmatmul.mubr.f32.gmra.mxu0 %v910
        %v978 = vpop.f32.mrf.mxu0
        %v979 = vadd.f32 0.0, %v978
        %v980 = vpop.f32.mrf.mxu0
        %981 = vdwg.mxu0
        %v982 = vsub.f32 %v979, %v544
        %v983 = vmul.f32 %v982, 2.0
        %v984 = vstv %s244
        %v985 = vadd.f32 %v983, %v984
        %v986 = vadd.f32 %v690, %v836
        %v987 = vadd.f32 %v986, %v984
        %v988 = vrcp.pop %v987
        %v989 = vmul.f32 %v985, %v988
        %v990 = vmul.f32 %v544, 2.0
        %v991 = vstv %s242
        %v992 = vadd.f32 %v990, %v991
        %v993 = vadd.f32 %v542, %v543
        %v994 = vadd.f32 %v993, %v991
        %v995 = vrcp.pop %v994
        %v996 = vmul.f32 %v992, %v995
        %v997 = vmul.f32 %v996, %v989
        %s998 = sld [smem:[#allocation2]]
        %vm999 = vcmask 46080
        %v1000 = vsel %vm999, %v997, 0.0
        %1001 = vadd.xlane.f32.xlu0 %v1000
        %v1002 = vpop.xlane.xlu0 %1001
        %v1003 = vrot.slane %v1002, 4
        %v1004 = vadd.f32 %v1002, %v1003
        %v1005 = vrot.slane %v1004, 2
        %v1006 = vadd.f32 %v1004, %v1005
        %v1007 = vrot.slane %v1006, 1
        %v1008 = vadd.f32 %v1006, %v1007
        %s1009 = vtos %v1008
        %s1010 = sadd.f32 %s998, %s1009
        %s1011 = scalar_lea.smem [#allocation2], 0
        %1012 = sst [smem:[%s1011]] %s1010
        %p1013 = scmp.eq.s32.totalorder %s19, 5
        // Predicated region
        $region45: #{generator_loss.5} parent=39 // pred_check
          %p1014 = pneg %p1013
        $region46: #{generator_loss.5} parent=39 // pred_check_branch
          %1016 = sbr.rel (%p1014) target = $region48
        $region47: #{generator_loss.5} parent=39 // pred_region
          %s1017 = sld [smem:[#allocation2]]
          %s1018 = scalar_lea.smem [#allocation4], 0
          %1019 = sst [smem:[%s1018]] %s1017
        $region48: #{generator_loss.5} parent=39 // pred_fallthru
          _
        // Predicated region
        $region49: #{generator_loss.5} parent=39 // pred_check
          %p1020 = pneg %p147
        $region50: #{generator_loss.5} parent=39 // pred_check_branch
          %1022 = sbr.rel (%p1020) target = $region52
        $region51: #{generator_loss.5} parent=39 // pred_region
          %s1024 = ssub.s32 16, 16
          %1025 = vsyncadd [#allocation5], %s1024
          %1028 = dma.smem_to_hbm [#allocation4], 16, %s5, [#allocation5]
        $region52: #{generator_loss.5} parent=39 // pred_fallthru
          _
        // Predicated region
        $region53: #{generator_loss.5} parent=39 // pred_check
          %p1029 = pneg %p147
        $region54: #{generator_loss.5} parent=39 // pred_check_branch
          %1031 = sbr.rel (%p1029) target = $region56
        $region55: #{generator_loss.5} parent=39 // pred_region
          %1032 = dma.done [#allocation5], 16
        $region56: #{generator_loss.5} parent=39 // pred_fallthru
          _
        %1033 = sfence
      $region40: #{generator_loss.5} parent=5 // pred_fallthru
        _
      %p1034 = scmp.le.s32.totalorder 2, %s14
      // Predicated region
      $region57: #{generator_loss.5} parent=5 // pred_check
        %p1035 = pneg %p1034
      $region58: #{generator_loss.5} parent=5 // pred_check_branch
        %1037 = sbr.rel (%p1035) target = $region60
      $region59: #{generator_loss.5} parent=5 // pred_region
        %s1038 = ssub.s32 %s14, 2
      $region60: #{generator_loss.5} parent=5 // pred_fallthru
        _
    $region6: #{generator_loss.5} parent=1 // loop_footer
      %s18 = sadd.s32 1, %s14
    $region7: #{generator_loss.5} parent=1 // loop_footer_branch
      %13 = sbr.rel target = $region3
    $region8: #{generator_loss.5} parent=1 // loop_exit
      _
    %1039 = vsyncpa [#allocation5], 1
    %s1040 = scalar_lea.sflag [#allocation5], 1
    %1041 = vsyncpa %s1040, 1

// kernel: generator_loss.4
$region0: #{generator_loss.4}
  #allocation0 [shape = 'u32[]', space=smem, size = 0x4, offset = 0x4, fixed_abs, tag = 'smem constant byte address 0x4 - core index']
  #allocation1 [shape = 'u32[144,128]{1,0:T(1,128)}', space=vmem, size = 0x12000, scoped, tag = 'internal scratch']
  %s0 = inlined_call_operand.vmem [shape: f32[2,1], index: 0, kind: input, shape index: {}]
  %s1 = inlined_call_operand.vmem [shape: f32[2,1], index: 1, kind: input, shape index: {}]
  %s2 = inlined_call_operand.hbm [shape: f32[1], index: 2, kind: output, shape index: {}]
  %s3 = sld [smem:[#allocation0]]
  $region18: #{generator_loss.4} parent=0
    _
  %s5 = ssub.s32 1, %s3
  %s6 = scalar_select 0, %s5, %s3
  $region1: #{generator_loss.4} parent=0
    #allocation2 [shape = 'u8[512]{0}', space=smem, size = 0x200, scoped, tag = 'output window, operand 0, single buffered']
    #allocation3 [shape = 's32[1]{0}', space=sflag, size = 0x4, scoped, tag = 'scoped memory for generator_loss.4']
    %7 = vsyncpa [#allocation3], 0
    // Predicated region
    $region2: #{generator_loss.4} parent=1 // pred_check
      _
    $region3: #{generator_loss.4} parent=1 // pred_check_branch
      %9 = sbr.rel (0) target = $region5
    $region4: #{generator_loss.4} parent=1 // pred_region
      _
    $region5: #{generator_loss.4} parent=1 // pred_fallthru
      _
    // Predicated region
    $region6: #{generator_loss.4} parent=1 // pred_check
      _
    $region7: #{generator_loss.4} parent=1 // pred_check_branch
      %11 = sbr.rel (0) target = $region9
    $region8: #{generator_loss.4} parent=1 // pred_region
      _
    $region9: #{generator_loss.4} parent=1 // pred_fallthru
      _
    %v12 = vld [vmem:[%s0] sm:$0x3]
    %v13 = vld [vmem:[%s1] sm:$0x3]
    %vm14 = vcmask 1024
    %v15 = vsel %vm14, %v12, 0.0
    %16 = vadd.xlane.f32.xlu0 %v15
    %v17 = vpop.xlane.xlu0 %16
    %v18 = vrot.slane %v17, 4
    %v19 = vadd.f32 %v17, %v18
    %v20 = vrot.slane %v19, 2
    %v21 = vadd.f32 %v19, %v20
    %v22 = vrot.slane %v21, 1
    %v23 = vadd.f32 %v21, %v22
    %s24 = vtos %v23
    %v25 = vrcp.pop 2.0
    %s26 = vtos %v25
    %s27 = smul.f32 %s24, %s26
    %v28 = vsel %vm14, %v13, 0.0
    %29 = vadd.xlane.f32.xlu0 %v28
    %v30 = vpop.xlane.xlu0 %29
    %v31 = vrot.slane %v30, 4
    %v32 = vadd.f32 %v30, %v31
    %v33 = vrot.slane %v32, 2
    %v34 = vadd.f32 %v32, %v33
    %v35 = vrot.slane %v34, 1
    %v36 = vadd.f32 %v34, %v35
    %s37 = vtos %v36
    %v38 = vrcp.pop 2.0
    %s39 = vtos %v38
    %s40 = smul.f32 %s37, %s39
    %v41 = vstv %s40
    %v42 = vsub.f32 %v12, %v41
    %v43 = vsub.f32 0.0, %v42
    %v44 = vmax.f32 %v43, 0.0
    %v45 = vand.u32 2147483647, %v43
    %v46 = vsub.f32 0.0, %v45
    %v47 = vmul.f32 %v46, 1.442695
    %v48 = vpow.pop %v47
    %v49 = vadd.f32 %v48, 1.0
    %v50 = vlog2.pop %v49
    %v51 = vmul.f32 %v50, 0.6931472
    %v52 = vadd.f32 %v44, %v51
    %v53 = vsel %vm14, %v52, 0.0
    %54 = vadd.xlane.f32.xlu0 %v53
    %v55 = vpop.xlane.xlu0 %54
    %v56 = vrot.slane %v55, 4
    %v57 = vadd.f32 %v55, %v56
    %v58 = vrot.slane %v57, 2
    %v59 = vadd.f32 %v57, %v58
    %v60 = vrot.slane %v59, 1
    %v61 = vadd.f32 %v59, %v60
    %s62 = vtos %v61
    %v63 = vrcp.pop 2.0
    %s64 = vtos %v63
    %s65 = smul.f32 %s62, %s64
    %v66 = vstv %s27
    %v67 = vsub.f32 %v13, %v66
    %v68 = vmax.f32 %v67, 0.0
    %v69 = vand.u32 2147483647, %v67
    %v70 = vsub.f32 0.0, %v69
    %v71 = vmul.f32 %v70, 1.442695
    %v72 = vpow.pop %v71
    %v73 = vadd.f32 %v72, 1.0
    %v74 = vlog2.pop %v73
    %v75 = vmul.f32 %v74, 0.6931472
    %v76 = vadd.f32 %v68, %v75
    %v77 = vsel %vm14, %v76, 0.0
    %78 = vadd.xlane.f32.xlu0 %v77
    %v79 = vpop.xlane.xlu0 %78
    %v80 = vrot.slane %v79, 4
    %v81 = vadd.f32 %v79, %v80
    %v82 = vrot.slane %v81, 2
    %v83 = vadd.f32 %v81, %v82
    %v84 = vrot.slane %v83, 1
    %v85 = vadd.f32 %v83, %v84
    %s86 = vtos %v85
    %v87 = vrcp.pop 2.0
    %s88 = vtos %v87
    %s89 = smul.f32 %s86, %s88
    %s90 = sadd.f32 %s65, %s89
    %s91 = smul.f32 %s90, 0.5
    %s92 = scalar_lea.smem [#allocation2], 0
    %93 = sst [smem:[%s92]] %s91
    // Predicated region
    $region10: #{generator_loss.4} parent=1 // pred_check
      _
    $region11: #{generator_loss.4} parent=1 // pred_check_branch
      %95 = sbr.rel (0) target = $region13
    $region12: #{generator_loss.4} parent=1 // pred_region
      %s97 = ssub.s32 16, 16
      %98 = vsyncadd [#allocation3], %s97
      %101 = dma.smem_to_hbm [#allocation2], 16, %s2, [#allocation3]
    $region13: #{generator_loss.4} parent=1 // pred_fallthru
      _
    // Predicated region
    $region14: #{generator_loss.4} parent=1 // pred_check
      _
    $region15: #{generator_loss.4} parent=1 // pred_check_branch
      %103 = sbr.rel (0) target = $region17
    $region16: #{generator_loss.4} parent=1 // pred_region
      %104 = dma.done [#allocation3], 16
    $region17: #{generator_loss.4} parent=1 // pred_fallthru
      _
    %105 = sfence
    %106 = vsyncpa [#allocation3], 1

// kernel: generator_loss.3
$region0: #{generator_loss.3}
  #allocation0 [shape = 'u32[]', space=smem, size = 0x4, offset = 0x4, fixed_abs, tag = 'smem constant byte address 0x4 - core index']
  #allocation1 [shape = 'u32[144,128]{1,0:T(1,128)}', space=vmem, size = 0x12000, scoped, tag = 'internal scratch']
  #allocation2 [shape = 'f32[8]{0:T(128)}', space=smem, size = 0x200, scoped, tag = 'scratch operand']
  %s0 = inlined_call_operand.vmem [shape: f32[2,18,18,3], index: 0, kind: input, shape index: {}]
  %s1 = inlined_call_operand.vmem [shape: f32[2,18,18,3], index: 1, kind: input, shape index: {}]
  %s2 = inlined_call_operand.vmem [shape: f32[27,128], index: 2, kind: input, shape index: {}]
  %s3 = inlined_call_operand.vmem [shape: f32[1,128], index: 3, kind: input, shape index: {}]
  %s4 = inlined_call_operand.vmem [shape: f32[8], index: 4, kind: output, shape index: {}]
  %s5 = sld [smem:[#allocation0]]
  $region57: #{generator_loss.3} parent=0
    _
  %s7 = ssub.s32 1, %s5
  %s8 = scalar_select 0, %s7, %s5
  $region1: #{generator_loss.3} parent=0
    #allocation3 [shape = 'u8[512]{0}', space=smem, size = 0x200, scoped, tag = 'output window, operand 0, single buffered']
    #allocation4 [shape = 's32[2]{0}', space=sflag, size = 0x8, scoped, tag = 'scoped memory for generator_loss.3']
    %9 = vsyncpa [#allocation4], 0
    loop: start=0, step=1, limit=4
    $region2: #{generator_loss.3} parent=1 // loop_pre_header
      _
    $region3: #{generator_loss.3} parent=1 // loop_header
      %s11 = sphi 0, %s15
      %p12 = scmp.ge.s32.totalorder %s11, 4
      %s21 = sphi 0, %s23
      %s24 = sphi 0, %s21
      %s25 = sphi 0, %s24
      %s41 = sphi 0, %s25
      %s47 = sphi 0, %s49
      %s50 = sphi 0, %s47
      %s51 = sphi 0, %s50
      %s67 = sphi 0, %s51
      %s71 = sphi 0, %s71
      %s73 = sphi 0, %s71
      %s74 = sphi 0, %s73
      %s88 = sphi 0, %s74
      %s92 = sphi 0, %s92
      %s94 = sphi 0, %s92
      %s95 = sphi 0, %s94
      %s109 = sphi 0, %s95
      %s113 = sphi 0, %s113
      %s115 = sphi 0, %s113
      %s116 = sphi 0, %s115
      %s130 = sphi 0, %s116
    $region4: #{generator_loss.3} parent=1 // loop_header_branch
      %14 = sbr.rel (%p12) target = $region8
    $region5: #{generator_loss.3} parent=1 // loop_body
      %s16 = ssub.s32 %s11, 1
      %s17 = ssub.s32 %s11, 2
      %s18 = sadd.s32 %s11, 1
      %s19 = ssub.s32 %s11, %s18
      %p20 = scmp.eq.s32.totalorder %s19, 0
      %s22 = sadd.s32 %s21, 1
      %s23 = scalar_select %p20, %s21, %s22
      %p26 = pneg %p20
      %p27 = scmp.eq.s32.totalorder %s11, 1
      %p28 = por %p26, %p27
      %p29 = scmp.ne.s32.totalorder %s21, %s24
      %p30 = scmp.eq.s32.totalorder %s11, 0
      %p31 = por %p29, %p30
      %p32 = scmp.ne.s32.totalorder %s21, %s24
      %p33 = scmp.eq.s32.totalorder %s16, 1
      %p34 = por %p32, %p33
      %p35 = scmp.ne.s32.totalorder %s24, %s25
      %p36 = scmp.eq.s32.totalorder %s16, 0
      %p37 = por %p35, %p36
      %p38 = scmp.ne.s32.totalorder %s24, %s25
      %p39 = scmp.eq.s32.totalorder %s17, 1
      %p40 = por %p38, %p39
      %p42 = scmp.ne.s32.totalorder %s25, %s41
      %p43 = scmp.eq.s32.totalorder %s17, 0
      %p44 = por %p42, %p43
      %s45 = ssub.s32 %s11, %s18
      %p46 = scmp.eq.s32.totalorder %s45, 0
      %s48 = sadd.s32 %s47, 1
      %s49 = scalar_select %p46, %s47, %s48
      %p52 = pneg %p46
      %p53 = scmp.eq.s32.totalorder %s11, 1
      %p54 = por %p52, %p53
      %p55 = scmp.ne.s32.totalorder %s47, %s50
      %p56 = scmp.eq.s32.totalorder %s11, 0
      %p57 = por %p55, %p56
      %p58 = scmp.ne.s32.totalorder %s47, %s50
      %p59 = scmp.eq.s32.totalorder %s16, 1
      %p60 = por %p58, %p59
      %p61 = scmp.ne.s32.totalorder %s50, %s51
      %p62 = scmp.eq.s32.totalorder %s16, 0
      %p63 = por %p61, %p62
      %p64 = scmp.ne.s32.totalorder %s50, %s51
      %p65 = scmp.eq.s32.totalorder %s17, 1
      %p66 = por %p64, %p65
      %p68 = scmp.ne.s32.totalorder %s51, %s67
      %p69 = scmp.eq.s32.totalorder %s17, 0
      %p70 = por %p68, %p69
      %s72 = sadd.s32 %s71, 1
      %p75 = scmp.eq.s32.totalorder %s11, 1
      %p76 = scmp.ne.s32.totalorder %s71, %s73
      %p77 = scmp.eq.s32.totalorder %s11, 0
      %p78 = por %p76, %p77
      %p79 = scmp.ne.s32.totalorder %s71, %s73
      %p80 = scmp.eq.s32.totalorder %s16, 1
      %p81 = por %p79, %p80
      %p82 = scmp.ne.s32.totalorder %s73, %s74
      %p83 = scmp.eq.s32.totalorder %s16, 0
      %p84 = por %p82, %p83
      %p85 = scmp.ne.s32.totalorder %s73, %s74
      %p86 = scmp.eq.s32.totalorder %s17, 1
      %p87 = por %p85, %p86
      %p89 = scmp.ne.s32.totalorder %s74, %s88
      %p90 = scmp.eq.s32.totalorder %s17, 0
      %p91 = por %p89, %p90
      %s93 = sadd.s32 %s92, 1
      %p96 = scmp.eq.s32.totalorder %s11, 1
      %p97 = scmp.ne.s32.totalorder %s92, %s94
      %p98 = scmp.eq.s32.totalorder %s11, 0
      %p99 = por %p97, %p98
      %p100 = scmp.ne.s32.totalorder %s92, %s94
      %p101 = scmp.eq.s32.totalorder %s16, 1
      %p102 = por %p100, %p101
      %p103 = scmp.ne.s32.totalorder %s94, %s95
      %p104 = scmp.eq.s32.totalorder %s16, 0
      %p105 = por %p103, %p104
      %p106 = scmp.ne.s32.totalorder %s94, %s95
      %p107 = scmp.eq.s32.totalorder %s17, 1
      %p108 = por %p106, %p107
      %p110 = scmp.ne.s32.totalorder %s95, %s109
      %p111 = scmp.eq.s32.totalorder %s17, 0
      %p112 = por %p110, %p111
      %s114 = sadd.s32 %s113, 1
      %p117 = scmp.eq.s32.totalorder %s11, 1
      %p118 = scmp.ne.s32.totalorder %s113, %s115
      %p119 = scmp.eq.s32.totalorder %s11, 0
      %p120 = por %p118, %p119
      %p121 = scmp.ne.s32.totalorder %s113, %s115
      %p122 = scmp.eq.s32.totalorder %s16, 1
      %p123 = por %p121, %p122
      %p124 = scmp.ne.s32.totalorder %s115, %s116
      %p125 = scmp.eq.s32.totalorder %s16, 0
      %p126 = por %p124, %p125
      %p127 = scmp.ne.s32.totalorder %s115, %s116
      %p128 = scmp.eq.s32.totalorder %s17, 1
      %p129 = por %p127, %p128
      %p131 = scmp.ne.s32.totalorder %s116, %s130
      %p132 = scmp.eq.s32.totalorder %s17, 0
      %p133 = por %p131, %p132
      %p134 = scmp.le.s32.totalorder 1, %s11
      %p135 = scmp.lt.s32.totalorder %s11, 3
      %p136 = pnand %p134, %p135
      %p137 = pneg %p136
      // Predicated region
      $region9: #{generator_loss.3} parent=5 // pred_check
        _
      $region10: #{generator_loss.3} parent=5 // pred_check_branch
        %139 = sbr.rel (%p136) target = $region12
      $region11: #{generator_loss.3} parent=5 // pred_region
        %s140 = ssub.s32 %s11, 1
        // Predicated region
        $region13: #{generator_loss.3} parent=11 // pred_check
          %p141 = pneg %p84
        $region14: #{generator_loss.3} parent=11 // pred_check_branch
          %143 = sbr.rel (%p141) target = $region16
        $region15: #{generator_loss.3} parent=11 // pred_region
          _
        $region16: #{generator_loss.3} parent=11 // pred_fallthru
          _
        // Predicated region
        $region17: #{generator_loss.3} parent=11 // pred_check
          %p144 = pneg %p105
        $region18: #{generator_loss.3} parent=11 // pred_check_branch
          %146 = sbr.rel (%p144) target = $region20
        $region19: #{generator_loss.3} parent=11 // pred_region
          _
        $region20: #{generator_loss.3} parent=11 // pred_fallthru
          _
      $region12: #{generator_loss.3} parent=5 // pred_fallthru
        _
      %p147 = scmp.lt.s32.totalorder %s11, 2
      // Predicated region
      $region21: #{generator_loss.3} parent=5 // pred_check
        %p148 = pneg %p147
      $region22: #{generator_loss.3} parent=5 // pred_check_branch
        %150 = sbr.rel (%p148) target = $region24
      $region23: #{generator_loss.3} parent=5 // pred_region
        // Predicated region
        $region25: #{generator_loss.3} parent=23 // pred_check
          %p151 = pneg %p31
        $region26: #{generator_loss.3} parent=23 // pred_check_branch
          %153 = sbr.rel (%p151) target = $region28
        $region27: #{generator_loss.3} parent=23 // pred_region
          %p154 = scmp.lt.s32.totalorder %s11, 1
          %s155 = scalar_select %p154, %s11, 1
          %s156 = smul.addr %s155, 54
          %s157 = smul.addr %s156, 8
          %s158 = scalar_lea.vmem %s0, %s157
        $region28: #{generator_loss.3} parent=23 // pred_fallthru
          _
        // Predicated region
        $region29: #{generator_loss.3} parent=23 // pred_check
          %p159 = pneg %p57
        $region30: #{generator_loss.3} parent=23 // pred_check_branch
          %161 = sbr.rel (%p159) target = $region32
        $region31: #{generator_loss.3} parent=23 // pred_region
          %p162 = scmp.lt.s32.totalorder %s11, 1
          %s163 = scalar_select %p162, %s11, 1
          %s164 = smul.addr %s163, 54
          %s165 = smul.addr %s164, 8
          %s166 = scalar_lea.vmem %s1, %s165
        $region32: #{generator_loss.3} parent=23 // pred_fallthru
          _
      $region24: #{generator_loss.3} parent=5 // pred_fallthru
        _
      %p167 = scmp.le.s32.totalorder 1, %s11
      %p168 = scmp.lt.s32.totalorder %s11, 3
      %p169 = pnand %p167, %p168
      %p170 = pneg %p169
      // Predicated region
      $region33: #{generator_loss.3} parent=5 // pred_check
        _
      $region34: #{generator_loss.3} parent=5 // pred_check_branch
        %172 = sbr.rel (%p169) target = $region36
      $region35: #{generator_loss.3} parent=5 // pred_region
        %s173 = ssub.s32 %s11, 1
        %p174 = scmp.lt.s32.totalorder %s16, 1
        %s175 = scalar_select %p174, %s16, 1
        %s176 = smul.addr %s175, 54
        %s177 = smul.addr %s176, 8
        %s178 = scalar_lea.vmem %s0, %s177
        %p179 = pneg %p37
        %p180 = pneg %p34
        %p181 = scmp.lt.s32.totalorder %s16, 1
        %s182 = scalar_select %p181, %s16, 1
        %s183 = smul.addr %s182, 54
        %s184 = smul.addr %s183, 8
        %s185 = scalar_lea.vmem %s1, %s184
        %p186 = pneg %p63
        %p187 = pneg %p60
        %p188 = pneg %p84
        %p189 = pneg %p81
        %p190 = pneg %p105
        %p191 = pneg %p102
        %p192 = pneg %p126
        %p193 = pneg %p123
        %p194 = scmp.lt.s32.totalorder %s16, 1
        %s195 = scalar_select %p194, %s16, 1
        %s196 = smul.addr %s195, 54
        %s197 = smul.addr %s196, 8
        %s198 = scalar_lea.vmem %s0, %s197
        %p199 = scmp.lt.s32.totalorder %s16, 1
        %s200 = scalar_select %p199, %s16, 1
        %s201 = smul.addr %s200, 54
        %s202 = smul.addr %s201, 8
        %s203 = scalar_lea.vmem %s1, %s202
        %p204 = scmp.eq.s32.totalorder %s16, 0
        // Predicated region
        $region37: #{generator_loss.3} parent=35 // pred_check
          %p205 = pneg %p204
        $region38: #{generator_loss.3} parent=35 // pred_check_branch
          %207 = sbr.rel (%p205) target = $region40
        $region39: #{generator_loss.3} parent=35 // pred_region
          %s208 = scalar_lea.smem [#allocation2], 0
          %209 = sst [smem:[%s208]] 0.0
          %s210 = scalar_lea.smem [#allocation2], 1
          %211 = sst [smem:[%s210]] 0.0
          %s212 = scalar_lea.smem [#allocation2], 2
          %213 = sst [smem:[%s212]] 0.0
          %s214 = scalar_lea.smem [#allocation2], 3
          %215 = sst [smem:[%s214]] 0.0
          %s216 = scalar_lea.smem [#allocation2], 4
          %217 = sst [smem:[%s216]] -inf
          %s218 = scalar_lea.smem [#allocation2], 5
          %219 = sst [smem:[%s218]] -inf
        $region40: #{generator_loss.3} parent=35 // pred_fallthru
          _
        %v220 = vld [vmem:[%s198] sm:$0xff]
        %v221 = vld [vmem:[%s198 + $0x8] sm:$0xff]
        %v222 = vld [vmem:[%s198 + $0x10] sm:$0x3]
        %v223 = vld [vmem:[%s198 + $0x18] sm:$0xff]
        %v224 = vld [vmem:[%s198 + $0x20] sm:$0xff]
        %v225 = vld [vmem:[%s198 + $0x28] sm:$0x3]
        %v226 = vld [vmem:[%s198 + $0x30] sm:$0xff]
        %v227 = vld [vmem:[%s198 + $0x38] sm:$0xff]
        %v228 = vld [vmem:[%s198 + $0x40] sm:$0x3]
        %v229 = vld [vmem:[%s198 + $0x48] sm:$0xff]
        %v230 = vld [vmem:[%s198 + $0x50] sm:$0xff]
        %v231 = vld [vmem:[%s198 + $0x58] sm:$0x3]
        %v232 = vld [vmem:[%s198 + $0x60] sm:$0xff]
        %v233 = vld [vmem:[%s198 + $0x68] sm:$0xff]
        %v234 = vld [vmem:[%s198 + $0x70] sm:$0x3]
        %v235 = vld [vmem:[%s198 + $0x78] sm:$0xff]
        %v236 = vld [vmem:[%s198 + $0x80] sm:$0xff]
        %v237 = vld [vmem:[%s198 + $0x88] sm:$0x3]
        %v238 = vld [vmem:[%s198 + $0x90] sm:$0xff]
        %v239 = vld [vmem:[%s198 + $0x98] sm:$0xff]
        %v240 = vld [vmem:[%s198 + $0xa0] sm:$0x3]
        %v241 = vld [vmem:[%s198 + $0xa8] sm:$0xff]
        %v242 = vld [vmem:[%s198 + $0xb0] sm:$0xff]
        %v243 = vld [vmem:[%s198 + $0xb8] sm:$0x3]
        %v244 = vld [vmem:[%s198 + $0xc0] sm:$0xff]
        %v245 = vld [vmem:[%s198 + $0xc8] sm:$0xff]
        %v246 = vld [vmem:[%s198 + $0xd0] sm:$0x3]
        %v247 = vld [vmem:[%s198 + $0xd8] sm:$0xff]
        %v248 = vld [vmem:[%s198 + $0xe0] sm:$0xff]
        %v249 = vld [vmem:[%s198 + $0xe8] sm:$0x3]
        %v250 = vld [vmem:[%s198 + $0xf0] sm:$0xff]
        %v251 = vld [vmem:[%s198 + $0xf8] sm:$0xff]
        %v252 = vld [vmem:[%s198 + $0x100] sm:$0x3]
        %v253 = vld [vmem:[%s198 + $0x108] sm:$0xff]
        %v254 = vld [vmem:[%s198 + $0x110] sm:$0xff]
        %v255 = vld [vmem:[%s198 + $0x118] sm:$0x3]
        %v256 = vld [vmem:[%s198 + $0x120] sm:$0xff]
        %v257 = vld [vmem:[%s198 + $0x128] sm:$0xff]
        %v258 = vld [vmem:[%s198 + $0x130] sm:$0x3]
        %v259 = vld [vmem:[%s198 + $0x138] sm:$0xff]
        %v260 = vld [vmem:[%s198 + $0x140] sm:$0xff]
        %v261 = vld [vmem:[%s198 + $0x148] sm:$0x3]
        %v262 = vld [vmem:[%s198 + $0x150] sm:$0xff]
        %v263 = vld [vmem:[%s198 + $0x158] sm:$0xff]
        %v264 = vld [vmem:[%s198 + $0x160] sm:$0x3]
        %v265 = vld [vmem:[%s198 + $0x168] sm:$0xff]
        %v266 = vld [vmem:[%s198 + $0x170] sm:$0xff]
        %v267 = vld [vmem:[%s198 + $0x178] sm:$0x3]
        %v268 = vld [vmem:[%s198 + $0x180] sm:$0xff]
        %v269 = vld [vmem:[%s198 + $0x188] sm:$0xff]
        %v270 = vld [vmem:[%s198 + $0x190] sm:$0x3]
        %v271 = vld [vmem:[%s198 + $0x198] sm:$0xff]
        %v272 = vld [vmem:[%s198 + $0x1a0] sm:$0xff]
        %v273 = vld [vmem:[%s198 + $0x1a8] sm:$0x3]
        %v274 = vld [vmem:[%s203] sm:$0xff]
        %v275 = vld [vmem:[%s203 + $0x8] sm:$0xff]
        %v276 = vld [vmem:[%s203 + $0x10] sm:$0x3]
        %v277 = vld [vmem:[%s203 + $0x18] sm:$0xff]
        %v278 = vld [vmem:[%s203 + $0x20] sm:$0xff]
        %v279 = vld [vmem:[%s203 + $0x28] sm:$0x3]
        %v280 = vld [vmem:[%s203 + $0x30] sm:$0xff]
        %v281 = vld [vmem:[%s203 + $0x38] sm:$0xff]
        %v282 = vld [vmem:[%s203 + $0x40] sm:$0x3]
        %v283 = vld [vmem:[%s203 + $0x48] sm:$0xff]
        %v284 = vld [vmem:[%s203 + $0x50] sm:$0xff]
        %v285 = vld [vmem:[%s203 + $0x58] sm:$0x3]
        %v286 = vld [vmem:[%s203 + $0x60] sm:$0xff]
        %v287 = vld [vmem:[%s203 + $0x68] sm:$0xff]
        %v288 = vld [vmem:[%s203 + $0x70] sm:$0x3]
        %v289 = vld [vmem:[%s203 + $0x78] sm:$0xff]
        %v290 = vld [vmem:[%s203 + $0x80] sm:$0xff]
        %v291 = vld [vmem:[%s203 + $0x88] sm:$0x3]
        %v292 = vld [vmem:[%s203 + $0x90] sm:$0xff]
        %v293 = vld [vmem:[%s203 + $0x98] sm:$0xff]
        %v294 = vld [vmem:[%s203 + $0xa0] sm:$0x3]
        %v295 = vld [vmem:[%s203 + $0xa8] sm:$0xff]
        %v296 = vld [vmem:[%s203 + $0xb0] sm:$0xff]
        %v297 = vld [vmem:[%s203 + $0xb8] sm:$0x3]
        %v298 = vld [vmem:[%s203 + $0xc0] sm:$0xff]
        %v299 = vld [vmem:[%s203 + $0xc8] sm:$0xff]
        %v300 = vld [vmem:[%s203 + $0xd0] sm:$0x3]
        %v301 = vld [vmem:[%s203 + $0xd8] sm:$0xff]
        %v302 = vld [vmem:[%s203 + $0xe0] sm:$0xff]
        %v303 = vld [vmem:[%s203 + $0xe8] sm:$0x3]
        %v304 = vld [vmem:[%s203 + $0xf0] sm:$0xff]
        %v305 = vld [vmem:[%s203 + $0xf8] sm:$0xff]
        %v306 = vld [vmem:[%s203 + $0x100] sm:$0x3]
        %v307 = vld [vmem:[%s203 + $0x108] sm:$0xff]
        %v308 = vld [vmem:[%s203 + $0x110] sm:$0xff]
        %v309 = vld [vmem:[%s203 + $0x118] sm:$0x3]
        %v310 = vld [vmem:[%s203 + $0x120] sm:$0xff]
        %v311 = vld [vmem:[%s203 + $0x128] sm:$0xff]
        %v312 = vld [vmem:[%s203 + $0x130] sm:$0x3]
        %v313 = vld [vmem:[%s203 + $0x138] sm:$0xff]
        %v314 = vld [vmem:[%s203 + $0x140] sm:$0xff]
        %v315 = vld [vmem:[%s203 + $0x148] sm:$0x3]
        %v316 = vld [vmem:[%s203 + $0x150] sm:$0xff]
        %v317 = vld [vmem:[%s203 + $0x158] sm:$0xff]
        %v318 = vld [vmem:[%s203 + $0x160] sm:$0x3]
        %v319 = vld [vmem:[%s203 + $0x168] sm:$0xff]
        %v320 = vld [vmem:[%s203 + $0x170] sm:$0xff]
        %v321 = vld [vmem:[%s203 + $0x178] sm:$0x3]
        %v322 = vld [vmem:[%s203 + $0x180] sm:$0xff]
        %v323 = vld [vmem:[%s203 + $0x188] sm:$0xff]
        %v324 = vld [vmem:[%s203 + $0x190] sm:$0x3]
        %v325 = vld [vmem:[%s203 + $0x198] sm:$0xff]
        %v326 = vld [vmem:[%s203 + $0x1a0] sm:$0xff]
        %v327 = vld [vmem:[%s203 + $0x1a8] sm:$0x3]
        %vm376 = vcmask 1046528
        %v377 = vrot.slane %v223, 1
        %v378 = vrot.slane %v224, 1
        %v379 = vsel %vm376, %v377, %v378
        %v380 = vrot.slane %v225, 1
        %v381 = vsel %vm376, %v378, %v380
        %v382 = vrot.slane %v226, 1
        %v383 = vrot.slane %v227, 1
        %v384 = vsel %vm376, %v382, %v383
        %v385 = vrot.slane %v228, 1
        %v386 = vsel %vm376, %v383, %v385
        %v387 = vrot.slane %v229, 1
        %v388 = vrot.slane %v230, 1
        %v389 = vsel %vm376, %v387, %v388
        %v390 = vrot.slane %v231, 1
        %v391 = vsel %vm376, %v388, %v390
        %v392 = vrot.slane %v232, 1
        %v393 = vrot.slane %v233, 1
        %v394 = vsel %vm376, %v392, %v393
        %v395 = vrot.slane %v234, 1
        %v396 = vsel %vm376, %v393, %v395
        %v397 = vrot.slane %v235, 1
        %v398 = vrot.slane %v236, 1
        %v399 = vsel %vm376, %v397, %v398
        %v400 = vrot.slane %v237, 1
        %v401 = vsel %vm376, %v398, %v400
        %v402 = vrot.slane %v238, 1
        %v403 = vrot.slane %v239, 1
        %v404 = vsel %vm376, %v402, %v403
        %v405 = vrot.slane %v240, 1
        %v406 = vsel %vm376, %v403, %v405
        %v407 = vrot.slane %v241, 1
        %v408 = vrot.slane %v242, 1
        %v409 = vsel %vm376, %v407, %v408
        %v410 = vrot.slane %v243, 1
        %v411 = vsel %vm376, %v408, %v410
        %v412 = vrot.slane %v244, 1
        %v413 = vrot.slane %v245, 1
        %v414 = vsel %vm376, %v412, %v413
        %v415 = vrot.slane %v246, 1
        %v416 = vsel %vm376, %v413, %v415
        %v417 = vrot.slane %v247, 1
        %v418 = vrot.slane %v248, 1
        %v419 = vsel %vm376, %v417, %v418
        %v420 = vrot.slane %v249, 1
        %v421 = vsel %vm376, %v418, %v420
        %v422 = vrot.slane %v250, 1
        %v423 = vrot.slane %v251, 1
        %v424 = vsel %vm376, %v422, %v423
        %v425 = vrot.slane %v252, 1
        %v426 = vsel %vm376, %v423, %v425
        %v427 = vrot.slane %v253, 1
        %v428 = vrot.slane %v254, 1
        %v429 = vsel %vm376, %v427, %v428
        %v430 = vrot.slane %v255, 1
        %v431 = vsel %vm376, %v428, %v430
        %v432 = vrot.slane %v256, 1
        %v433 = vrot.slane %v257, 1
        %v434 = vsel %vm376, %v432, %v433
        %v435 = vrot.slane %v258, 1
        %v436 = vsel %vm376, %v433, %v435
        %v437 = vrot.slane %v259, 1
        %v438 = vrot.slane %v260, 1
        %v439 = vsel %vm376, %v437, %v438
        %v440 = vrot.slane %v261, 1
        %v441 = vsel %vm376, %v438, %v440
        %v442 = vrot.slane %v262, 1
        %v443 = vrot.slane %v263, 1
        %v444 = vsel %vm376, %v442, %v443
        %v445 = vrot.slane %v264, 1
        %v446 = vsel %vm376, %v443, %v445
        %v447 = vrot.slane %v265, 1
        %v448 = vrot.slane %v266, 1
        %v449 = vsel %vm376, %v447, %v448
        %v450 = vrot.slane %v267, 1
        %v451 = vsel %vm376, %v448, %v450
        %v452 = vrot.slane %v268, 1
        %v453 = vrot.slane %v269, 1
        %v454 = vsel %vm376, %v452, %v453
        %v455 = vrot.slane %v270, 1
        %v456 = vsel %vm376, %v453, %v455
        %v489 = vcombine.low %v379, %v389
        %v490 = vcombine.high %v379, %v389
        %v492 = vunpack.c.l.s4 1983009808
        %v493 = vunpack.c.0.s8 %v492
        %v494 = vlaneseq
        %v495 = vshrl.u32 %v494, 7
        %v496 = vsub.s32 %v493, %v495
        %v497 = vrot.slane %v489, %v496
        %v499 = vunpack.c.l.s4 1983009808
        %v500 = vunpack.c.0.s8 %v499
        %v501 = vlaneseq
        %v502 = vshrl.u32 %v501, 7
        %v503 = vsub.s32 %v500, %v502
        %v504 = vrot.slane %v490, %v503
        %v505 = vcombine.low %v384, %v394
        %v506 = vcombine.high %v384, %v394
        %v508 = vunpack.c.l.s4 1983009808
        %v509 = vunpack.c.0.s8 %v508
        %v510 = vlaneseq
        %v511 = vshrl.u32 %v510, 7
        %v512 = vsub.s32 %v509, %v511
        %v513 = vrot.slane %v505, %v512
        %v515 = vunpack.c.l.s4 1983009808
        %v516 = vunpack.c.0.s8 %v515
        %v517 = vlaneseq
        %v518 = vshrl.u32 %v517, 7
        %v519 = vsub.s32 %v516, %v518
        %v520 = vrot.slane %v506, %v519
        %v521 = vcombine.low %v399, %v409
        %v522 = vcombine.high %v399, %v409
        %v524 = vunpack.c.l.s4 1983009808
        %v525 = vunpack.c.0.s8 %v524
        %v526 = vlaneseq
        %v527 = vshrl.u32 %v526, 7
        %v528 = vsub.s32 %v525, %v527
        %v529 = vrot.slane %v521, %v528
        %v531 = vunpack.c.l.s4 1983009808
        %v532 = vunpack.c.0.s8 %v531
        %v533 = vlaneseq
        %v534 = vshrl.u32 %v533, 7
        %v535 = vsub.s32 %v532, %v534
        %v536 = vrot.slane %v522, %v535
        %v537 = vcombine.low %v404, %v414
        %v538 = vcombine.high %v404, %v414
        %v540 = vunpack.c.l.s4 1983009808
        %v541 = vunpack.c.0.s8 %v540
        %v542 = vlaneseq
        %v543 = vshrl.u32 %v542, 7
        %v544 = vsub.s32 %v541, %v543
        %v545 = vrot.slane %v537, %v544
        %v547 = vunpack.c.l.s4 1983009808
        %v548 = vunpack.c.0.s8 %v547
        %v549 = vlaneseq
        %v550 = vshrl.u32 %v549, 7
        %v551 = vsub.s32 %v548, %v550
        %v552 = vrot.slane %v538, %v551
        %v553 = vcombine.low %v497, %v513
        %v554 = vcombine.high %v497, %v513
        %v556 = vunpack.c.l.s4 1934713408
        %v557 = vunpack.c.0.s8 %v556
        %v558 = vlaneseq
        %v559 = vshrl.u32 %v558, 7
        %v560 = vsub.s32 %v557, %v559
        %v561 = vrot.slane %v553, %v560
        %v563 = vunpack.c.l.s4 1934713408
        %v564 = vunpack.c.0.s8 %v563
        %v565 = vlaneseq
        %v566 = vshrl.u32 %v565, 7
        %v567 = vsub.s32 %v564, %v566
        %v568 = vrot.slane %v554, %v567
        %v569 = vcombine.low %v504, %v520
        %v570 = vcombine.high %v504, %v520
        %v572 = vunpack.c.l.s4 1934713408
        %v573 = vunpack.c.0.s8 %v572
        %v574 = vlaneseq
        %v575 = vshrl.u32 %v574, 7
        %v576 = vsub.s32 %v573, %v575
        %v577 = vrot.slane %v569, %v576
        %v579 = vunpack.c.l.s4 1934713408
        %v580 = vunpack.c.0.s8 %v579
        %v581 = vlaneseq
        %v582 = vshrl.u32 %v581, 7
        %v583 = vsub.s32 %v580, %v582
        %v584 = vrot.slane %v570, %v583
        %v585 = vcombine.low %v529, %v545
        %v586 = vcombine.high %v529, %v545
        %v588 = vunpack.c.l.s4 1934713408
        %v589 = vunpack.c.0.s8 %v588
        %v590 = vlaneseq
        %v591 = vshrl.u32 %v590, 7
        %v592 = vsub.s32 %v589, %v591
        %v593 = vrot.slane %v585, %v592
        %v595 = vunpack.c.l.s4 1934713408
        %v596 = vunpack.c.0.s8 %v595
        %v597 = vlaneseq
        %v598 = vshrl.u32 %v597, 7
        %v599 = vsub.s32 %v596, %v598
        %v600 = vrot.slane %v586, %v599
        %v601 = vcombine.low %v536, %v552
        %v602 = vcombine.high %v536, %v552
        %v604 = vunpack.c.l.s4 1934713408
        %v605 = vunpack.c.0.s8 %v604
        %v606 = vlaneseq
        %v607 = vshrl.u32 %v606, 7
        %v608 = vsub.s32 %v605, %v607
        %v609 = vrot.slane %v601, %v608
        %v611 = vunpack.c.l.s4 1934713408
        %v612 = vunpack.c.0.s8 %v611
        %v613 = vlaneseq
        %v614 = vshrl.u32 %v613, 7
        %v615 = vsub.s32 %v612, %v614
        %v616 = vrot.slane %v602, %v615
        %v617 = vcombine.low %v561, %v593
        %v618 = vcombine.high %v561, %v593
        %v619 = vcombine.low %v568, %v600
        %v620 = vcombine.high %v568, %v600
        %v621 = vcombine.low %v577, %v609
        %v622 = vcombine.high %v577, %v609
        %v623 = vcombine.low %v584, %v616
        %v624 = vcombine.high %v584, %v616
        %v625 = vcombine.low %v419, %v429
        %v626 = vcombine.high %v419, %v429
        %v628 = vunpack.c.l.s4 1983009808
        %v629 = vunpack.c.0.s8 %v628
        %v630 = vlaneseq
        %v631 = vshrl.u32 %v630, 7
        %v632 = vsub.s32 %v629, %v631
        %v633 = vrot.slane %v625, %v632
        %v635 = vunpack.c.l.s4 1983009808
        %v636 = vunpack.c.0.s8 %v635
        %v637 = vlaneseq
        %v638 = vshrl.u32 %v637, 7
        %v639 = vsub.s32 %v636, %v638
        %v640 = vrot.slane %v626, %v639
        %v641 = vcombine.low %v424, %v434
        %v642 = vcombine.high %v424, %v434
        %v644 = vunpack.c.l.s4 1983009808
        %v645 = vunpack.c.0.s8 %v644
        %v646 = vlaneseq
        %v647 = vshrl.u32 %v646, 7
        %v648 = vsub.s32 %v645, %v647
        %v649 = vrot.slane %v641, %v648
        %v651 = vunpack.c.l.s4 1983009808
        %v652 = vunpack.c.0.s8 %v651
        %v653 = vlaneseq
        %v654 = vshrl.u32 %v653, 7
        %v655 = vsub.s32 %v652, %v654
        %v656 = vrot.slane %v642, %v655
        %v657 = vcombine.low %v439, %v449
        %v658 = vcombine.high %v439, %v449
        %v660 = vunpack.c.l.s4 1983009808
        %v661 = vunpack.c.0.s8 %v660
        %v662 = vlaneseq
        %v663 = vshrl.u32 %v662, 7
        %v664 = vsub.s32 %v661, %v663
        %v665 = vrot.slane %v657, %v664
        %v667 = vunpack.c.l.s4 1983009808
        %v668 = vunpack.c.0.s8 %v667
        %v669 = vlaneseq
        %v670 = vshrl.u32 %v669, 7
        %v671 = vsub.s32 %v668, %v670
        %v672 = vrot.slane %v658, %v671
        %v673 = vcombine.low %v444, %v454
        %v674 = vcombine.high %v444, %v454
        %v676 = vunpack.c.l.s4 1983009808
        %v677 = vunpack.c.0.s8 %v676
        %v678 = vlaneseq
        %v679 = vshrl.u32 %v678, 7
        %v680 = vsub.s32 %v677, %v679
        %v681 = vrot.slane %v673, %v680
        %v683 = vunpack.c.l.s4 1983009808
        %v684 = vunpack.c.0.s8 %v683
        %v685 = vlaneseq
        %v686 = vshrl.u32 %v685, 7
        %v687 = vsub.s32 %v684, %v686
        %v688 = vrot.slane %v674, %v687
        %v689 = vcombine.low %v633, %v649
        %v690 = vcombine.high %v633, %v649
        %v692 = vunpack.c.l.s4 1934713408
        %v693 = vunpack.c.0.s8 %v692
        %v694 = vlaneseq
        %v695 = vshrl.u32 %v694, 7
        %v696 = vsub.s32 %v693, %v695
        %v697 = vrot.slane %v689, %v696
        %v699 = vunpack.c.l.s4 1934713408
        %v700 = vunpack.c.0.s8 %v699
        %v701 = vlaneseq
        %v702 = vshrl.u32 %v701, 7
        %v703 = vsub.s32 %v700, %v702
        %v704 = vrot.slane %v690, %v703
        %v705 = vcombine.low %v640, %v656
        %v706 = vcombine.high %v640, %v656
        %v708 = vunpack.c.l.s4 1934713408
        %v709 = vunpack.c.0.s8 %v708
        %v710 = vlaneseq
        %v711 = vshrl.u32 %v710, 7
        %v712 = vsub.s32 %v709, %v711
        %v713 = vrot.slane %v705, %v712
        %v715 = vunpack.c.l.s4 1934713408
        %v716 = vunpack.c.0.s8 %v715
        %v717 = vlaneseq
        %v718 = vshrl.u32 %v717, 7
        %v719 = vsub.s32 %v716, %v718
        %v720 = vrot.slane %v706, %v719
        %v721 = vcombine.low %v665, %v681
        %v722 = vcombine.high %v665, %v681
        %v724 = vunpack.c.l.s4 1934713408
        %v725 = vunpack.c.0.s8 %v724
        %v726 = vlaneseq
        %v727 = vshrl.u32 %v726, 7
        %v728 = vsub.s32 %v725, %v727
        %v729 = vrot.slane %v721, %v728
        %v731 = vunpack.c.l.s4 1934713408
        %v732 = vunpack.c.0.s8 %v731
        %v733 = vlaneseq
        %v734 = vshrl.u32 %v733, 7
        %v735 = vsub.s32 %v732, %v734
        %v736 = vrot.slane %v722, %v735
        %v737 = vcombine.low %v672, %v688
        %v738 = vcombine.high %v672, %v688
        %v740 = vunpack.c.l.s4 1934713408
        %v741 = vunpack.c.0.s8 %v740
        %v742 = vlaneseq
        %v743 = vshrl.u32 %v742, 7
        %v744 = vsub.s32 %v741, %v743
        %v745 = vrot.slane %v737, %v744
        %v747 = vunpack.c.l.s4 1934713408
        %v748 = vunpack.c.0.s8 %v747
        %v749 = vlaneseq
        %v750 = vshrl.u32 %v749, 7
        %v751 = vsub.s32 %v748, %v750
        %v752 = vrot.slane %v738, %v751
        %v753 = vcombine.low %v697, %v729
        %v754 = vcombine.high %v697, %v729
        %v755 = vcombine.low %v704, %v736
        %v756 = vcombine.high %v704, %v736
        %v757 = vcombine.low %v713, %v745
        %v758 = vcombine.high %v713, %v745
        %v759 = vcombine.low %v720, %v752
        %v760 = vcombine.high %v720, %v752
        %v761 = vcombine.low %v381, %v391
        %v762 = vcombine.high %v381, %v391
        %v764 = vunpack.c.l.s4 1983009808
        %v765 = vunpack.c.0.s8 %v764
        %v766 = vlaneseq
        %v767 = vshrl.u32 %v766, 7
        %v768 = vsub.s32 %v765, %v767
        %v769 = vrot.slane %v761, %v768
        %v771 = vunpack.c.l.s4 1983009808
        %v772 = vunpack.c.0.s8 %v771
        %v773 = vlaneseq
        %v774 = vshrl.u32 %v773, 7
        %v775 = vsub.s32 %v772, %v774
        %v776 = vrot.slane %v762, %v775
        %v777 = vcombine.low %v386, %v396
        %v778 = vcombine.high %v386, %v396
        %v780 = vunpack.c.l.s4 1983009808
        %v781 = vunpack.c.0.s8 %v780
        %v782 = vlaneseq
        %v783 = vshrl.u32 %v782, 7
        %v784 = vsub.s32 %v781, %v783
        %v785 = vrot.slane %v777, %v784
        %v787 = vunpack.c.l.s4 1983009808
        %v788 = vunpack.c.0.s8 %v787
        %v789 = vlaneseq
        %v790 = vshrl.u32 %v789, 7
        %v791 = vsub.s32 %v788, %v790
        %v792 = vrot.slane %v778, %v791
        %v793 = vcombine.low %v401, %v411
        %v794 = vcombine.high %v401, %v411
        %v796 = vunpack.c.l.s4 1983009808
        %v797 = vunpack.c.0.s8 %v796
        %v798 = vlaneseq
        %v799 = vshrl.u32 %v798, 7
        %v800 = vsub.s32 %v797, %v799
        %v801 = vrot.slane %v793, %v800
        %v803 = vunpack.c.l.s4 1983009808
        %v804 = vunpack.c.0.s8 %v803
        %v805 = vlaneseq
        %v806 = vshrl.u32 %v805, 7
        %v807 = vsub.s32 %v804, %v806
        %v808 = vrot.slane %v794, %v807
        %v809 = vcombine.low %v406, %v416
        %v810 = vcombine.high %v406, %v416
        %v812 = vunpack.c.l.s4 1983009808
        %v813 = vunpack.c.0.s8 %v812
        %v814 = vlaneseq
        %v815 = vshrl.u32 %v814, 7
        %v816 = vsub.s32 %v813, %v815
        %v817 = vrot.slane %v809, %v816
        %v819 = vunpack.c.l.s4 1983009808
        %v820 = vunpack.c.0.s8 %v819
        %v821 = vlaneseq
        %v822 = vshrl.u32 %v821, 7
        %v823 = vsub.s32 %v820, %v822
        %v824 = vrot.slane %v810, %v823
        %v825 = vcombine.low %v769, %v785
        %v826 = vcombine.high %v769, %v785
        %v828 = vunpack.c.l.s4 1934713408
        %v829 = vunpack.c.0.s8 %v828
        %v830 = vlaneseq
        %v831 = vshrl.u32 %v830, 7
        %v832 = vsub.s32 %v829, %v831
        %v833 = vrot.slane %v825, %v832
        %v835 = vunpack.c.l.s4 1934713408
        %v836 = vunpack.c.0.s8 %v835
        %v837 = vlaneseq
        %v838 = vshrl.u32 %v837, 7
        %v839 = vsub.s32 %v836, %v838
        %v840 = vrot.slane %v826, %v839
        %v841 = vcombine.low %v776, %v792
        %v842 = vcombine.high %v776, %v792
        %v844 = vunpack.c.l.s4 1934713408
        %v845 = vunpack.c.0.s8 %v844
        %v846 = vlaneseq
        %v847 = vshrl.u32 %v846, 7
        %v848 = vsub.s32 %v845, %v847
        %v849 = vrot.slane %v841, %v848
        %v851 = vunpack.c.l.s4 1934713408
        %v852 = vunpack.c.0.s8 %v851
        %v853 = vlaneseq
        %v854 = vshrl.u32 %v853, 7
        %v855 = vsub.s32 %v852, %v854
        %v856 = vrot.slane %v842, %v855
        %v857 = vcombine.low %v801, %v817
        %v858 = vcombine.high %v801, %v817
        %v860 = vunpack.c.l.s4 1934713408
        %v861 = vunpack.c.0.s8 %v860
        %v862 = vlaneseq
        %v863 = vshrl.u32 %v862, 7
        %v864 = vsub.s32 %v861, %v863
        %v865 = vrot.slane %v857, %v864
        %v867 = vunpack.c.l.s4 1934713408
        %v868 = vunpack.c.0.s8 %v867
        %v869 = vlaneseq
        %v870 = vshrl.u32 %v869, 7
        %v871 = vsub.s32 %v868, %v870
        %v872 = vrot.slane %v858, %v871
        %v873 = vcombine.low %v808, %v824
        %v874 = vcombine.high %v808, %v824
        %v876 = vunpack.c.l.s4 1934713408
        %v877 = vunpack.c.0.s8 %v876
        %v878 = vlaneseq
        %v879 = vshrl.u32 %v878, 7
        %v880 = vsub.s32 %v877, %v879
        %v881 = vrot.slane %v873, %v880
        %v883 = vunpack.c.l.s4 1934713408
        %v884 = vunpack.c.0.s8 %v883
        %v885 = vlaneseq
        %v886 = vshrl.u32 %v885, 7
        %v887 = vsub.s32 %v884, %v886
        %v888 = vrot.slane %v874, %v887
        %v889 = vcombine.low %v833, %v865
        %v890 = vcombine.high %v833, %v865
        %v891 = vcombine.low %v840, %v872
        %v892 = vcombine.high %v840, %v872
        %v893 = vcombine.low %v849, %v881
        %v894 = vcombine.high %v849, %v881
        %v895 = vcombine.low %v856, %v888
        %v896 = vcombine.high %v856, %v888
        %v897 = vcombine.low %v421, %v431
        %v898 = vcombine.high %v421, %v431
        %v900 = vunpack.c.l.s4 1983009808
        %v901 = vunpack.c.0.s8 %v900
        %v902 = vlaneseq
        %v903 = vshrl.u32 %v902, 7
        %v904 = vsub.s32 %v901, %v903
        %v905 = vrot.slane %v897, %v904
        %v907 = vunpack.c.l.s4 1983009808
        %v908 = vunpack.c.0.s8 %v907
        %v909 = vlaneseq
        %v910 = vshrl.u32 %v909, 7
        %v911 = vsub.s32 %v908, %v910
        %v912 = vrot.slane %v898, %v911
        %v913 = vcombine.low %v426, %v436
        %v914 = vcombine.high %v426, %v436
        %v916 = vunpack.c.l.s4 1983009808
        %v917 = vunpack.c.0.s8 %v916
        %v918 = vlaneseq
        %v919 = vshrl.u32 %v918, 7
        %v920 = vsub.s32 %v917, %v919
        %v921 = vrot.slane %v913, %v920
        %v923 = vunpack.c.l.s4 1983009808
        %v924 = vunpack.c.0.s8 %v923
        %v925 = vlaneseq
        %v926 = vshrl.u32 %v925, 7
        %v927 = vsub.s32 %v924, %v926
        %v928 = vrot.slane %v914, %v927
        %v929 = vcombine.low %v441, %v451
        %v930 = vcombine.high %v441, %v451
        %v932 = vunpack.c.l.s4 1983009808
        %v933 = vunpack.c.0.s8 %v932
        %v934 = vlaneseq
        %v935 = vshrl.u32 %v934, 7
        %v936 = vsub.s32 %v933, %v935
        %v937 = vrot.slane %v929, %v936
        %v939 = vunpack.c.l.s4 1983009808
        %v940 = vunpack.c.0.s8 %v939
        %v941 = vlaneseq
        %v942 = vshrl.u32 %v941, 7
        %v943 = vsub.s32 %v940, %v942
        %v944 = vrot.slane %v930, %v943
        %v945 = vcombine.low %v446, %v456
        %v946 = vcombine.high %v446, %v456
        %v948 = vunpack.c.l.s4 1983009808
        %v949 = vunpack.c.0.s8 %v948
        %v950 = vlaneseq
        %v951 = vshrl.u32 %v950, 7
        %v952 = vsub.s32 %v949, %v951
        %v953 = vrot.slane %v945, %v952
        %v955 = vunpack.c.l.s4 1983009808
        %v956 = vunpack.c.0.s8 %v955
        %v957 = vlaneseq
        %v958 = vshrl.u32 %v957, 7
        %v959 = vsub.s32 %v956, %v958
        %v960 = vrot.slane %v946, %v959
        %v961 = vcombine.low %v905, %v921
        %v962 = vcombine.high %v905, %v921
        %v964 = vunpack.c.l.s4 1934713408
        %v965 = vunpack.c.0.s8 %v964
        %v966 = vlaneseq
        %v967 = vshrl.u32 %v966, 7
        %v968 = vsub.s32 %v965, %v967
        %v969 = vrot.slane %v961, %v968
        %v971 = vunpack.c.l.s4 1934713408
        %v972 = vunpack.c.0.s8 %v971
        %v973 = vlaneseq
        %v974 = vshrl.u32 %v973, 7
        %v975 = vsub.s32 %v972, %v974
        %v976 = vrot.slane %v962, %v975
        %v977 = vcombine.low %v912, %v928
        %v978 = vcombine.high %v912, %v928
        %v980 = vunpack.c.l.s4 1934713408
        %v981 = vunpack.c.0.s8 %v980
        %v982 = vlaneseq
        %v983 = vshrl.u32 %v982, 7
        %v984 = vsub.s32 %v981, %v983
        %v985 = vrot.slane %v977, %v984
        %v987 = vunpack.c.l.s4 1934713408
        %v988 = vunpack.c.0.s8 %v987
        %v989 = vlaneseq
        %v990 = vshrl.u32 %v989, 7
        %v991 = vsub.s32 %v988, %v990
        %v992 = vrot.slane %v978, %v991
        %v993 = vcombine.low %v937, %v953
        %v994 = vcombine.high %v937, %v953
        %v996 = vunpack.c.l.s4 1934713408
        %v997 = vunpack.c.0.s8 %v996
        %v998 = vlaneseq
        %v999 = vshrl.u32 %v998, 7
        %v1000 = vsub.s32 %v997, %v999
        %v1001 = vrot.slane %v993, %v1000
        %v1003 = vunpack.c.l.s4 1934713408
        %v1004 = vunpack.c.0.s8 %v1003
        %v1005 = vlaneseq
        %v1006 = vshrl.u32 %v1005, 7
        %v1007 = vsub.s32 %v1004, %v1006
        %v1008 = vrot.slane %v994, %v1007
        %v1009 = vcombine.low %v944, %v960
        %v1010 = vcombine.high %v944, %v960
        %v1012 = vunpack.c.l.s4 1934713408
        %v1013 = vunpack.c.0.s8 %v1012
        %v1014 = vlaneseq
        %v1015 = vshrl.u32 %v1014, 7
        %v1016 = vsub.s32 %v1013, %v1015
        %v1017 = vrot.slane %v1009, %v1016
        %v1019 = vunpack.c.l.s4 1934713408
        %v1020 = vunpack.c.0.s8 %v1019
        %v1021 = vlaneseq
        %v1022 = vshrl.u32 %v1021, 7
        %v1023 = vsub.s32 %v1020, %v1022
        %v1024 = vrot.slane %v1010, %v1023
        %v1025 = vcombine.low %v969, %v1001
        %v1026 = vcombine.high %v969, %v1001
        %v1027 = vcombine.low %v976, %v1008
        %v1028 = vcombine.high %v976, %v1008
        %v1029 = vcombine.low %v985, %v1017
        %v1030 = vcombine.high %v985, %v1017
        %v1031 = vcombine.low %v992, %v1024
        %v1032 = vcombine.high %v992, %v1024
        %1035 = vrot.lane.b32.xlu0 %v618, 3
        %v1036 = vpop.permute.xlu0 %1035
        %1037 = vrot.lane.b32.xlu0 %v754, 3
        %v1038 = vpop.permute.xlu0 %1037
        %1043 = vrot.lane.b32.xlu0 %v619, 6
        %v1044 = vpop.permute.xlu0 %1043
        %1045 = vrot.lane.b32.xlu0 %v755, 6
        %v1046 = vpop.permute.xlu0 %1045
        %1051 = vrot.lane.b32.xlu0 %v620, 9
        %v1052 = vpop.permute.xlu0 %1051
        %1053 = vrot.lane.b32.xlu0 %v756, 9
        %v1054 = vpop.permute.xlu0 %1053
        %1059 = vrot.lane.b32.xlu0 %v621, 12
        %v1060 = vpop.permute.xlu0 %1059
        %1061 = vrot.lane.b32.xlu0 %v757, 12
        %v1062 = vpop.permute.xlu0 %1061
        %1067 = vrot.lane.b32.xlu0 %v622, 15
        %v1068 = vpop.permute.xlu0 %1067
        %1069 = vrot.lane.b32.xlu0 %v758, 15
        %v1070 = vpop.permute.xlu0 %1069
        %1075 = vrot.lane.b32.xlu0 %v623, 18
        %v1076 = vpop.permute.xlu0 %1075
        %1077 = vrot.lane.b32.xlu0 %v759, 18
        %v1078 = vpop.permute.xlu0 %1077
        %1083 = vrot.lane.b32.xlu0 %v624, 21
        %v1084 = vpop.permute.xlu0 %1083
        %1085 = vrot.lane.b32.xlu0 %v760, 21
        %v1086 = vpop.permute.xlu0 %1085
        %1091 = vrot.lane.b32.xlu0 %v889, 24
        %v1092 = vpop.permute.xlu0 %1091
        %1093 = vrot.lane.b32.xlu0 %v1025, 24
        %v1094 = vpop.permute.xlu0 %1093
        %1099 = vrot.lane.b32.xlu0 %v890, 27
        %v1100 = vpop.permute.xlu0 %1099
        %1101 = vrot.lane.b32.xlu0 %v1026, 27
        %v1102 = vpop.permute.xlu0 %1101
        %1107 = vrot.lane.b32.xlu0 %v891, 30
        %v1108 = vpop.permute.xlu0 %1107
        %1109 = vrot.lane.b32.xlu0 %v1027, 30
        %v1110 = vpop.permute.xlu0 %1109
        %1115 = vrot.lane.b32.xlu0 %v892, 33
        %v1116 = vpop.permute.xlu0 %1115
        %1117 = vrot.lane.b32.xlu0 %v1028, 33
        %v1118 = vpop.permute.xlu0 %1117
        %1123 = vrot.lane.b32.xlu0 %v893, 36
        %v1124 = vpop.permute.xlu0 %1123
        %1125 = vrot.lane.b32.xlu0 %v1029, 36
        %v1126 = vpop.permute.xlu0 %1125
        %1131 = vrot.lane.b32.xlu0 %v894, 39
        %v1132 = vpop.permute.xlu0 %1131
        %1133 = vrot.lane.b32.xlu0 %v1030, 39
        %v1134 = vpop.permute.xlu0 %1133
        %1139 = vrot.lane.b32.xlu0 %v895, 42
        %v1140 = vpop.permute.xlu0 %1139
        %1141 = vrot.lane.b32.xlu0 %v1031, 42
        %v1142 = vpop.permute.xlu0 %1141
        %1147 = vrot.lane.b32.xlu0 %v896, 45
        %v1148 = vpop.permute.xlu0 %1147
        %1149 = vrot.lane.b32.xlu0 %v1032, 45
        %v1150 = vpop.permute.xlu0 %1149
        %vm1153 = vcmask 23552
        %v1154 = vsel %vm1153, %v617, %v1036
        %v1155 = vsel %vm1153, %v753, %v1038
        %vm1156 = vcmask 48128
        %v1157 = vsel %vm1156, %v1154, %v1044
        %v1158 = vsel %vm1156, %v1155, %v1046
        %vm1159 = vcmask 72704
        %v1160 = vsel %vm1159, %v1157, %v1052
        %v1161 = vsel %vm1159, %v1158, %v1054
        %vm1162 = vcmask 97280
        %v1163 = vsel %vm1162, %v1160, %v1060
        %v1164 = vsel %vm1162, %v1161, %v1062
        %vm1165 = vcmask 121856
        %v1166 = vsel %vm1165, %v1163, %v1068
        %v1167 = vsel %vm1165, %v1164, %v1070
        %vm1168 = vcmask 146432
        %v1169 = vsel %vm1168, %v1166, %v1076
        %v1170 = vsel %vm1168, %v1167, %v1078
        %vm1171 = vcmask 171008
        %v1172 = vsel %vm1171, %v1169, %v1084
        %v1173 = vsel %vm1171, %v1170, %v1086
        %vm1174 = vcmask 195584
        %v1175 = vsel %vm1174, %v1172, %v1092
        %v1176 = vsel %vm1174, %v1173, %v1094
        %vm1177 = vcmask 220160
        %v1178 = vsel %vm1177, %v1175, %v1100
        %v1179 = vsel %vm1177, %v1176, %v1102
        %vm1180 = vcmask 244736
        %v1181 = vsel %vm1180, %v1178, %v1108
        %v1182 = vsel %vm1180, %v1179, %v1110
        %vm1183 = vcmask 269312
        %v1184 = vsel %vm1183, %v1181, %v1116
        %v1185 = vsel %vm1183, %v1182, %v1118
        %vm1186 = vcmask 293888
        %v1187 = vsel %vm1186, %v1184, %v1124
        %v1188 = vsel %vm1186, %v1185, %v1126
        %vm1189 = vcmask 318464
        %v1190 = vsel %vm1189, %v1187, %v1132
        %v1191 = vsel %vm1189, %v1188, %v1134
        %vm1192 = vcmask 343040
        %v1193 = vsel %vm1192, %v1190, %v1140
        %v1194 = vsel %vm1192, %v1191, %v1142
        %vm1195 = vcmask 367616
        %v1196 = vsel %vm1195, %v1193, %v1148
        %v1197 = vsel %vm1195, %v1194, %v1150
        %v1246 = vrot.slane %v277, 1
        %v1247 = vrot.slane %v278, 1
        %v1248 = vsel %vm376, %v1246, %v1247
        %v1249 = vrot.slane %v279, 1
        %v1250 = vsel %vm376, %v1247, %v1249
        %v1251 = vrot.slane %v280, 1
        %v1252 = vrot.slane %v281, 1
        %v1253 = vsel %vm376, %v1251, %v1252
        %v1254 = vrot.slane %v282, 1
        %v1255 = vsel %vm376, %v1252, %v1254
        %v1256 = vrot.slane %v283, 1
        %v1257 = vrot.slane %v284, 1
        %v1258 = vsel %vm376, %v1256, %v1257
        %v1259 = vrot.slane %v285, 1
        %v1260 = vsel %vm376, %v1257, %v1259
        %v1261 = vrot.slane %v286, 1
        %v1262 = vrot.slane %v287, 1
        %v1263 = vsel %vm376, %v1261, %v1262
        %v1264 = vrot.slane %v288, 1
        %v1265 = vsel %vm376, %v1262, %v1264
        %v1266 = vrot.slane %v289, 1
        %v1267 = vrot.slane %v290, 1
        %v1268 = vsel %vm376, %v1266, %v1267
        %v1269 = vrot.slane %v291, 1
        %v1270 = vsel %vm376, %v1267, %v1269
        %v1271 = vrot.slane %v292, 1
        %v1272 = vrot.slane %v293, 1
        %v1273 = vsel %vm376, %v1271, %v1272
        %v1274 = vrot.slane %v294, 1
        %v1275 = vsel %vm376, %v1272, %v1274
        %v1276 = vrot.slane %v295, 1
        %v1277 = vrot.slane %v296, 1
        %v1278 = vsel %vm376, %v1276, %v1277
        %v1279 = vrot.slane %v297, 1
        %v1280 = vsel %vm376, %v1277, %v1279
        %v1281 = vrot.slane %v298, 1
        %v1282 = vrot.slane %v299, 1
        %v1283 = vsel %vm376, %v1281, %v1282
        %v1284 = vrot.slane %v300, 1
        %v1285 = vsel %vm376, %v1282, %v1284
        %v1286 = vrot.slane %v301, 1
        %v1287 = vrot.slane %v302, 1
        %v1288 = vsel %vm376, %v1286, %v1287
        %v1289 = vrot.slane %v303, 1
        %v1290 = vsel %vm376, %v1287, %v1289
        %v1291 = vrot.slane %v304, 1
        %v1292 = vrot.slane %v305, 1
        %v1293 = vsel %vm376, %v1291, %v1292
        %v1294 = vrot.slane %v306, 1
        %v1295 = vsel %vm376, %v1292, %v1294
        %v1296 = vrot.slane %v307, 1
        %v1297 = vrot.slane %v308, 1
        %v1298 = vsel %vm376, %v1296, %v1297
        %v1299 = vrot.slane %v309, 1
        %v1300 = vsel %vm376, %v1297, %v1299
        %v1301 = vrot.slane %v310, 1
        %v1302 = vrot.slane %v311, 1
        %v1303 = vsel %vm376, %v1301, %v1302
        %v1304 = vrot.slane %v312, 1
        %v1305 = vsel %vm376, %v1302, %v1304
        %v1306 = vrot.slane %v313, 1
        %v1307 = vrot.slane %v314, 1
        %v1308 = vsel %vm376, %v1306, %v1307
        %v1309 = vrot.slane %v315, 1
        %v1310 = vsel %vm376, %v1307, %v1309
        %v1311 = vrot.slane %v316, 1
        %v1312 = vrot.slane %v317, 1
        %v1313 = vsel %vm376, %v1311, %v1312
        %v1314 = vrot.slane %v318, 1
        %v1315 = vsel %vm376, %v1312, %v1314
        %v1316 = vrot.slane %v319, 1
        %v1317 = vrot.slane %v320, 1
        %v1318 = vsel %vm376, %v1316, %v1317
        %v1319 = vrot.slane %v321, 1
        %v1320 = vsel %vm376, %v1317, %v1319
        %v1321 = vrot.slane %v322, 1
        %v1322 = vrot.slane %v323, 1
        %v1323 = vsel %vm376, %v1321, %v1322
        %v1324 = vrot.slane %v324, 1
        %v1325 = vsel %vm376, %v1322, %v1324
        %v1358 = vcombine.low %v1248, %v1258
        %v1359 = vcombine.high %v1248, %v1258
        %v1361 = vunpack.c.l.s4 1983009808
        %v1362 = vunpack.c.0.s8 %v1361
        %v1363 = vlaneseq
        %v1364 = vshrl.u32 %v1363, 7
        %v1365 = vsub.s32 %v1362, %v1364
        %v1366 = vrot.slane %v1358, %v1365
        %v1368 = vunpack.c.l.s4 1983009808
        %v1369 = vunpack.c.0.s8 %v1368
        %v1370 = vlaneseq
        %v1371 = vshrl.u32 %v1370, 7
        %v1372 = vsub.s32 %v1369, %v1371
        %v1373 = vrot.slane %v1359, %v1372
        %v1374 = vcombine.low %v1253, %v1263
        %v1375 = vcombine.high %v1253, %v1263
        %v1377 = vunpack.c.l.s4 1983009808
        %v1378 = vunpack.c.0.s8 %v1377
        %v1379 = vlaneseq
        %v1380 = vshrl.u32 %v1379, 7
        %v1381 = vsub.s32 %v1378, %v1380
        %v1382 = vrot.slane %v1374, %v1381
        %v1384 = vunpack.c.l.s4 1983009808
        %v1385 = vunpack.c.0.s8 %v1384
        %v1386 = vlaneseq
        %v1387 = vshrl.u32 %v1386, 7
        %v1388 = vsub.s32 %v1385, %v1387
        %v1389 = vrot.slane %v1375, %v1388
        %v1390 = vcombine.low %v1268, %v1278
        %v1391 = vcombine.high %v1268, %v1278
        %v1393 = vunpack.c.l.s4 1983009808
        %v1394 = vunpack.c.0.s8 %v1393
        %v1395 = vlaneseq
        %v1396 = vshrl.u32 %v1395, 7
        %v1397 = vsub.s32 %v1394, %v1396
        %v1398 = vrot.slane %v1390, %v1397
        %v1400 = vunpack.c.l.s4 1983009808
        %v1401 = vunpack.c.0.s8 %v1400
        %v1402 = vlaneseq
        %v1403 = vshrl.u32 %v1402, 7
        %v1404 = vsub.s32 %v1401, %v1403
        %v1405 = vrot.slane %v1391, %v1404
        %v1406 = vcombine.low %v1273, %v1283
        %v1407 = vcombine.high %v1273, %v1283
        %v1409 = vunpack.c.l.s4 1983009808
        %v1410 = vunpack.c.0.s8 %v1409
        %v1411 = vlaneseq
        %v1412 = vshrl.u32 %v1411, 7
        %v1413 = vsub.s32 %v1410, %v1412
        %v1414 = vrot.slane %v1406, %v1413
        %v1416 = vunpack.c.l.s4 1983009808
        %v1417 = vunpack.c.0.s8 %v1416
        %v1418 = vlaneseq
        %v1419 = vshrl.u32 %v1418, 7
        %v1420 = vsub.s32 %v1417, %v1419
        %v1421 = vrot.slane %v1407, %v1420
        %v1422 = vcombine.low %v1366, %v1382
        %v1423 = vcombine.high %v1366, %v1382
        %v1425 = vunpack.c.l.s4 1934713408
        %v1426 = vunpack.c.0.s8 %v1425
        %v1427 = vlaneseq
        %v1428 = vshrl.u32 %v1427, 7
        %v1429 = vsub.s32 %v1426, %v1428
        %v1430 = vrot.slane %v1422, %v1429
        %v1432 = vunpack.c.l.s4 1934713408
        %v1433 = vunpack.c.0.s8 %v1432
        %v1434 = vlaneseq
        %v1435 = vshrl.u32 %v1434, 7
        %v1436 = vsub.s32 %v1433, %v1435
        %v1437 = vrot.slane %v1423, %v1436
        %v1438 = vcombine.low %v1373, %v1389
        %v1439 = vcombine.high %v1373, %v1389
        %v1441 = vunpack.c.l.s4 1934713408
        %v1442 = vunpack.c.0.s8 %v1441
        %v1443 = vlaneseq
        %v1444 = vshrl.u32 %v1443, 7
        %v1445 = vsub.s32 %v1442, %v1444
        %v1446 = vrot.slane %v1438, %v1445
        %v1448 = vunpack.c.l.s4 1934713408
        %v1449 = vunpack.c.0.s8 %v1448
        %v1450 = vlaneseq
        %v1451 = vshrl.u32 %v1450, 7
        %v1452 = vsub.s32 %v1449, %v1451
        %v1453 = vrot.slane %v1439, %v1452
        %v1454 = vcombine.low %v1398, %v1414
        %v1455 = vcombine.high %v1398, %v1414
        %v1457 = vunpack.c.l.s4 1934713408
        %v1458 = vunpack.c.0.s8 %v1457
        %v1459 = vlaneseq
        %v1460 = vshrl.u32 %v1459, 7
        %v1461 = vsub.s32 %v1458, %v1460
        %v1462 = vrot.slane %v1454, %v1461
        %v1464 = vunpack.c.l.s4 1934713408
        %v1465 = vunpack.c.0.s8 %v1464
        %v1466 = vlaneseq
        %v1467 = vshrl.u32 %v1466, 7
        %v1468 = vsub.s32 %v1465, %v1467
        %v1469 = vrot.slane %v1455, %v1468
        %v1470 = vcombine.low %v1405, %v1421
        %v1471 = vcombine.high %v1405, %v1421
        %v1473 = vunpack.c.l.s4 1934713408
        %v1474 = vunpack.c.0.s8 %v1473
        %v1475 = vlaneseq
        %v1476 = vshrl.u32 %v1475, 7
        %v1477 = vsub.s32 %v1474, %v1476
        %v1478 = vrot.slane %v1470, %v1477
        %v1480 = vunpack.c.l.s4 1934713408
        %v1481 = vunpack.c.0.s8 %v1480
        %v1482 = vlaneseq
        %v1483 = vshrl.u32 %v1482, 7
        %v1484 = vsub.s32 %v1481, %v1483
        %v1485 = vrot.slane %v1471, %v1484
        %v1486 = vcombine.low %v1430, %v1462
        %v1487 = vcombine.high %v1430, %v1462
        %v1488 = vcombine.low %v1437, %v1469
        %v1489 = vcombine.high %v1437, %v1469
        %v1490 = vcombine.low %v1446, %v1478
        %v1491 = vcombine.high %v1446, %v1478
        %v1492 = vcombine.low %v1453, %v1485
        %v1493 = vcombine.high %v1453, %v1485
        %v1494 = vcombine.low %v1288, %v1298
        %v1495 = vcombine.high %v1288, %v1298
        %v1497 = vunpack.c.l.s4 1983009808
        %v1498 = vunpack.c.0.s8 %v1497
        %v1499 = vlaneseq
        %v1500 = vshrl.u32 %v1499, 7
        %v1501 = vsub.s32 %v1498, %v1500
        %v1502 = vrot.slane %v1494, %v1501
        %v1504 = vunpack.c.l.s4 1983009808
        %v1505 = vunpack.c.0.s8 %v1504
        %v1506 = vlaneseq
        %v1507 = vshrl.u32 %v1506, 7
        %v1508 = vsub.s32 %v1505, %v1507
        %v1509 = vrot.slane %v1495, %v1508
        %v1510 = vcombine.low %v1293, %v1303
        %v1511 = vcombine.high %v1293, %v1303
        %v1513 = vunpack.c.l.s4 1983009808
        %v1514 = vunpack.c.0.s8 %v1513
        %v1515 = vlaneseq
        %v1516 = vshrl.u32 %v1515, 7
        %v1517 = vsub.s32 %v1514, %v1516
        %v1518 = vrot.slane %v1510, %v1517
        %v1520 = vunpack.c.l.s4 1983009808
        %v1521 = vunpack.c.0.s8 %v1520
        %v1522 = vlaneseq
        %v1523 = vshrl.u32 %v1522, 7
        %v1524 = vsub.s32 %v1521, %v1523
        %v1525 = vrot.slane %v1511, %v1524
        %v1526 = vcombine.low %v1308, %v1318
        %v1527 = vcombine.high %v1308, %v1318
        %v1529 = vunpack.c.l.s4 1983009808
        %v1530 = vunpack.c.0.s8 %v1529
        %v1531 = vlaneseq
        %v1532 = vshrl.u32 %v1531, 7
        %v1533 = vsub.s32 %v1530, %v1532
        %v1534 = vrot.slane %v1526, %v1533
        %v1536 = vunpack.c.l.s4 1983009808
        %v1537 = vunpack.c.0.s8 %v1536
        %v1538 = vlaneseq
        %v1539 = vshrl.u32 %v1538, 7
        %v1540 = vsub.s32 %v1537, %v1539
        %v1541 = vrot.slane %v1527, %v1540
        %v1542 = vcombine.low %v1313, %v1323
        %v1543 = vcombine.high %v1313, %v1323
        %v1545 = vunpack.c.l.s4 1983009808
        %v1546 = vunpack.c.0.s8 %v1545
        %v1547 = vlaneseq
        %v1548 = vshrl.u32 %v1547, 7
        %v1549 = vsub.s32 %v1546, %v1548
        %v1550 = vrot.slane %v1542, %v1549
        %v1552 = vunpack.c.l.s4 1983009808
        %v1553 = vunpack.c.0.s8 %v1552
        %v1554 = vlaneseq
        %v1555 = vshrl.u32 %v1554, 7
        %v1556 = vsub.s32 %v1553, %v1555
        %v1557 = vrot.slane %v1543, %v1556
        %v1558 = vcombine.low %v1502, %v1518
        %v1559 = vcombine.high %v1502, %v1518
        %v1561 = vunpack.c.l.s4 1934713408
        %v1562 = vunpack.c.0.s8 %v1561
        %v1563 = vlaneseq
        %v1564 = vshrl.u32 %v1563, 7
        %v1565 = vsub.s32 %v1562, %v1564
        %v1566 = vrot.slane %v1558, %v1565
        %v1568 = vunpack.c.l.s4 1934713408
        %v1569 = vunpack.c.0.s8 %v1568
        %v1570 = vlaneseq
        %v1571 = vshrl.u32 %v1570, 7
        %v1572 = vsub.s32 %v1569, %v1571
        %v1573 = vrot.slane %v1559, %v1572
        %v1574 = vcombine.low %v1509, %v1525
        %v1575 = vcombine.high %v1509, %v1525
        %v1577 = vunpack.c.l.s4 1934713408
        %v1578 = vunpack.c.0.s8 %v1577
        %v1579 = vlaneseq
        %v1580 = vshrl.u32 %v1579, 7
        %v1581 = vsub.s32 %v1578, %v1580
        %v1582 = vrot.slane %v1574, %v1581
        %v1584 = vunpack.c.l.s4 1934713408
        %v1585 = vunpack.c.0.s8 %v1584
        %v1586 = vlaneseq
        %v1587 = vshrl.u32 %v1586, 7
        %v1588 = vsub.s32 %v1585, %v1587
        %v1589 = vrot.slane %v1575, %v1588
        %v1590 = vcombine.low %v1534, %v1550
        %v1591 = vcombine.high %v1534, %v1550
        %v1593 = vunpack.c.l.s4 1934713408
        %v1594 = vunpack.c.0.s8 %v1593
        %v1595 = vlaneseq
        %v1596 = vshrl.u32 %v1595, 7
        %v1597 = vsub.s32 %v1594, %v1596
        %v1598 = vrot.slane %v1590, %v1597
        %v1600 = vunpack.c.l.s4 1934713408
        %v1601 = vunpack.c.0.s8 %v1600
        %v1602 = vlaneseq
        %v1603 = vshrl.u32 %v1602, 7
        %v1604 = vsub.s32 %v1601, %v1603
        %v1605 = vrot.slane %v1591, %v1604
        %v1606 = vcombine.low %v1541, %v1557
        %v1607 = vcombine.high %v1541, %v1557
        %v1609 = vunpack.c.l.s4 1934713408
        %v1610 = vunpack.c.0.s8 %v1609
        %v1611 = vlaneseq
        %v1612 = vshrl.u32 %v1611, 7
        %v1613 = vsub.s32 %v1610, %v1612
        %v1614 = vrot.slane %v1606, %v1613
        %v1616 = vunpack.c.l.s4 1934713408
        %v1617 = vunpack.c.0.s8 %v1616
        %v1618 = vlaneseq
        %v1619 = vshrl.u32 %v1618, 7
        %v1620 = vsub.s32 %v1617, %v1619
        %v1621 = vrot.slane %v1607, %v1620
        %v1622 = vcombine.low %v1566, %v1598
        %v1623 = vcombine.high %v1566, %v1598
        %v1624 = vcombine.low %v1573, %v1605
        %v1625 = vcombine.high %v1573, %v1605
        %v1626 = vcombine.low %v1582, %v1614
        %v1627 = vcombine.high %v1582, %v1614
        %v1628 = vcombine.low %v1589, %v1621
        %v1629 = vcombine.high %v1589, %v1621
        %v1630 = vcombine.low %v1250, %v1260
        %v1631 = vcombine.high %v1250, %v1260
        %v1633 = vunpack.c.l.s4 1983009808
        %v1634 = vunpack.c.0.s8 %v1633
        %v1635 = vlaneseq
        %v1636 = vshrl.u32 %v1635, 7
        %v1637 = vsub.s32 %v1634, %v1636
        %v1638 = vrot.slane %v1630, %v1637
        %v1640 = vunpack.c.l.s4 1983009808
        %v1641 = vunpack.c.0.s8 %v1640
        %v1642 = vlaneseq
        %v1643 = vshrl.u32 %v1642, 7
        %v1644 = vsub.s32 %v1641, %v1643
        %v1645 = vrot.slane %v1631, %v1644
        %v1646 = vcombine.low %v1255, %v1265
        %v1647 = vcombine.high %v1255, %v1265
        %v1649 = vunpack.c.l.s4 1983009808
        %v1650 = vunpack.c.0.s8 %v1649
        %v1651 = vlaneseq
        %v1652 = vshrl.u32 %v1651, 7
        %v1653 = vsub.s32 %v1650, %v1652
        %v1654 = vrot.slane %v1646, %v1653
        %v1656 = vunpack.c.l.s4 1983009808
        %v1657 = vunpack.c.0.s8 %v1656
        %v1658 = vlaneseq
        %v1659 = vshrl.u32 %v1658, 7
        %v1660 = vsub.s32 %v1657, %v1659
        %v1661 = vrot.slane %v1647, %v1660
        %v1662 = vcombine.low %v1270, %v1280
        %v1663 = vcombine.high %v1270, %v1280
        %v1665 = vunpack.c.l.s4 1983009808
        %v1666 = vunpack.c.0.s8 %v1665
        %v1667 = vlaneseq
        %v1668 = vshrl.u32 %v1667, 7
        %v1669 = vsub.s32 %v1666, %v1668
        %v1670 = vrot.slane %v1662, %v1669
        %v1672 = vunpack.c.l.s4 1983009808
        %v1673 = vunpack.c.0.s8 %v1672
        %v1674 = vlaneseq
        %v1675 = vshrl.u32 %v1674, 7
        %v1676 = vsub.s32 %v1673, %v1675
        %v1677 = vrot.slane %v1663, %v1676
        %v1678 = vcombine.low %v1275, %v1285
        %v1679 = vcombine.high %v1275, %v1285
        %v1681 = vunpack.c.l.s4 1983009808
        %v1682 = vunpack.c.0.s8 %v1681
        %v1683 = vlaneseq
        %v1684 = vshrl.u32 %v1683, 7
        %v1685 = vsub.s32 %v1682, %v1684
        %v1686 = vrot.slane %v1678, %v1685
        %v1688 = vunpack.c.l.s4 1983009808
        %v1689 = vunpack.c.0.s8 %v1688
        %v1690 = vlaneseq
        %v1691 = vshrl.u32 %v1690, 7
        %v1692 = vsub.s32 %v1689, %v1691
        %v1693 = vrot.slane %v1679, %v1692
        %v1694 = vcombine.low %v1638, %v1654
        %v1695 = vcombine.high %v1638, %v1654
        %v1697 = vunpack.c.l.s4 1934713408
        %v1698 = vunpack.c.0.s8 %v1697
        %v1699 = vlaneseq
        %v1700 = vshrl.u32 %v1699, 7
        %v1701 = vsub.s32 %v1698, %v1700
        %v1702 = vrot.slane %v1694, %v1701
        %v1704 = vunpack.c.l.s4 1934713408
        %v1705 = vunpack.c.0.s8 %v1704
        %v1706 = vlaneseq
        %v1707 = vshrl.u32 %v1706, 7
        %v1708 = vsub.s32 %v1705, %v1707
        %v1709 = vrot.slane %v1695, %v1708
        %v1710 = vcombine.low %v1645, %v1661
        %v1711 = vcombine.high %v1645, %v1661
        %v1713 = vunpack.c.l.s4 1934713408
        %v1714 = vunpack.c.0.s8 %v1713
        %v1715 = vlaneseq
        %v1716 = vshrl.u32 %v1715, 7
        %v1717 = vsub.s32 %v1714, %v1716
        %v1718 = vrot.slane %v1710, %v1717
        %v1720 = vunpack.c.l.s4 1934713408
        %v1721 = vunpack.c.0.s8 %v1720
        %v1722 = vlaneseq
        %v1723 = vshrl.u32 %v1722, 7
        %v1724 = vsub.s32 %v1721, %v1723
        %v1725 = vrot.slane %v1711, %v1724
        %v1726 = vcombine.low %v1670, %v1686
        %v1727 = vcombine.high %v1670, %v1686
        %v1729 = vunpack.c.l.s4 1934713408
        %v1730 = vunpack.c.0.s8 %v1729
        %v1731 = vlaneseq
        %v1732 = vshrl.u32 %v1731, 7
        %v1733 = vsub.s32 %v1730, %v1732
        %v1734 = vrot.slane %v1726, %v1733
        %v1736 = vunpack.c.l.s4 1934713408
        %v1737 = vunpack.c.0.s8 %v1736
        %v1738 = vlaneseq
        %v1739 = vshrl.u32 %v1738, 7
        %v1740 = vsub.s32 %v1737, %v1739
        %v1741 = vrot.slane %v1727, %v1740
        %v1742 = vcombine.low %v1677, %v1693
        %v1743 = vcombine.high %v1677, %v1693
        %v1745 = vunpack.c.l.s4 1934713408
        %v1746 = vunpack.c.0.s8 %v1745
        %v1747 = vlaneseq
        %v1748 = vshrl.u32 %v1747, 7
        %v1749 = vsub.s32 %v1746, %v1748
        %v1750 = vrot.slane %v1742, %v1749
        %v1752 = vunpack.c.l.s4 1934713408
        %v1753 = vunpack.c.0.s8 %v1752
        %v1754 = vlaneseq
        %v1755 = vshrl.u32 %v1754, 7
        %v1756 = vsub.s32 %v1753, %v1755
        %v1757 = vrot.slane %v1743, %v1756
        %v1758 = vcombine.low %v1702, %v1734
        %v1759 = vcombine.high %v1702, %v1734
        %v1760 = vcombine.low %v1709, %v1741
        %v1761 = vcombine.high %v1709, %v1741
        %v1762 = vcombine.low %v1718, %v1750
        %v1763 = vcombine.high %v1718, %v1750
        %v1764 = vcombine.low %v1725, %v1757
        %v1765 = vcombine.high %v1725, %v1757
        %v1766 = vcombine.low %v1290, %v1300
        %v1767 = vcombine.high %v1290, %v1300
        %v1769 = vunpack.c.l.s4 1983009808
        %v1770 = vunpack.c.0.s8 %v1769
        %v1771 = vlaneseq
        %v1772 = vshrl.u32 %v1771, 7
        %v1773 = vsub.s32 %v1770, %v1772
        %v1774 = vrot.slane %v1766, %v1773
        %v1776 = vunpack.c.l.s4 1983009808
        %v1777 = vunpack.c.0.s8 %v1776
        %v1778 = vlaneseq
        %v1779 = vshrl.u32 %v1778, 7
        %v1780 = vsub.s32 %v1777, %v1779
        %v1781 = vrot.slane %v1767, %v1780
        %v1782 = vcombine.low %v1295, %v1305
        %v1783 = vcombine.high %v1295, %v1305
        %v1785 = vunpack.c.l.s4 1983009808
        %v1786 = vunpack.c.0.s8 %v1785
        %v1787 = vlaneseq
        %v1788 = vshrl.u32 %v1787, 7
        %v1789 = vsub.s32 %v1786, %v1788
        %v1790 = vrot.slane %v1782, %v1789
        %v1792 = vunpack.c.l.s4 1983009808
        %v1793 = vunpack.c.0.s8 %v1792
        %v1794 = vlaneseq
        %v1795 = vshrl.u32 %v1794, 7
        %v1796 = vsub.s32 %v1793, %v1795
        %v1797 = vrot.slane %v1783, %v1796
        %v1798 = vcombine.low %v1310, %v1320
        %v1799 = vcombine.high %v1310, %v1320
        %v1801 = vunpack.c.l.s4 1983009808
        %v1802 = vunpack.c.0.s8 %v1801
        %v1803 = vlaneseq
        %v1804 = vshrl.u32 %v1803, 7
        %v1805 = vsub.s32 %v1802, %v1804
        %v1806 = vrot.slane %v1798, %v1805
        %v1808 = vunpack.c.l.s4 1983009808
        %v1809 = vunpack.c.0.s8 %v1808
        %v1810 = vlaneseq
        %v1811 = vshrl.u32 %v1810, 7
        %v1812 = vsub.s32 %v1809, %v1811
        %v1813 = vrot.slane %v1799, %v1812
        %v1814 = vcombine.low %v1315, %v1325
        %v1815 = vcombine.high %v1315, %v1325
        %v1817 = vunpack.c.l.s4 1983009808
        %v1818 = vunpack.c.0.s8 %v1817
        %v1819 = vlaneseq
        %v1820 = vshrl.u32 %v1819, 7
        %v1821 = vsub.s32 %v1818, %v1820
        %v1822 = vrot.slane %v1814, %v1821
        %v1824 = vunpack.c.l.s4 1983009808
        %v1825 = vunpack.c.0.s8 %v1824
        %v1826 = vlaneseq
        %v1827 = vshrl.u32 %v1826, 7
        %v1828 = vsub.s32 %v1825, %v1827
        %v1829 = vrot.slane %v1815, %v1828
        %v1830 = vcombine.low %v1774, %v1790
        %v1831 = vcombine.high %v1774, %v1790
        %v1833 = vunpack.c.l.s4 1934713408
        %v1834 = vunpack.c.0.s8 %v1833
        %v1835 = vlaneseq
        %v1836 = vshrl.u32 %v1835, 7
        %v1837 = vsub.s32 %v1834, %v1836
        %v1838 = vrot.slane %v1830, %v1837
        %v1840 = vunpack.c.l.s4 1934713408
        %v1841 = vunpack.c.0.s8 %v1840
        %v1842 = vlaneseq
        %v1843 = vshrl.u32 %v1842, 7
        %v1844 = vsub.s32 %v1841, %v1843
        %v1845 = vrot.slane %v1831, %v1844
        %v1846 = vcombine.low %v1781, %v1797
        %v1847 = vcombine.high %v1781, %v1797
        %v1849 = vunpack.c.l.s4 1934713408
        %v1850 = vunpack.c.0.s8 %v1849
        %v1851 = vlaneseq
        %v1852 = vshrl.u32 %v1851, 7
        %v1853 = vsub.s32 %v1850, %v1852
        %v1854 = vrot.slane %v1846, %v1853
        %v1856 = vunpack.c.l.s4 1934713408
        %v1857 = vunpack.c.0.s8 %v1856
        %v1858 = vlaneseq
        %v1859 = vshrl.u32 %v1858, 7
        %v1860 = vsub.s32 %v1857, %v1859
        %v1861 = vrot.slane %v1847, %v1860
        %v1862 = vcombine.low %v1806, %v1822
        %v1863 = vcombine.high %v1806, %v1822
        %v1865 = vunpack.c.l.s4 1934713408
        %v1866 = vunpack.c.0.s8 %v1865
        %v1867 = vlaneseq
        %v1868 = vshrl.u32 %v1867, 7
        %v1869 = vsub.s32 %v1866, %v1868
        %v1870 = vrot.slane %v1862, %v1869
        %v1872 = vunpack.c.l.s4 1934713408
        %v1873 = vunpack.c.0.s8 %v1872
        %v1874 = vlaneseq
        %v1875 = vshrl.u32 %v1874, 7
        %v1876 = vsub.s32 %v1873, %v1875
        %v1877 = vrot.slane %v1863, %v1876
        %v1878 = vcombine.low %v1813, %v1829
        %v1879 = vcombine.high %v1813, %v1829
        %v1881 = vunpack.c.l.s4 1934713408
        %v1882 = vunpack.c.0.s8 %v1881
        %v1883 = vlaneseq
        %v1884 = vshrl.u32 %v1883, 7
        %v1885 = vsub.s32 %v1882, %v1884
        %v1886 = vrot.slane %v1878, %v1885
        %v1888 = vunpack.c.l.s4 1934713408
        %v1889 = vunpack.c.0.s8 %v1888
        %v1890 = vlaneseq
        %v1891 = vshrl.u32 %v1890, 7
        %v1892 = vsub.s32 %v1889, %v1891
        %v1893 = vrot.slane %v1879, %v1892
        %v1894 = vcombine.low %v1838, %v1870
        %v1895 = vcombine.high %v1838, %v1870
        %v1896 = vcombine.low %v1845, %v1877
        %v1897 = vcombine.high %v1845, %v1877
        %v1898 = vcombine.low %v1854, %v1886
        %v1899 = vcombine.high %v1854, %v1886
        %v1900 = vcombine.low %v1861, %v1893
        %v1901 = vcombine.high %v1861, %v1893
        %1904 = vrot.lane.b32.xlu0 %v1487, 3
        %v1905 = vpop.permute.xlu0 %1904
        %1906 = vrot.lane.b32.xlu0 %v1623, 3
        %v1907 = vpop.permute.xlu0 %1906
        %1912 = vrot.lane.b32.xlu0 %v1488, 6
        %v1913 = vpop.permute.xlu0 %1912
        %1914 = vrot.lane.b32.xlu0 %v1624, 6
        %v1915 = vpop.permute.xlu0 %1914
        %1920 = vrot.lane.b32.xlu0 %v1489, 9
        %v1921 = vpop.permute.xlu0 %1920
        %1922 = vrot.lane.b32.xlu0 %v1625, 9
        %v1923 = vpop.permute.xlu0 %1922
        %1928 = vrot.lane.b32.xlu0 %v1490, 12
        %v1929 = vpop.permute.xlu0 %1928
        %1930 = vrot.lane.b32.xlu0 %v1626, 12
        %v1931 = vpop.permute.xlu0 %1930
        %1936 = vrot.lane.b32.xlu0 %v1491, 15
        %v1937 = vpop.permute.xlu0 %1936
        %1938 = vrot.lane.b32.xlu0 %v1627, 15
        %v1939 = vpop.permute.xlu0 %1938
        %1944 = vrot.lane.b32.xlu0 %v1492, 18
        %v1945 = vpop.permute.xlu0 %1944
        %1946 = vrot.lane.b32.xlu0 %v1628, 18
        %v1947 = vpop.permute.xlu0 %1946
        %1952 = vrot.lane.b32.xlu0 %v1493, 21
        %v1953 = vpop.permute.xlu0 %1952
        %1954 = vrot.lane.b32.xlu0 %v1629, 21
        %v1955 = vpop.permute.xlu0 %1954
        %1960 = vrot.lane.b32.xlu0 %v1758, 24
        %v1961 = vpop.permute.xlu0 %1960
        %1962 = vrot.lane.b32.xlu0 %v1894, 24
        %v1963 = vpop.permute.xlu0 %1962
        %1968 = vrot.lane.b32.xlu0 %v1759, 27
        %v1969 = vpop.permute.xlu0 %1968
        %1970 = vrot.lane.b32.xlu0 %v1895, 27
        %v1971 = vpop.permute.xlu0 %1970
        %1976 = vrot.lane.b32.xlu0 %v1760, 30
        %v1977 = vpop.permute.xlu0 %1976
        %1978 = vrot.lane.b32.xlu0 %v1896, 30
        %v1979 = vpop.permute.xlu0 %1978
        %1984 = vrot.lane.b32.xlu0 %v1761, 33
        %v1985 = vpop.permute.xlu0 %1984
        %1986 = vrot.lane.b32.xlu0 %v1897, 33
        %v1987 = vpop.permute.xlu0 %1986
        %1992 = vrot.lane.b32.xlu0 %v1762, 36
        %v1993 = vpop.permute.xlu0 %1992
        %1994 = vrot.lane.b32.xlu0 %v1898, 36
        %v1995 = vpop.permute.xlu0 %1994
        %2000 = vrot.lane.b32.xlu0 %v1763, 39
        %v2001 = vpop.permute.xlu0 %2000
        %2002 = vrot.lane.b32.xlu0 %v1899, 39
        %v2003 = vpop.permute.xlu0 %2002
        %2008 = vrot.lane.b32.xlu0 %v1764, 42
        %v2009 = vpop.permute.xlu0 %2008
        %2010 = vrot.lane.b32.xlu0 %v1900, 42
        %v2011 = vpop.permute.xlu0 %2010
        %2016 = vrot.lane.b32.xlu0 %v1765, 45
        %v2017 = vpop.permute.xlu0 %2016
        %2018 = vrot.lane.b32.xlu0 %v1901, 45
        %v2019 = vpop.permute.xlu0 %2018
        %v2022 = vsel %vm1153, %v1486, %v1905
        %v2023 = vsel %vm1153, %v1622, %v1907
        %v2024 = vsel %vm1156, %v2022, %v1913
        %v2025 = vsel %vm1156, %v2023, %v1915
        %v2026 = vsel %vm1159, %v2024, %v1921
        %v2027 = vsel %vm1159, %v2025, %v1923
        %v2028 = vsel %vm1162, %v2026, %v1929
        %v2029 = vsel %vm1162, %v2027, %v1931
        %v2030 = vsel %vm1165, %v2028, %v1937
        %v2031 = vsel %vm1165, %v2029, %v1939
        %v2032 = vsel %vm1168, %v2030, %v1945
        %v2033 = vsel %vm1168, %v2031, %v1947
        %v2034 = vsel %vm1171, %v2032, %v1953
        %v2035 = vsel %vm1171, %v2033, %v1955
        %v2036 = vsel %vm1174, %v2034, %v1961
        %v2037 = vsel %vm1174, %v2035, %v1963
        %v2038 = vsel %vm1177, %v2036, %v1969
        %v2039 = vsel %vm1177, %v2037, %v1971
        %v2040 = vsel %vm1180, %v2038, %v1977
        %v2041 = vsel %vm1180, %v2039, %v1979
        %v2042 = vsel %vm1183, %v2040, %v1985
        %v2043 = vsel %vm1183, %v2041, %v1987
        %v2044 = vsel %vm1186, %v2042, %v1993
        %v2045 = vsel %vm1186, %v2043, %v1995
        %v2046 = vsel %vm1189, %v2044, %v2001
        %v2047 = vsel %vm1189, %v2045, %v2003
        %v2048 = vsel %vm1192, %v2046, %v2009
        %v2049 = vsel %vm1192, %v2047, %v2011
        %v2050 = vsel %vm1195, %v2048, %v2017
        %v2051 = vsel %vm1195, %v2049, %v2019
        %v2052 = vsub.f32 %v1196, %v2050
        %v2053 = vsub.f32 %v1197, %v2051
        %s2054 = sld [smem:[#allocation2]]
        %v2055 = vmul.f32 %v2052, %v2052
        %v2056 = vmul.f32 %v2053, %v2053
        %vm2057 = vcmask 392192
        %v2058 = vsel %vm2057, %v2055, 0.0
        %v2059 = vsel %vm2057, %v2056, 0.0
        %v2060 = vadd.f32 %v2058, %v2059
        %2061 = vadd.xlane.f32.xlu0 %v2060
        %v2062 = vpop.xlane.xlu0 %2061
        %v2063 = vrot.slane %v2062, 4
        %v2064 = vadd.f32 %v2062, %v2063
        %v2065 = vrot.slane %v2064, 2
        %v2066 = vadd.f32 %v2064, %v2065
        %v2067 = vrot.slane %v2066, 1
        %v2068 = vadd.f32 %v2066, %v2067
        %s2069 = vtos %v2068
        %s2070 = sadd.f32 %s2054, %s2069
        %s2071 = scalar_lea.smem [#allocation2], 0
        %2072 = sst [smem:[%s2071]] %s2070
        %vm2075 = vcmask 1040384
        %v2076 = vrot.slane %v1196, 7
        %v2077 = vrot.slane %v1197, 7
        %v2078 = vsel %vm2075, %v2076, %v2077
        %v2081 = vsub.f32 %v1196, %v2076
        %v2082 = vsub.f32 %v1197, %v2078
        %2083 = vrot.lane.b32.xlu0 %v1196, 3
        %v2084 = vpop.permute.xlu0 %2083
        %2085 = vrot.lane.b32.xlu0 %v1197, 3
        %v2086 = vpop.permute.xlu0 %2085
        %v2089 = vsub.f32 %v1196, %v2084
        %v2090 = vsub.f32 %v1197, %v2086
        %s2091 = sld [smem:[#allocation2 + $0x1]]
        %v2092 = vmul.f32 %v2081, %v2081
        %v2093 = vmul.f32 %v2082, %v2082
        %v2096 = vrot.slane %v2092, 1
        %v2097 = vrot.slane %v2093, 1
        %v2098 = vsel %vm376, %v2096, %v2097
        %v2101 = vsel %vm2057, %v2098, 0.0
        %vm2102 = vcmask 391168
        %v2103 = vsel %vm2102, %v2097, 0.0
        %v2104 = vadd.f32 %v2101, %v2103
        %2105 = vadd.xlane.f32.xlu0 %v2104
        %v2106 = vpop.xlane.xlu0 %2105
        %v2107 = vrot.slane %v2106, 4
        %v2108 = vadd.f32 %v2106, %v2107
        %v2109 = vrot.slane %v2108, 2
        %v2110 = vadd.f32 %v2108, %v2109
        %v2111 = vrot.slane %v2110, 1
        %v2112 = vadd.f32 %v2110, %v2111
        %s2113 = vtos %v2112
        %s2114 = sadd.f32 %s2091, %s2113
        %s2115 = scalar_lea.smem [#allocation2], 1
        %2116 = sst [smem:[%s2115]] %s2114
        %s2117 = sld [smem:[#allocation2 + $0x2]]
        %v2118 = vmul.f32 %v2089, %v2089
        %v2119 = vmul.f32 %v2090, %v2090
        %2122 = vrot.lane.b32.xlu0 %v2118, 125
        %v2123 = vpop.permute.xlu0 %2122
        %2124 = vrot.lane.b32.xlu0 %v2119, 125
        %v2125 = vpop.permute.xlu0 %2124
        %v2128 = vsel %vm1195, %v2123, 0.0
        %v2129 = vsel %vm1195, %v2125, 0.0
        %v2130 = vadd.f32 %v2128, %v2129
        %2131 = vadd.xlane.f32.xlu0 %v2130
        %v2132 = vpop.xlane.xlu0 %2131
        %v2133 = vrot.slane %v2132, 4
        %v2134 = vadd.f32 %v2132, %v2133
        %v2135 = vrot.slane %v2134, 2
        %v2136 = vadd.f32 %v2134, %v2135
        %v2137 = vrot.slane %v2136, 1
        %v2138 = vadd.f32 %v2136, %v2137
        %s2139 = vtos %v2138
        %s2140 = sadd.f32 %s2117, %s2139
        %s2141 = scalar_lea.smem [#allocation2], 2
        %2142 = sst [smem:[%s2141]] %s2140
        %s2143 = sld [smem:[#allocation2 + $0x4]]
        %v2144 = vsel %vm2057, %v1196, -inf
        %v2145 = vsel %vm2057, %v1197, -inf
        %v2146 = vmax.f32 %v2144, %v2145
        %2147 = vmax.xlane.f32.xlu0 %v2146
        %v2148 = vpop.xlane.xlu0 %2147
        %v2149 = vrot.slane %v2148, 4
        %v2150 = vmax.f32 %v2148, %v2149
        %v2151 = vrot.slane %v2150, 2
        %v2152 = vmax.f32 %v2150, %v2151
        %v2153 = vrot.slane %v2152, 1
        %v2154 = vmax.f32 %v2152, %v2153
        %s2155 = vtos %v2154
        %s2156 = smax.f32 %s2143, %s2155
        %s2157 = scalar_lea.smem [#allocation2], 4
        %2158 = sst [smem:[%s2157]] %s2156
        %s2159 = sld [smem:[#allocation2 + $0x5]]
        %v2160 = vsel %vm2057, %v2050, -inf
        %v2161 = vsel %vm2057, %v2051, -inf
        %v2162 = vmax.f32 %v2160, %v2161
        %2163 = vmax.xlane.f32.xlu0 %v2162
        %v2164 = vpop.xlane.xlu0 %2163
        %v2165 = vrot.slane %v2164, 4
        %v2166 = vmax.f32 %v2164, %v2165
        %v2167 = vrot.slane %v2166, 2
        %v2168 = vmax.f32 %v2166, %v2167
        %v2169 = vrot.slane %v2168, 1
        %v2170 = vmax.f32 %v2168, %v2169
        %s2171 = vtos %v2170
        %s2172 = smax.f32 %s2159, %s2171
        %s2173 = scalar_lea.smem [#allocation2], 5
        %2174 = sst [smem:[%s2173]] %s2172
        %v2178 = vrot.slane %v220, 1
        %v2179 = vrot.slane %v221, 1
        %v2180 = vsel %vm376, %v2178, %v2179
        %v2181 = vrot.slane %v222, 1
        %v2182 = vsel %vm376, %v2179, %v2181
        %vm2183 = vcmask 1045504
        %v2184 = vrot.slane %v220, 2
        %v2185 = vrot.slane %v221, 2
        %v2186 = vsel %vm2183, %v2184, %v2185
        %v2187 = vrot.slane %v222, 2
        %v2188 = vsel %vm2183, %v2185, %v2187
        %v2189 = vrot.slane %v223, 2
        %v2190 = vrot.slane %v224, 2
        %v2191 = vsel %vm2183, %v2189, %v2190
        %v2192 = vrot.slane %v225, 2
        %v2193 = vsel %vm2183, %v2190, %v2192
        %v2194 = vrot.slane %v226, 2
        %v2195 = vrot.slane %v227, 2
        %v2196 = vsel %vm2183, %v2194, %v2195
        %v2197 = vrot.slane %v228, 2
        %v2198 = vsel %vm2183, %v2195, %v2197
        %v2199 = vrot.slane %v229, 2
        %v2200 = vrot.slane %v230, 2
        %v2201 = vsel %vm2183, %v2199, %v2200
        %v2202 = vrot.slane %v231, 2
        %v2203 = vsel %vm2183, %v2200, %v2202
        %v2204 = vrot.slane %v232, 2
        %v2205 = vrot.slane %v233, 2
        %v2206 = vsel %vm2183, %v2204, %v2205
        %v2207 = vrot.slane %v234, 2
        %v2208 = vsel %vm2183, %v2205, %v2207
        %v2209 = vrot.slane %v235, 2
        %v2210 = vrot.slane %v236, 2
        %v2211 = vsel %vm2183, %v2209, %v2210
        %v2212 = vrot.slane %v237, 2
        %v2213 = vsel %vm2183, %v2210, %v2212
        %v2214 = vrot.slane %v238, 2
        %v2215 = vrot.slane %v239, 2
        %v2216 = vsel %vm2183, %v2214, %v2215
        %v2217 = vrot.slane %v240, 2
        %v2218 = vsel %vm2183, %v2215, %v2217
        %v2219 = vrot.slane %v241, 2
        %v2220 = vrot.slane %v242, 2
        %v2221 = vsel %vm2183, %v2219, %v2220
        %v2222 = vrot.slane %v243, 2
        %v2223 = vsel %vm2183, %v2220, %v2222
        %v2224 = vrot.slane %v244, 2
        %v2225 = vrot.slane %v245, 2
        %v2226 = vsel %vm2183, %v2224, %v2225
        %v2227 = vrot.slane %v246, 2
        %v2228 = vsel %vm2183, %v2225, %v2227
        %v2229 = vrot.slane %v247, 2
        %v2230 = vrot.slane %v248, 2
        %v2231 = vsel %vm2183, %v2229, %v2230
        %v2232 = vrot.slane %v249, 2
        %v2233 = vsel %vm2183, %v2230, %v2232
        %v2234 = vrot.slane %v250, 2
        %v2235 = vrot.slane %v251, 2
        %v2236 = vsel %vm2183, %v2234, %v2235
        %v2237 = vrot.slane %v252, 2
        %v2238 = vsel %vm2183, %v2235, %v2237
        %v2239 = vrot.slane %v253, 2
        %v2240 = vrot.slane %v254, 2
        %v2241 = vsel %vm2183, %v2239, %v2240
        %v2242 = vrot.slane %v255, 2
        %v2243 = vsel %vm2183, %v2240, %v2242
        %v2244 = vrot.slane %v256, 2
        %v2245 = vrot.slane %v257, 2
        %v2246 = vsel %vm2183, %v2244, %v2245
        %v2247 = vrot.slane %v258, 2
        %v2248 = vsel %vm2183, %v2245, %v2247
        %v2249 = vrot.slane %v259, 2
        %v2250 = vrot.slane %v260, 2
        %v2251 = vsel %vm2183, %v2249, %v2250
        %v2252 = vrot.slane %v261, 2
        %v2253 = vsel %vm2183, %v2250, %v2252
        %v2254 = vrot.slane %v262, 2
        %v2255 = vrot.slane %v263, 2
        %v2256 = vsel %vm2183, %v2254, %v2255
        %v2257 = vrot.slane %v264, 2
        %v2258 = vsel %vm2183, %v2255, %v2257
        %v2259 = vrot.slane %v265, 2
        %v2260 = vrot.slane %v266, 2
        %v2261 = vsel %vm2183, %v2259, %v2260
        %v2262 = vrot.slane %v267, 2
        %v2263 = vsel %vm2183, %v2260, %v2262
        %v2264 = vrot.slane %v268, 2
        %v2265 = vrot.slane %v269, 2
        %v2266 = vsel %vm2183, %v2264, %v2265
        %v2267 = vrot.slane %v270, 2
        %v2268 = vsel %vm2183, %v2265, %v2267
        %v2272 = vrot.slane %v271, 1
        %v2273 = vrot.slane %v272, 1
        %v2274 = vsel %vm376, %v2272, %v2273
        %v2275 = vrot.slane %v273, 1
        %v2276 = vsel %vm376, %v2273, %v2275
        %v2277 = vrot.slane %v271, 2
        %v2278 = vrot.slane %v272, 2
        %v2279 = vsel %vm2183, %v2277, %v2278
        %v2280 = vrot.slane %v273, 2
        %v2281 = vsel %vm2183, %v2278, %v2280
        %2282 = vrot.lane.b32.xlu0 %v2180, 3
        %v2283 = vpop.permute.xlu0 %2282
        %2284 = vrot.lane.b32.xlu0 %v2182, 3
        %v2285 = vpop.permute.xlu0 %2284
        %2286 = vrot.lane.b32.xlu0 %v379, 3
        %v2287 = vpop.permute.xlu0 %2286
        %2288 = vrot.lane.b32.xlu0 %v381, 3
        %v2289 = vpop.permute.xlu0 %2288
        %2290 = vrot.lane.b32.xlu0 %v384, 3
        %v2291 = vpop.permute.xlu0 %2290
        %2292 = vrot.lane.b32.xlu0 %v386, 3
        %v2293 = vpop.permute.xlu0 %2292
        %2294 = vrot.lane.b32.xlu0 %v389, 3
        %v2295 = vpop.permute.xlu0 %2294
        %2296 = vrot.lane.b32.xlu0 %v391, 3
        %v2297 = vpop.permute.xlu0 %2296
        %2298 = vrot.lane.b32.xlu0 %v394, 3
        %v2299 = vpop.permute.xlu0 %2298
        %2300 = vrot.lane.b32.xlu0 %v396, 3
        %v2301 = vpop.permute.xlu0 %2300
        %2302 = vrot.lane.b32.xlu0 %v399, 3
        %v2303 = vpop.permute.xlu0 %2302
        %2304 = vrot.lane.b32.xlu0 %v401, 3
        %v2305 = vpop.permute.xlu0 %2304
        %2306 = vrot.lane.b32.xlu0 %v404, 3
        %v2307 = vpop.permute.xlu0 %2306
        %2308 = vrot.lane.b32.xlu0 %v406, 3
        %v2309 = vpop.permute.xlu0 %2308
        %2310 = vrot.lane.b32.xlu0 %v409, 3
        %v2311 = vpop.permute.xlu0 %2310
        %2312 = vrot.lane.b32.xlu0 %v411, 3
        %v2313 = vpop.permute.xlu0 %2312
        %2314 = vrot.lane.b32.xlu0 %v414, 3
        %v2315 = vpop.permute.xlu0 %2314
        %2316 = vrot.lane.b32.xlu0 %v416, 3
        %v2317 = vpop.permute.xlu0 %2316
        %2318 = vrot.lane.b32.xlu0 %v419, 3
        %v2319 = vpop.permute.xlu0 %2318
        %2320 = vrot.lane.b32.xlu0 %v421, 3
        %v2321 = vpop.permute.xlu0 %2320
        %2322 = vrot.lane.b32.xlu0 %v424, 3
        %v2323 = vpop.permute.xlu0 %2322
        %2324 = vrot.lane.b32.xlu0 %v426, 3
        %v2325 = vpop.permute.xlu0 %2324
        %2326 = vrot.lane.b32.xlu0 %v429, 3
        %v2327 = vpop.permute.xlu0 %2326
        %2328 = vrot.lane.b32.xlu0 %v431, 3
        %v2329 = vpop.permute.xlu0 %2328
        %2330 = vrot.lane.b32.xlu0 %v434, 3
        %v2331 = vpop.permute.xlu0 %2330
        %2332 = vrot.lane.b32.xlu0 %v436, 3
        %v2333 = vpop.permute.xlu0 %2332
        %2334 = vrot.lane.b32.xlu0 %v439, 3
        %v2335 = vpop.permute.xlu0 %2334
        %2336 = vrot.lane.b32.xlu0 %v441, 3
        %v2337 = vpop.permute.xlu0 %2336
        %2338 = vrot.lane.b32.xlu0 %v444, 3
        %v2339 = vpop.permute.xlu0 %2338
        %2340 = vrot.lane.b32.xlu0 %v446, 3
        %v2341 = vpop.permute.xlu0 %2340
        %2342 = vrot.lane.b32.xlu0 %v449, 3
        %v2343 = vpop.permute.xlu0 %2342
        %2344 = vrot.lane.b32.xlu0 %v451, 3
        %v2345 = vpop.permute.xlu0 %2344
        %2378 = vrot.lane.b32.xlu0 %v2186, 6
        %v2379 = vpop.permute.xlu0 %2378
        %2380 = vrot.lane.b32.xlu0 %v2188, 6
        %v2381 = vpop.permute.xlu0 %2380
        %2382 = vrot.lane.b32.xlu0 %v2191, 6
        %v2383 = vpop.permute.xlu0 %2382
        %2384 = vrot.lane.b32.xlu0 %v2193, 6
        %v2385 = vpop.permute.xlu0 %2384
        %2386 = vrot.lane.b32.xlu0 %v2196, 6
        %v2387 = vpop.permute.xlu0 %2386
        %2388 = vrot.lane.b32.xlu0 %v2198, 6
        %v2389 = vpop.permute.xlu0 %2388
        %2390 = vrot.lane.b32.xlu0 %v2201, 6
        %v2391 = vpop.permute.xlu0 %2390
        %2392 = vrot.lane.b32.xlu0 %v2203, 6
        %v2393 = vpop.permute.xlu0 %2392
        %2394 = vrot.lane.b32.xlu0 %v2206, 6
        %v2395 = vpop.permute.xlu0 %2394
        %2396 = vrot.lane.b32.xlu0 %v2208, 6
        %v2397 = vpop.permute.xlu0 %2396
        %2398 = vrot.lane.b32.xlu0 %v2211, 6
        %v2399 = vpop.permute.xlu0 %2398
        %2400 = vrot.lane.b32.xlu0 %v2213, 6
        %v2401 = vpop.permute.xlu0 %2400
        %2402 = vrot.lane.b32.xlu0 %v2216, 6
        %v2403 = vpop.permute.xlu0 %2402
        %2404 = vrot.lane.b32.xlu0 %v2218, 6
        %v2405 = vpop.permute.xlu0 %2404
        %2406 = vrot.lane.b32.xlu0 %v2221, 6
        %v2407 = vpop.permute.xlu0 %2406
        %2408 = vrot.lane.b32.xlu0 %v2223, 6
        %v2409 = vpop.permute.xlu0 %2408
        %2410 = vrot.lane.b32.xlu0 %v2226, 6
        %v2411 = vpop.permute.xlu0 %2410
        %2412 = vrot.lane.b32.xlu0 %v2228, 6
        %v2413 = vpop.permute.xlu0 %2412
        %2414 = vrot.lane.b32.xlu0 %v2231, 6
        %v2415 = vpop.permute.xlu0 %2414
        %2416 = vrot.lane.b32.xlu0 %v2233, 6
        %v2417 = vpop.permute.xlu0 %2416
        %2418 = vrot.lane.b32.xlu0 %v2236, 6
        %v2419 = vpop.permute.xlu0 %2418
        %2420 = vrot.lane.b32.xlu0 %v2238, 6
        %v2421 = vpop.permute.xlu0 %2420
        %2422 = vrot.lane.b32.xlu0 %v2241, 6
        %v2423 = vpop.permute.xlu0 %2422
        %2424 = vrot.lane.b32.xlu0 %v2243, 6
        %v2425 = vpop.permute.xlu0 %2424
        %2426 = vrot.lane.b32.xlu0 %v2246, 6
        %v2427 = vpop.permute.xlu0 %2426
        %2428 = vrot.lane.b32.xlu0 %v2248, 6
        %v2429 = vpop.permute.xlu0 %2428
        %2430 = vrot.lane.b32.xlu0 %v2251, 6
        %v2431 = vpop.permute.xlu0 %2430
        %2432 = vrot.lane.b32.xlu0 %v2253, 6
        %v2433 = vpop.permute.xlu0 %2432
        %2434 = vrot.lane.b32.xlu0 %v2256, 6
        %v2435 = vpop.permute.xlu0 %2434
        %2436 = vrot.lane.b32.xlu0 %v2258, 6
        %v2437 = vpop.permute.xlu0 %2436
        %2438 = vrot.lane.b32.xlu0 %v2261, 6
        %v2439 = vpop.permute.xlu0 %2438
        %2440 = vrot.lane.b32.xlu0 %v2263, 6
        %v2441 = vpop.permute.xlu0 %2440
        %2474 = vrot.lane.b32.xlu0 %v223, 9
        %v2475 = vpop.permute.xlu0 %2474
        %2476 = vrot.lane.b32.xlu0 %v224, 9
        %v2477 = vpop.permute.xlu0 %2476
        %2478 = vrot.lane.b32.xlu0 %v226, 9
        %v2479 = vpop.permute.xlu0 %2478
        %2480 = vrot.lane.b32.xlu0 %v227, 9
        %v2481 = vpop.permute.xlu0 %2480
        %2482 = vrot.lane.b32.xlu0 %v229, 9
        %v2483 = vpop.permute.xlu0 %2482
        %2484 = vrot.lane.b32.xlu0 %v230, 9
        %v2485 = vpop.permute.xlu0 %2484
        %2486 = vrot.lane.b32.xlu0 %v232, 9
        %v2487 = vpop.permute.xlu0 %2486
        %2488 = vrot.lane.b32.xlu0 %v233, 9
        %v2489 = vpop.permute.xlu0 %2488
        %2490 = vrot.lane.b32.xlu0 %v235, 9
        %v2491 = vpop.permute.xlu0 %2490
        %2492 = vrot.lane.b32.xlu0 %v236, 9
        %v2493 = vpop.permute.xlu0 %2492
        %2494 = vrot.lane.b32.xlu0 %v238, 9
        %v2495 = vpop.permute.xlu0 %2494
        %2496 = vrot.lane.b32.xlu0 %v239, 9
        %v2497 = vpop.permute.xlu0 %2496
        %2498 = vrot.lane.b32.xlu0 %v241, 9
        %v2499 = vpop.permute.xlu0 %2498
        %2500 = vrot.lane.b32.xlu0 %v242, 9
        %v2501 = vpop.permute.xlu0 %2500
        %2502 = vrot.lane.b32.xlu0 %v244, 9
        %v2503 = vpop.permute.xlu0 %2502
        %2504 = vrot.lane.b32.xlu0 %v245, 9
        %v2505 = vpop.permute.xlu0 %2504
        %2506 = vrot.lane.b32.xlu0 %v247, 9
        %v2507 = vpop.permute.xlu0 %2506
        %2508 = vrot.lane.b32.xlu0 %v248, 9
        %v2509 = vpop.permute.xlu0 %2508
        %2510 = vrot.lane.b32.xlu0 %v250, 9
        %v2511 = vpop.permute.xlu0 %2510
        %2512 = vrot.lane.b32.xlu0 %v251, 9
        %v2513 = vpop.permute.xlu0 %2512
        %2514 = vrot.lane.b32.xlu0 %v253, 9
        %v2515 = vpop.permute.xlu0 %2514
        %2516 = vrot.lane.b32.xlu0 %v254, 9
        %v2517 = vpop.permute.xlu0 %2516
        %2518 = vrot.lane.b32.xlu0 %v256, 9
        %v2519 = vpop.permute.xlu0 %2518
        %2520 = vrot.lane.b32.xlu0 %v257, 9
        %v2521 = vpop.permute.xlu0 %2520
        %2522 = vrot.lane.b32.xlu0 %v259, 9
        %v2523 = vpop.permute.xlu0 %2522
        %2524 = vrot.lane.b32.xlu0 %v260, 9
        %v2525 = vpop.permute.xlu0 %2524
        %2526 = vrot.lane.b32.xlu0 %v262, 9
        %v2527 = vpop.permute.xlu0 %2526
        %2528 = vrot.lane.b32.xlu0 %v263, 9
        %v2529 = vpop.permute.xlu0 %2528
        %2530 = vrot.lane.b32.xlu0 %v265, 9
        %v2531 = vpop.permute.xlu0 %2530
        %2532 = vrot.lane.b32.xlu0 %v266, 9
        %v2533 = vpop.permute.xlu0 %2532
        %2534 = vrot.lane.b32.xlu0 %v268, 9
        %v2535 = vpop.permute.xlu0 %2534
        %2536 = vrot.lane.b32.xlu0 %v269, 9
        %v2537 = vpop.permute.xlu0 %2536
        %2570 = vrot.lane.b32.xlu0 %v379, 12
        %v2571 = vpop.permute.xlu0 %2570
        %2572 = vrot.lane.b32.xlu0 %v381, 12
        %v2573 = vpop.permute.xlu0 %2572
        %2574 = vrot.lane.b32.xlu0 %v384, 12
        %v2575 = vpop.permute.xlu0 %2574
        %2576 = vrot.lane.b32.xlu0 %v386, 12
        %v2577 = vpop.permute.xlu0 %2576
        %2578 = vrot.lane.b32.xlu0 %v389, 12
        %v2579 = vpop.permute.xlu0 %2578
        %2580 = vrot.lane.b32.xlu0 %v391, 12
        %v2581 = vpop.permute.xlu0 %2580
        %2582 = vrot.lane.b32.xlu0 %v394, 12
        %v2583 = vpop.permute.xlu0 %2582
        %2584 = vrot.lane.b32.xlu0 %v396, 12
        %v2585 = vpop.permute.xlu0 %2584
        %2586 = vrot.lane.b32.xlu0 %v399, 12
        %v2587 = vpop.permute.xlu0 %2586
        %2588 = vrot.lane.b32.xlu0 %v401, 12
        %v2589 = vpop.permute.xlu0 %2588
        %2590 = vrot.lane.b32.xlu0 %v404, 12
        %v2591 = vpop.permute.xlu0 %2590
        %2592 = vrot.lane.b32.xlu0 %v406, 12
        %v2593 = vpop.permute.xlu0 %2592
        %2594 = vrot.lane.b32.xlu0 %v409, 12
        %v2595 = vpop.permute.xlu0 %2594
        %2596 = vrot.lane.b32.xlu0 %v411, 12
        %v2597 = vpop.permute.xlu0 %2596
        %2598 = vrot.lane.b32.xlu0 %v414, 12
        %v2599 = vpop.permute.xlu0 %2598
        %2600 = vrot.lane.b32.xlu0 %v416, 12
        %v2601 = vpop.permute.xlu0 %2600
        %2602 = vrot.lane.b32.xlu0 %v419, 12
        %v2603 = vpop.permute.xlu0 %2602
        %2604 = vrot.lane.b32.xlu0 %v421, 12
        %v2605 = vpop.permute.xlu0 %2604
        %2606 = vrot.lane.b32.xlu0 %v424, 12
        %v2607 = vpop.permute.xlu0 %2606
        %2608 = vrot.lane.b32.xlu0 %v426, 12
        %v2609 = vpop.permute.xlu0 %2608
        %2610 = vrot.lane.b32.xlu0 %v429, 12
        %v2611 = vpop.permute.xlu0 %2610
        %2612 = vrot.lane.b32.xlu0 %v431, 12
        %v2613 = vpop.permute.xlu0 %2612
        %2614 = vrot.lane.b32.xlu0 %v434, 12
        %v2615 = vpop.permute.xlu0 %2614
        %2616 = vrot.lane.b32.xlu0 %v436, 12
        %v2617 = vpop.permute.xlu0 %2616
        %2618 = vrot.lane.b32.xlu0 %v439, 12
        %v2619 = vpop.permute.xlu0 %2618
        %2620 = vrot.lane.b32.xlu0 %v441, 12
        %v2621 = vpop.permute.xlu0 %2620
        %2622 = vrot.lane.b32.xlu0 %v444, 12
        %v2623 = vpop.permute.xlu0 %2622
        %2624 = vrot.lane.b32.xlu0 %v446, 12
        %v2625 = vpop.permute.xlu0 %2624
        %2626 = vrot.lane.b32.xlu0 %v449, 12
        %v2627 = vpop.permute.xlu0 %2626
        %2628 = vrot.lane.b32.xlu0 %v451, 12
        %v2629 = vpop.permute.xlu0 %2628
        %2630 = vrot.lane.b32.xlu0 %v454, 12
        %v2631 = vpop.permute.xlu0 %2630
        %2632 = vrot.lane.b32.xlu0 %v456, 12
        %v2633 = vpop.permute.xlu0 %2632
        %2666 = vrot.lane.b32.xlu0 %v2191, 15
        %v2667 = vpop.permute.xlu0 %2666
        %2668 = vrot.lane.b32.xlu0 %v2193, 15
        %v2669 = vpop.permute.xlu0 %2668
        %2670 = vrot.lane.b32.xlu0 %v2196, 15
        %v2671 = vpop.permute.xlu0 %2670
        %2672 = vrot.lane.b32.xlu0 %v2198, 15
        %v2673 = vpop.permute.xlu0 %2672
        %2674 = vrot.lane.b32.xlu0 %v2201, 15
        %v2675 = vpop.permute.xlu0 %2674
        %2676 = vrot.lane.b32.xlu0 %v2203, 15
        %v2677 = vpop.permute.xlu0 %2676
        %2678 = vrot.lane.b32.xlu0 %v2206, 15
        %v2679 = vpop.permute.xlu0 %2678
        %2680 = vrot.lane.b32.xlu0 %v2208, 15
        %v2681 = vpop.permute.xlu0 %2680
        %2682 = vrot.lane.b32.xlu0 %v2211, 15
        %v2683 = vpop.permute.xlu0 %2682
        %2684 = vrot.lane.b32.xlu0 %v2213, 15
        %v2685 = vpop.permute.xlu0 %2684
        %2686 = vrot.lane.b32.xlu0 %v2216, 15
        %v2687 = vpop.permute.xlu0 %2686
        %2688 = vrot.lane.b32.xlu0 %v2218, 15
        %v2689 = vpop.permute.xlu0 %2688
        %2690 = vrot.lane.b32.xlu0 %v2221, 15
        %v2691 = vpop.permute.xlu0 %2690
        %2692 = vrot.lane.b32.xlu0 %v2223, 15
        %v2693 = vpop.permute.xlu0 %2692
        %2694 = vrot.lane.b32.xlu0 %v2226, 15
        %v2695 = vpop.permute.xlu0 %2694
        %2696 = vrot.lane.b32.xlu0 %v2228, 15
        %v2697 = vpop.permute.xlu0 %2696
        %2698 = vrot.lane.b32.xlu0 %v2231, 15
        %v2699 = vpop.permute.xlu0 %2698
        %2700 = vrot.lane.b32.xlu0 %v2233, 15
        %v2701 = vpop.permute.xlu0 %2700
        %2702 = vrot.lane.b32.xlu0 %v2236, 15
        %v2703 = vpop.permute.xlu0 %2702
        %2704 = vrot.lane.b32.xlu0 %v2238, 15
        %v2705 = vpop.permute.xlu0 %2704
        %2706 = vrot.lane.b32.xlu0 %v2241, 15
        %v2707 = vpop.permute.xlu0 %2706
        %2708 = vrot.lane.b32.xlu0 %v2243, 15
        %v2709 = vpop.permute.xlu0 %2708
        %2710 = vrot.lane.b32.xlu0 %v2246, 15
        %v2711 = vpop.permute.xlu0 %2710
        %2712 = vrot.lane.b32.xlu0 %v2248, 15
        %v2713 = vpop.permute.xlu0 %2712
        %2714 = vrot.lane.b32.xlu0 %v2251, 15
        %v2715 = vpop.permute.xlu0 %2714
        %2716 = vrot.lane.b32.xlu0 %v2253, 15
        %v2717 = vpop.permute.xlu0 %2716
        %2718 = vrot.lane.b32.xlu0 %v2256, 15
        %v2719 = vpop.permute.xlu0 %2718
        %2720 = vrot.lane.b32.xlu0 %v2258, 15
        %v2721 = vpop.permute.xlu0 %2720
        %2722 = vrot.lane.b32.xlu0 %v2261, 15
        %v2723 = vpop.permute.xlu0 %2722
        %2724 = vrot.lane.b32.xlu0 %v2263, 15
        %v2725 = vpop.permute.xlu0 %2724
        %2726 = vrot.lane.b32.xlu0 %v2266, 15
        %v2727 = vpop.permute.xlu0 %2726
        %2728 = vrot.lane.b32.xlu0 %v2268, 15
        %v2729 = vpop.permute.xlu0 %2728
        %2762 = vrot.lane.b32.xlu0 %v226, 18
        %v2763 = vpop.permute.xlu0 %2762
        %2764 = vrot.lane.b32.xlu0 %v227, 18
        %v2765 = vpop.permute.xlu0 %2764
        %2766 = vrot.lane.b32.xlu0 %v229, 18
        %v2767 = vpop.permute.xlu0 %2766
        %2768 = vrot.lane.b32.xlu0 %v230, 18
        %v2769 = vpop.permute.xlu0 %2768
        %2770 = vrot.lane.b32.xlu0 %v232, 18
        %v2771 = vpop.permute.xlu0 %2770
        %2772 = vrot.lane.b32.xlu0 %v233, 18
        %v2773 = vpop.permute.xlu0 %2772
        %2774 = vrot.lane.b32.xlu0 %v235, 18
        %v2775 = vpop.permute.xlu0 %2774
        %2776 = vrot.lane.b32.xlu0 %v236, 18
        %v2777 = vpop.permute.xlu0 %2776
        %2778 = vrot.lane.b32.xlu0 %v238, 18
        %v2779 = vpop.permute.xlu0 %2778
        %2780 = vrot.lane.b32.xlu0 %v239, 18
        %v2781 = vpop.permute.xlu0 %2780
        %2782 = vrot.lane.b32.xlu0 %v241, 18
        %v2783 = vpop.permute.xlu0 %2782
        %2784 = vrot.lane.b32.xlu0 %v242, 18
        %v2785 = vpop.permute.xlu0 %2784
        %2786 = vrot.lane.b32.xlu0 %v244, 18
        %v2787 = vpop.permute.xlu0 %2786
        %2788 = vrot.lane.b32.xlu0 %v245, 18
        %v2789 = vpop.permute.xlu0 %2788
        %2790 = vrot.lane.b32.xlu0 %v247, 18
        %v2791 = vpop.permute.xlu0 %2790
        %2792 = vrot.lane.b32.xlu0 %v248, 18
        %v2793 = vpop.permute.xlu0 %2792
        %2794 = vrot.lane.b32.xlu0 %v250, 18
        %v2795 = vpop.permute.xlu0 %2794
        %2796 = vrot.lane.b32.xlu0 %v251, 18
        %v2797 = vpop.permute.xlu0 %2796
        %2798 = vrot.lane.b32.xlu0 %v253, 18
        %v2799 = vpop.permute.xlu0 %2798
        %2800 = vrot.lane.b32.xlu0 %v254, 18
        %v2801 = vpop.permute.xlu0 %2800
        %2802 = vrot.lane.b32.xlu0 %v256, 18
        %v2803 = vpop.permute.xlu0 %2802
        %2804 = vrot.lane.b32.xlu0 %v257, 18
        %v2805 = vpop.permute.xlu0 %2804
        %2806 = vrot.lane.b32.xlu0 %v259, 18
        %v2807 = vpop.permute.xlu0 %2806
        %2808 = vrot.lane.b32.xlu0 %v260, 18
        %v2809 = vpop.permute.xlu0 %2808
        %2810 = vrot.lane.b32.xlu0 %v262, 18
        %v2811 = vpop.permute.xlu0 %2810
        %2812 = vrot.lane.b32.xlu0 %v263, 18
        %v2813 = vpop.permute.xlu0 %2812
        %2814 = vrot.lane.b32.xlu0 %v265, 18
        %v2815 = vpop.permute.xlu0 %2814
        %2816 = vrot.lane.b32.xlu0 %v266, 18
        %v2817 = vpop.permute.xlu0 %2816
        %2818 = vrot.lane.b32.xlu0 %v268, 18
        %v2819 = vpop.permute.xlu0 %2818
        %2820 = vrot.lane.b32.xlu0 %v269, 18
        %v2821 = vpop.permute.xlu0 %2820
        %2822 = vrot.lane.b32.xlu0 %v271, 18
        %v2823 = vpop.permute.xlu0 %2822
        %2824 = vrot.lane.b32.xlu0 %v272, 18
        %v2825 = vpop.permute.xlu0 %2824
        %2858 = vrot.lane.b32.xlu0 %v384, 21
        %v2859 = vpop.permute.xlu0 %2858
        %2860 = vrot.lane.b32.xlu0 %v386, 21
        %v2861 = vpop.permute.xlu0 %2860
        %2862 = vrot.lane.b32.xlu0 %v389, 21
        %v2863 = vpop.permute.xlu0 %2862
        %2864 = vrot.lane.b32.xlu0 %v391, 21
        %v2865 = vpop.permute.xlu0 %2864
        %2866 = vrot.lane.b32.xlu0 %v394, 21
        %v2867 = vpop.permute.xlu0 %2866
        %2868 = vrot.lane.b32.xlu0 %v396, 21
        %v2869 = vpop.permute.xlu0 %2868
        %2870 = vrot.lane.b32.xlu0 %v399, 21
        %v2871 = vpop.permute.xlu0 %2870
        %2872 = vrot.lane.b32.xlu0 %v401, 21
        %v2873 = vpop.permute.xlu0 %2872
        %2874 = vrot.lane.b32.xlu0 %v404, 21
        %v2875 = vpop.permute.xlu0 %2874
        %2876 = vrot.lane.b32.xlu0 %v406, 21
        %v2877 = vpop.permute.xlu0 %2876
        %2878 = vrot.lane.b32.xlu0 %v409, 21
        %v2879 = vpop.permute.xlu0 %2878
        %2880 = vrot.lane.b32.xlu0 %v411, 21
        %v2881 = vpop.permute.xlu0 %2880
        %2882 = vrot.lane.b32.xlu0 %v414, 21
        %v2883 = vpop.permute.xlu0 %2882
        %2884 = vrot.lane.b32.xlu0 %v416, 21
        %v2885 = vpop.permute.xlu0 %2884
        %2886 = vrot.lane.b32.xlu0 %v419, 21
        %v2887 = vpop.permute.xlu0 %2886
        %2888 = vrot.lane.b32.xlu0 %v421, 21
        %v2889 = vpop.permute.xlu0 %2888
        %2890 = vrot.lane.b32.xlu0 %v424, 21
        %v2891 = vpop.permute.xlu0 %2890
        %2892 = vrot.lane.b32.xlu0 %v426, 21
        %v2893 = vpop.permute.xlu0 %2892
        %2894 = vrot.lane.b32.xlu0 %v429, 21
        %v2895 = vpop.permute.xlu0 %2894
        %2896 = vrot.lane.b32.xlu0 %v431, 21
        %v2897 = vpop.permute.xlu0 %2896
        %2898 = vrot.lane.b32.xlu0 %v434, 21
        %v2899 = vpop.permute.xlu0 %2898
        %2900 = vrot.lane.b32.xlu0 %v436, 21
        %v2901 = vpop.permute.xlu0 %2900
        %2902 = vrot.lane.b32.xlu0 %v439, 21
        %v2903 = vpop.permute.xlu0 %2902
        %2904 = vrot.lane.b32.xlu0 %v441, 21
        %v2905 = vpop.permute.xlu0 %2904
        %2906 = vrot.lane.b32.xlu0 %v444, 21
        %v2907 = vpop.permute.xlu0 %2906
        %2908 = vrot.lane.b32.xlu0 %v446, 21
        %v2909 = vpop.permute.xlu0 %2908
        %2910 = vrot.lane.b32.xlu0 %v449, 21
        %v2911 = vpop.permute.xlu0 %2910
        %2912 = vrot.lane.b32.xlu0 %v451, 21
        %v2913 = vpop.permute.xlu0 %2912
        %2914 = vrot.lane.b32.xlu0 %v454, 21
        %v2915 = vpop.permute.xlu0 %2914
        %2916 = vrot.lane.b32.xlu0 %v456, 21
        %v2917 = vpop.permute.xlu0 %2916
        %2918 = vrot.lane.b32.xlu0 %v2274, 21
        %v2919 = vpop.permute.xlu0 %2918
        %2920 = vrot.lane.b32.xlu0 %v2276, 21
        %v2921 = vpop.permute.xlu0 %2920
        %2954 = vrot.lane.b32.xlu0 %v2196, 24
        %v2955 = vpop.permute.xlu0 %2954
        %2956 = vrot.lane.b32.xlu0 %v2198, 24
        %v2957 = vpop.permute.xlu0 %2956
        %2958 = vrot.lane.b32.xlu0 %v2201, 24
        %v2959 = vpop.permute.xlu0 %2958
        %2960 = vrot.lane.b32.xlu0 %v2203, 24
        %v2961 = vpop.permute.xlu0 %2960
        %2962 = vrot.lane.b32.xlu0 %v2206, 24
        %v2963 = vpop.permute.xlu0 %2962
        %2964 = vrot.lane.b32.xlu0 %v2208, 24
        %v2965 = vpop.permute.xlu0 %2964
        %2966 = vrot.lane.b32.xlu0 %v2211, 24
        %v2967 = vpop.permute.xlu0 %2966
        %2968 = vrot.lane.b32.xlu0 %v2213, 24
        %v2969 = vpop.permute.xlu0 %2968
        %2970 = vrot.lane.b32.xlu0 %v2216, 24
        %v2971 = vpop.permute.xlu0 %2970
        %2972 = vrot.lane.b32.xlu0 %v2218, 24
        %v2973 = vpop.permute.xlu0 %2972
        %2974 = vrot.lane.b32.xlu0 %v2221, 24
        %v2975 = vpop.permute.xlu0 %2974
        %2976 = vrot.lane.b32.xlu0 %v2223, 24
        %v2977 = vpop.permute.xlu0 %2976
        %2978 = vrot.lane.b32.xlu0 %v2226, 24
        %v2979 = vpop.permute.xlu0 %2978
        %2980 = vrot.lane.b32.xlu0 %v2228, 24
        %v2981 = vpop.permute.xlu0 %2980
        %2982 = vrot.lane.b32.xlu0 %v2231, 24
        %v2983 = vpop.permute.xlu0 %2982
        %2984 = vrot.lane.b32.xlu0 %v2233, 24
        %v2985 = vpop.permute.xlu0 %2984
        %2986 = vrot.lane.b32.xlu0 %v2236, 24
        %v2987 = vpop.permute.xlu0 %2986
        %2988 = vrot.lane.b32.xlu0 %v2238, 24
        %v2989 = vpop.permute.xlu0 %2988
        %2990 = vrot.lane.b32.xlu0 %v2241, 24
        %v2991 = vpop.permute.xlu0 %2990
        %2992 = vrot.lane.b32.xlu0 %v2243, 24
        %v2993 = vpop.permute.xlu0 %2992
        %2994 = vrot.lane.b32.xlu0 %v2246, 24
        %v2995 = vpop.permute.xlu0 %2994
        %2996 = vrot.lane.b32.xlu0 %v2248, 24
        %v2997 = vpop.permute.xlu0 %2996
        %2998 = vrot.lane.b32.xlu0 %v2251, 24
        %v2999 = vpop.permute.xlu0 %2998
        %3000 = vrot.lane.b32.xlu0 %v2253, 24
        %v3001 = vpop.permute.xlu0 %3000
        %3002 = vrot.lane.b32.xlu0 %v2256, 24
        %v3003 = vpop.permute.xlu0 %3002
        %3004 = vrot.lane.b32.xlu0 %v2258, 24
        %v3005 = vpop.permute.xlu0 %3004
        %3006 = vrot.lane.b32.xlu0 %v2261, 24
        %v3007 = vpop.permute.xlu0 %3006
        %3008 = vrot.lane.b32.xlu0 %v2263, 24
        %v3009 = vpop.permute.xlu0 %3008
        %3010 = vrot.lane.b32.xlu0 %v2266, 24
        %v3011 = vpop.permute.xlu0 %3010
        %3012 = vrot.lane.b32.xlu0 %v2268, 24
        %v3013 = vpop.permute.xlu0 %3012
        %3014 = vrot.lane.b32.xlu0 %v2279, 24
        %v3015 = vpop.permute.xlu0 %3014
        %3016 = vrot.lane.b32.xlu0 %v2281, 24
        %v3017 = vpop.permute.xlu0 %3016
        %v3050 = vsel %vm1153, %v220, %v2283
        %v3051 = vsel %vm1153, %v221, %v2285
        %v3052 = vsel %vm1153, %v223, %v2287
        %v3053 = vsel %vm1153, %v224, %v2289
        %v3054 = vsel %vm1153, %v226, %v2291
        %v3055 = vsel %vm1153, %v227, %v2293
        %v3056 = vsel %vm1153, %v229, %v2295
        %v3057 = vsel %vm1153, %v230, %v2297
        %v3058 = vsel %vm1153, %v232, %v2299
        %v3059 = vsel %vm1153, %v233, %v2301
        %v3060 = vsel %vm1153, %v235, %v2303
        %v3061 = vsel %vm1153, %v236, %v2305
        %v3062 = vsel %vm1153, %v238, %v2307
        %v3063 = vsel %vm1153, %v239, %v2309
        %v3064 = vsel %vm1153, %v241, %v2311
        %v3065 = vsel %vm1153, %v242, %v2313
        %v3066 = vsel %vm1153, %v244, %v2315
        %v3067 = vsel %vm1153, %v245, %v2317
        %v3068 = vsel %vm1153, %v247, %v2319
        %v3069 = vsel %vm1153, %v248, %v2321
        %v3070 = vsel %vm1153, %v250, %v2323
        %v3071 = vsel %vm1153, %v251, %v2325
        %v3072 = vsel %vm1153, %v253, %v2327
        %v3073 = vsel %vm1153, %v254, %v2329
        %v3074 = vsel %vm1153, %v256, %v2331
        %v3075 = vsel %vm1153, %v257, %v2333
        %v3076 = vsel %vm1153, %v259, %v2335
        %v3077 = vsel %vm1153, %v260, %v2337
        %v3078 = vsel %vm1153, %v262, %v2339
        %v3079 = vsel %vm1153, %v263, %v2341
        %v3080 = vsel %vm1153, %v265, %v2343
        %v3081 = vsel %vm1153, %v266, %v2345
        %v3082 = vsel %vm1156, %v3050, %v2379
        %v3083 = vsel %vm1156, %v3051, %v2381
        %v3084 = vsel %vm1156, %v3052, %v2383
        %v3085 = vsel %vm1156, %v3053, %v2385
        %v3086 = vsel %vm1156, %v3054, %v2387
        %v3087 = vsel %vm1156, %v3055, %v2389
        %v3088 = vsel %vm1156, %v3056, %v2391
        %v3089 = vsel %vm1156, %v3057, %v2393
        %v3090 = vsel %vm1156, %v3058, %v2395
        %v3091 = vsel %vm1156, %v3059, %v2397
        %v3092 = vsel %vm1156, %v3060, %v2399
        %v3093 = vsel %vm1156, %v3061, %v2401
        %v3094 = vsel %vm1156, %v3062, %v2403
        %v3095 = vsel %vm1156, %v3063, %v2405
        %v3096 = vsel %vm1156, %v3064, %v2407
        %v3097 = vsel %vm1156, %v3065, %v2409
        %v3098 = vsel %vm1156, %v3066, %v2411
        %v3099 = vsel %vm1156, %v3067, %v2413
        %v3100 = vsel %vm1156, %v3068, %v2415
        %v3101 = vsel %vm1156, %v3069, %v2417
        %v3102 = vsel %vm1156, %v3070, %v2419
        %v3103 = vsel %vm1156, %v3071, %v2421
        %v3104 = vsel %vm1156, %v3072, %v2423
        %v3105 = vsel %vm1156, %v3073, %v2425
        %v3106 = vsel %vm1156, %v3074, %v2427
        %v3107 = vsel %vm1156, %v3075, %v2429
        %v3108 = vsel %vm1156, %v3076, %v2431
        %v3109 = vsel %vm1156, %v3077, %v2433
        %v3110 = vsel %vm1156, %v3078, %v2435
        %v3111 = vsel %vm1156, %v3079, %v2437
        %v3112 = vsel %vm1156, %v3080, %v2439
        %v3113 = vsel %vm1156, %v3081, %v2441
        %v3114 = vsel %vm1159, %v3082, %v2475
        %v3115 = vsel %vm1159, %v3083, %v2477
        %v3116 = vsel %vm1159, %v3084, %v2479
        %v3117 = vsel %vm1159, %v3085, %v2481
        %v3118 = vsel %vm1159, %v3086, %v2483
        %v3119 = vsel %vm1159, %v3087, %v2485
        %v3120 = vsel %vm1159, %v3088, %v2487
        %v3121 = vsel %vm1159, %v3089, %v2489
        %v3122 = vsel %vm1159, %v3090, %v2491
        %v3123 = vsel %vm1159, %v3091, %v2493
        %v3124 = vsel %vm1159, %v3092, %v2495
        %v3125 = vsel %vm1159, %v3093, %v2497
        %v3126 = vsel %vm1159, %v3094, %v2499
        %v3127 = vsel %vm1159, %v3095, %v2501
        %v3128 = vsel %vm1159, %v3096, %v2503
        %v3129 = vsel %vm1159, %v3097, %v2505
        %v3130 = vsel %vm1159, %v3098, %v2507
        %v3131 = vsel %vm1159, %v3099, %v2509
        %v3132 = vsel %vm1159, %v3100, %v2511
        %v3133 = vsel %vm1159, %v3101, %v2513
        %v3134 = vsel %vm1159, %v3102, %v2515
        %v3135 = vsel %vm1159, %v3103, %v2517
        %v3136 = vsel %vm1159, %v3104, %v2519
        %v3137 = vsel %vm1159, %v3105, %v2521
        %v3138 = vsel %vm1159, %v3106, %v2523
        %v3139 = vsel %vm1159, %v3107, %v2525
        %v3140 = vsel %vm1159, %v3108, %v2527
        %v3141 = vsel %vm1159, %v3109, %v2529
        %v3142 = vsel %vm1159, %v3110, %v2531
        %v3143 = vsel %vm1159, %v3111, %v2533
        %v3144 = vsel %vm1159, %v3112, %v2535
        %v3145 = vsel %vm1159, %v3113, %v2537
        %v3146 = vsel %vm1162, %v3114, %v2571
        %v3147 = vsel %vm1162, %v3115, %v2573
        %v3148 = vsel %vm1162, %v3116, %v2575
        %v3149 = vsel %vm1162, %v3117, %v2577
        %v3150 = vsel %vm1162, %v3118, %v2579
        %v3151 = vsel %vm1162, %v3119, %v2581
        %v3152 = vsel %vm1162, %v3120, %v2583
        %v3153 = vsel %vm1162, %v3121, %v2585
        %v3154 = vsel %vm1162, %v3122, %v2587
        %v3155 = vsel %vm1162, %v3123, %v2589
        %v3156 = vsel %vm1162, %v3124, %v2591
        %v3157 = vsel %vm1162, %v3125, %v2593
        %v3158 = vsel %vm1162, %v3126, %v2595
        %v3159 = vsel %vm1162, %v3127, %v2597
        %v3160 = vsel %vm1162, %v3128, %v2599
        %v3161 = vsel %vm1162, %v3129, %v2601
        %v3162 = vsel %vm1162, %v3130, %v2603
        %v3163 = vsel %vm1162, %v3131, %v2605
        %v3164 = vsel %vm1162, %v3132, %v2607
        %v3165 = vsel %vm1162, %v3133, %v2609
        %v3166 = vsel %vm1162, %v3134, %v2611
        %v3167 = vsel %vm1162, %v3135, %v2613
        %v3168 = vsel %vm1162, %v3136, %v2615
        %v3169 = vsel %vm1162, %v3137, %v2617
        %v3170 = vsel %vm1162, %v3138, %v2619
        %v3171 = vsel %vm1162, %v3139, %v2621
        %v3172 = vsel %vm1162, %v3140, %v2623
        %v3173 = vsel %vm1162, %v3141, %v2625
        %v3174 = vsel %vm1162, %v3142, %v2627
        %v3175 = vsel %vm1162, %v3143, %v2629
        %v3176 = vsel %vm1162, %v3144, %v2631
        %v3177 = vsel %vm1162, %v3145, %v2633
        %v3178 = vsel %vm1165, %v3146, %v2667
        %v3179 = vsel %vm1165, %v3147, %v2669
        %v3180 = vsel %vm1165, %v3148, %v2671
        %v3181 = vsel %vm1165, %v3149, %v2673
        %v3182 = vsel %vm1165, %v3150, %v2675
        %v3183 = vsel %vm1165, %v3151, %v2677
        %v3184 = vsel %vm1165, %v3152, %v2679
        %v3185 = vsel %vm1165, %v3153, %v2681
        %v3186 = vsel %vm1165, %v3154, %v2683
        %v3187 = vsel %vm1165, %v3155, %v2685
        %v3188 = vsel %vm1165, %v3156, %v2687
        %v3189 = vsel %vm1165, %v3157, %v2689
        %v3190 = vsel %vm1165, %v3158, %v2691
        %v3191 = vsel %vm1165, %v3159, %v2693
        %v3192 = vsel %vm1165, %v3160, %v2695
        %v3193 = vsel %vm1165, %v3161, %v2697
        %v3194 = vsel %vm1165, %v3162, %v2699
        %v3195 = vsel %vm1165, %v3163, %v2701
        %v3196 = vsel %vm1165, %v3164, %v2703
        %v3197 = vsel %vm1165, %v3165, %v2705
        %v3198 = vsel %vm1165, %v3166, %v2707
        %v3199 = vsel %vm1165, %v3167, %v2709
        %v3200 = vsel %vm1165, %v3168, %v2711
        %v3201 = vsel %vm1165, %v3169, %v2713
        %v3202 = vsel %vm1165, %v3170, %v2715
        %v3203 = vsel %vm1165, %v3171, %v2717
        %v3204 = vsel %vm1165, %v3172, %v2719
        %v3205 = vsel %vm1165, %v3173, %v2721
        %v3206 = vsel %vm1165, %v3174, %v2723
        %v3207 = vsel %vm1165, %v3175, %v2725
        %v3208 = vsel %vm1165, %v3176, %v2727
        %v3209 = vsel %vm1165, %v3177, %v2729
        %v3210 = vsel %vm1168, %v3178, %v2763
        %v3211 = vsel %vm1168, %v3179, %v2765
        %v3212 = vsel %vm1168, %v3180, %v2767
        %v3213 = vsel %vm1168, %v3181, %v2769
        %v3214 = vsel %vm1168, %v3182, %v2771
        %v3215 = vsel %vm1168, %v3183, %v2773
        %v3216 = vsel %vm1168, %v3184, %v2775
        %v3217 = vsel %vm1168, %v3185, %v2777
        %v3218 = vsel %vm1168, %v3186, %v2779
        %v3219 = vsel %vm1168, %v3187, %v2781
        %v3220 = vsel %vm1168, %v3188, %v2783
        %v3221 = vsel %vm1168, %v3189, %v2785
        %v3222 = vsel %vm1168, %v3190, %v2787
        %v3223 = vsel %vm1168, %v3191, %v2789
        %v3224 = vsel %vm1168, %v3192, %v2791
        %v3225 = vsel %vm1168, %v3193, %v2793
        %v3226 = vsel %vm1168, %v3194, %v2795
        %v3227 = vsel %vm1168, %v3195, %v2797
        %v3228 = vsel %vm1168, %v3196, %v2799
        %v3229 = vsel %vm1168, %v3197, %v2801
        %v3230 = vsel %vm1168, %v3198, %v2803
        %v3231 = vsel %vm1168, %v3199, %v2805
        %v3232 = vsel %vm1168, %v3200, %v2807
        %v3233 = vsel %vm1168, %v3201, %v2809
        %v3234 = vsel %vm1168, %v3202, %v2811
        %v3235 = vsel %vm1168, %v3203, %v2813
        %v3236 = vsel %vm1168, %v3204, %v2815
        %v3237 = vsel %vm1168, %v3205, %v2817
        %v3238 = vsel %vm1168, %v3206, %v2819
        %v3239 = vsel %vm1168, %v3207, %v2821
        %v3240 = vsel %vm1168, %v3208, %v2823
        %v3241 = vsel %vm1168, %v3209, %v2825
        %v3242 = vsel %vm1171, %v3210, %v2859
        %v3243 = vsel %vm1171, %v3211, %v2861
        %v3244 = vsel %vm1171, %v3212, %v2863
        %v3245 = vsel %vm1171, %v3213, %v2865
        %v3246 = vsel %vm1171, %v3214, %v2867
        %v3247 = vsel %vm1171, %v3215, %v2869
        %v3248 = vsel %vm1171, %v3216, %v2871
        %v3249 = vsel %vm1171, %v3217, %v2873
        %v3250 = vsel %vm1171, %v3218, %v2875
        %v3251 = vsel %vm1171, %v3219, %v2877
        %v3252 = vsel %vm1171, %v3220, %v2879
        %v3253 = vsel %vm1171, %v3221, %v2881
        %v3254 = vsel %vm1171, %v3222, %v2883
        %v3255 = vsel %vm1171, %v3223, %v2885
        %v3256 = vsel %vm1171, %v3224, %v2887
        %v3257 = vsel %vm1171, %v3225, %v2889
        %v3258 = vsel %vm1171, %v3226, %v2891
        %v3259 = vsel %vm1171, %v3227, %v2893
        %v3260 = vsel %vm1171, %v3228, %v2895
        %v3261 = vsel %vm1171, %v3229, %v2897
        %v3262 = vsel %vm1171, %v3230, %v2899
        %v3263 = vsel %vm1171, %v3231, %v2901
        %v3264 = vsel %vm1171, %v3232, %v2903
        %v3265 = vsel %vm1171, %v3233, %v2905
        %v3266 = vsel %vm1171, %v3234, %v2907
        %v3267 = vsel %vm1171, %v3235, %v2909
        %v3268 = vsel %vm1171, %v3236, %v2911
        %v3269 = vsel %vm1171, %v3237, %v2913
        %v3270 = vsel %vm1171, %v3238, %v2915
        %v3271 = vsel %vm1171, %v3239, %v2917
        %v3272 = vsel %vm1171, %v3240, %v2919
        %v3273 = vsel %vm1171, %v3241, %v2921
        %v3274 = vsel %vm1174, %v3242, %v2955
        %v3275 = vsel %vm1174, %v3243, %v2957
        %v3276 = vsel %vm1174, %v3244, %v2959
        %v3277 = vsel %vm1174, %v3245, %v2961
        %v3278 = vsel %vm1174, %v3246, %v2963
        %v3279 = vsel %vm1174, %v3247, %v2965
        %v3280 = vsel %vm1174, %v3248, %v2967
        %v3281 = vsel %vm1174, %v3249, %v2969
        %v3282 = vsel %vm1174, %v3250, %v2971
        %v3283 = vsel %vm1174, %v3251, %v2973
        %v3284 = vsel %vm1174, %v3252, %v2975
        %v3285 = vsel %vm1174, %v3253, %v2977
        %v3286 = vsel %vm1174, %v3254, %v2979
        %v3287 = vsel %vm1174, %v3255, %v2981
        %v3288 = vsel %vm1174, %v3256, %v2983
        %v3289 = vsel %vm1174, %v3257, %v2985
        %v3290 = vsel %vm1174, %v3258, %v2987
        %v3291 = vsel %vm1174, %v3259, %v2989
        %v3292 = vsel %vm1174, %v3260, %v2991
        %v3293 = vsel %vm1174, %v3261, %v2993
        %v3294 = vsel %vm1174, %v3262, %v2995
        %v3295 = vsel %vm1174, %v3263, %v2997
        %v3296 = vsel %vm1174, %v3264, %v2999
        %v3297 = vsel %vm1174, %v3265, %v3001
        %v3298 = vsel %vm1174, %v3266, %v3003
        %v3299 = vsel %vm1174, %v3267, %v3005
        %v3300 = vsel %vm1174, %v3268, %v3007
        %v3301 = vsel %vm1174, %v3269, %v3009
        %v3302 = vsel %vm1174, %v3270, %v3011
        %v3303 = vsel %vm1174, %v3271, %v3013
        %v3304 = vsel %vm1174, %v3272, %v3015
        %v3305 = vsel %vm1174, %v3273, %v3017
        %v3306 = vld [vmem:[%s2] sm:$0xff]
        %v3307 = vld [vmem:[%s2 + $0x8] sm:$0xff]
        %v3308 = vld [vmem:[%s2 + $0x10] sm:$0xff]
        %v3309 = vld [vmem:[%s2 + $0x18] sm:$0x7]
        %v3310 = vld [vmem:[%s3] sm:$0x1]
        %v3312 = vlaneseq
        %v3313 = vshrl.u32 %v3312, 7
        %v3314 = vsub.s32 0, %v3313
        %v3315 = vrot.slane %v3310, %v3314
        %v3318 = vsel %vm1177, %v3274, 0
        %v3321 = vsel %vm1177, %v3275, 0
        %v3324 = vsel %vm1177, %v3276, 0
        %v3327 = vsel %vm1177, %v3277, 0
        %v3330 = vsel %vm1177, %v3278, 0
        %v3333 = vsel %vm1177, %v3279, 0
        %v3336 = vsel %vm1177, %v3280, 0
        %v3339 = vsel %vm1177, %v3281, 0
        %v3342 = vsel %vm1177, %v3282, 0
        %v3345 = vsel %vm1177, %v3283, 0
        %v3348 = vsel %vm1177, %v3284, 0
        %v3351 = vsel %vm1177, %v3285, 0
        %v3354 = vsel %vm1177, %v3286, 0
        %v3357 = vsel %vm1177, %v3287, 0
        %v3360 = vsel %vm1177, %v3288, 0
        %v3363 = vsel %vm1177, %v3289, 0
        %v3366 = vsel %vm1177, %v3290, 0
        %v3369 = vsel %vm1177, %v3291, 0
        %v3372 = vsel %vm1177, %v3292, 0
        %v3375 = vsel %vm1177, %v3293, 0
        %v3378 = vsel %vm1177, %v3294, 0
        %v3381 = vsel %vm1177, %v3295, 0
        %v3384 = vsel %vm1177, %v3296, 0
        %v3387 = vsel %vm1177, %v3297, 0
        %v3390 = vsel %vm1177, %v3298, 0
        %v3393 = vsel %vm1177, %v3299, 0
        %v3396 = vsel %vm1177, %v3300, 0
        %v3399 = vsel %vm1177, %v3301, 0
        %v3402 = vsel %vm1177, %v3302, 0
        %v3405 = vsel %vm1177, %v3303, 0
        %v3408 = vsel %vm1177, %v3304, 0
        %v3411 = vsel %vm1177, %v3305, 0
        %vm3413 = vcmask 1042432
        %v3415 = vsel %vm3413, %v3309, 0
        %3417 = vmatprep.subr.mxu0 0.0
        %3418 = vmatpush1.msra.mxu0 0.0
        %3419 = vmatprep.subr.mxu0 0.0
        %3420 = vmatpush1.msra.mxu0 0.0
        %3421 = vmatprep.subr.mxu0 0.0
        %3422 = vmatpush1.msra.mxu0 0.0
        %3423 = vmatprep.subr.mxu0 0.0
        %3424 = vmatpush1.msra.mxu0 0.0
        %3425 = vmatprep.subr.mxu0 0.0
        %3426 = vmatpush1.msra.mxu0 0.0
        %3427 = vmatprep.subr.mxu0 0.0
        %3428 = vmatpush1.msra.mxu0 0.0
        %3429 = vmatprep.subr.mxu0 0.0
        %3430 = vmatpush1.msra.mxu0 0.0
        %3431 = vmatprep.subr.mxu0 0.0
        %3432 = vmatpush1.msra.mxu0 0.0
        %3433 = vmatprep.subr.mxu0 0.0
        %3434 = vmatpush1.msra.mxu0 0.0
        %3435 = vmatprep.subr.mxu0 0.0
        %3436 = vmatpush1.msra.mxu0 0.0
        %3437 = vmatprep.subr.mxu0 0.0
        %3438 = vmatpush1.msra.mxu0 0.0
        %3439 = vmatprep.subr.mxu0 0.0
        %3440 = vmatpush1.msra.mxu0 0.0
        %3441 = vmatprep.subr.mxu0 0.0
        %3442 = vmatpush1.msra.mxu0 %v3415
        %3443 = vmatprep.subr.mxu0 0.0
        %3444 = vmatpush1.msra.mxu0 %v3308
        %3445 = vmatprep.subr.mxu0 0.0
        %3446 = vmatpush1.msra.mxu0 %v3307
        %3447 = vmatprep.subr.mxu0 0.0
        %3448 = vmatpush1.msra.mxu0 %v3306
        %3449 = vmatprep.subr.mxu0 0.0
        %3450 = vmatpush2.msra.mxu0 0.0
        %3451 = vmatprep.subr.mxu0 0.0
        %3452 = vmatpush2.msra.mxu0 0.0
        %3453 = vmatprep.subr.mxu0 0.0
        %3454 = vmatpush2.msra.mxu0 0.0
        %3455 = vmatprep.subr.mxu0 0.0
        %3456 = vmatpush2.msra.mxu0 0.0
        %3457 = vmatprep.subr.mxu0 0.0
        %3458 = vmatpush2.msra.mxu0 0.0
        %3459 = vmatprep.subr.mxu0 0.0
        %3460 = vmatpush2.msra.mxu0 0.0
        %3461 = vmatprep.subr.mxu0 0.0
        %3462 = vmatpush2.msra.mxu0 0.0
        %3463 = vmatprep.subr.mxu0 0.0
        %3464 = vmatpush2.msra.mxu0 0.0
        %3465 = vmatprep.subr.mxu0 0.0
        %3466 = vmatpush2.msra.mxu0 0.0
        %3467 = vmatprep.subr.mxu0 0.0
        %3468 = vmatpush2.msra.mxu0 0.0
        %3469 = vmatprep.subr.mxu0 0.0
        %3470 = vmatpush2.msra.mxu0 0.0
        %3471 = vmatprep.subr.mxu0 0.0
        %3472 = vmatpush2.msra.mxu0 0.0
        %3473 = vmatprep.subr.mxu0 0.0
        %3474 = vmatpush2.msra.mxu0 0.0
        %3475 = vmatprep.subr.mxu0 0.0
        %3476 = vmatpush2.msra.mxu0 0.0
        %3477 = vmatprep.subr.mxu0 0.0
        %3478 = vmatpush2.msra.mxu0 0.0
        %3479 = vmatprep.subr.mxu0 0.0
        %3480 = vmatpush2.msra.mxu0 0.0
        %3481 = vmatprep.mubr.f32.mxu0 0.0
        %3482 = vmatmul.mubr.f32.gmra.mxu0 %v3318
        %v3483 = vpop.f32.mrf.mxu0
        %v3484 = vadd.f32 %v3315, %v3483
        %v3485 = vpop.f32.mrf.mxu0
        %3486 = vmatprep.mubr.f32.mxu0 0.0
        %3487 = vmatmul.mubr.f32.gmra.mxu0 %v3321
        %v3488 = vpop.f32.mrf.mxu0
        %v3489 = vadd.f32 %v3315, %v3488
        %v3490 = vpop.f32.mrf.mxu0
        %3491 = vmatprep.mubr.f32.mxu0 0.0
        %3492 = vmatmul.mubr.f32.gmra.mxu0 %v3324
        %v3493 = vpop.f32.mrf.mxu0
        %v3494 = vadd.f32 %v3315, %v3493
        %v3495 = vpop.f32.mrf.mxu0
        %3496 = vmatprep.mubr.f32.mxu0 0.0
        %3497 = vmatmul.mubr.f32.gmra.mxu0 %v3327
        %v3498 = vpop.f32.mrf.mxu0
        %v3499 = vadd.f32 %v3315, %v3498
        %v3500 = vpop.f32.mrf.mxu0
        %3501 = vmatprep.mubr.f32.mxu0 0.0
        %3502 = vmatmul.mubr.f32.gmra.mxu0 %v3330
        %v3503 = vpop.f32.mrf.mxu0
        %v3504 = vadd.f32 %v3315, %v3503
        %v3505 = vpop.f32.mrf.mxu0
        %3506 = vmatprep.mubr.f32.mxu0 0.0
        %3507 = vmatmul.mubr.f32.gmra.mxu0 %v3333
        %v3508 = vpop.f32.mrf.mxu0
        %v3509 = vadd.f32 %v3315, %v3508
        %v3510 = vpop.f32.mrf.mxu0
        %3511 = vmatprep.mubr.f32.mxu0 0.0
        %3512 = vmatmul.mubr.f32.gmra.mxu0 %v3336
        %v3513 = vpop.f32.mrf.mxu0
        %v3514 = vadd.f32 %v3315, %v3513
        %v3515 = vpop.f32.mrf.mxu0
        %3516 = vmatprep.mubr.f32.mxu0 0.0
        %3517 = vmatmul.mubr.f32.gmra.mxu0 %v3339
        %v3518 = vpop.f32.mrf.mxu0
        %v3519 = vadd.f32 %v3315, %v3518
        %v3520 = vpop.f32.mrf.mxu0
        %3521 = vmatprep.mubr.f32.mxu0 0.0
        %3522 = vmatmul.mubr.f32.gmra.mxu0 %v3342
        %v3523 = vpop.f32.mrf.mxu0
        %v3524 = vadd.f32 %v3315, %v3523
        %v3525 = vpop.f32.mrf.mxu0
        %3526 = vmatprep.mubr.f32.mxu0 0.0
        %3527 = vmatmul.mubr.f32.gmra.mxu0 %v3345
        %v3528 = vpop.f32.mrf.mxu0
        %v3529 = vadd.f32 %v3315, %v3528
        %v3530 = vpop.f32.mrf.mxu0
        %3531 = vmatprep.mubr.f32.mxu0 0.0
        %3532 = vmatmul.mubr.f32.gmra.mxu0 %v3348
        %v3533 = vpop.f32.mrf.mxu0
        %v3534 = vadd.f32 %v3315, %v3533
        %v3535 = vpop.f32.mrf.mxu0
        %3536 = vmatprep.mubr.f32.mxu0 0.0
        %3537 = vmatmul.mubr.f32.gmra.mxu0 %v3351
        %v3538 = vpop.f32.mrf.mxu0
        %v3539 = vadd.f32 %v3315, %v3538
        %v3540 = vpop.f32.mrf.mxu0
        %3541 = vmatprep.mubr.f32.mxu0 0.0
        %3542 = vmatmul.mubr.f32.gmra.mxu0 %v3354
        %v3543 = vpop.f32.mrf.mxu0
        %v3544 = vadd.f32 %v3315, %v3543
        %v3545 = vpop.f32.mrf.mxu0
        %3546 = vmatprep.mubr.f32.mxu0 0.0
        %3547 = vmatmul.mubr.f32.gmra.mxu0 %v3357
        %v3548 = vpop.f32.mrf.mxu0
        %v3549 = vadd.f32 %v3315, %v3548
        %v3550 = vpop.f32.mrf.mxu0
        %3551 = vmatprep.mubr.f32.mxu0 0.0
        %3552 = vmatmul.mubr.f32.gmra.mxu0 %v3360
        %v3553 = vpop.f32.mrf.mxu0
        %v3554 = vadd.f32 %v3315, %v3553
        %v3555 = vpop.f32.mrf.mxu0
        %3556 = vmatprep.mubr.f32.mxu0 0.0
        %3557 = vmatmul.mubr.f32.gmra.mxu0 %v3363
        %v3558 = vpop.f32.mrf.mxu0
        %v3559 = vadd.f32 %v3315, %v3558
        %v3560 = vpop.f32.mrf.mxu0
        %3561 = vmatprep.mubr.f32.mxu0 0.0
        %3562 = vmatmul.mubr.f32.gmra.mxu0 %v3366
        %v3563 = vpop.f32.mrf.mxu0
        %v3564 = vadd.f32 %v3315, %v3563
        %v3565 = vpop.f32.mrf.mxu0
        %3566 = vmatprep.mubr.f32.mxu0 0.0
        %3567 = vmatmul.mubr.f32.gmra.mxu0 %v3369
        %v3568 = vpop.f32.mrf.mxu0
        %v3569 = vadd.f32 %v3315, %v3568
        %v3570 = vpop.f32.mrf.mxu0
        %3571 = vmatprep.mubr.f32.mxu0 0.0
        %3572 = vmatmul.mubr.f32.gmra.mxu0 %v3372
        %v3573 = vpop.f32.mrf.mxu0
        %v3574 = vadd.f32 %v3315, %v3573
        %v3575 = vpop.f32.mrf.mxu0
        %3576 = vmatprep.mubr.f32.mxu0 0.0
        %3577 = vmatmul.mubr.f32.gmra.mxu0 %v3375
        %v3578 = vpop.f32.mrf.mxu0
        %v3579 = vadd.f32 %v3315, %v3578
        %v3580 = vpop.f32.mrf.mxu0
        %3581 = vmatprep.mubr.f32.mxu0 0.0
        %3582 = vmatmul.mubr.f32.gmra.mxu0 %v3378
        %v3583 = vpop.f32.mrf.mxu0
        %v3584 = vadd.f32 %v3315, %v3583
        %v3585 = vpop.f32.mrf.mxu0
        %3586 = vmatprep.mubr.f32.mxu0 0.0
        %3587 = vmatmul.mubr.f32.gmra.mxu0 %v3381
        %v3588 = vpop.f32.mrf.mxu0
        %v3589 = vadd.f32 %v3315, %v3588
        %v3590 = vpop.f32.mrf.mxu0
        %3591 = vmatprep.mubr.f32.mxu0 0.0
        %3592 = vmatmul.mubr.f32.gmra.mxu0 %v3384
        %v3593 = vpop.f32.mrf.mxu0
        %v3594 = vadd.f32 %v3315, %v3593
        %v3595 = vpop.f32.mrf.mxu0
        %3596 = vmatprep.mubr.f32.mxu0 0.0
        %3597 = vmatmul.mubr.f32.gmra.mxu0 %v3387
        %v3598 = vpop.f32.mrf.mxu0
        %v3599 = vadd.f32 %v3315, %v3598
        %v3600 = vpop.f32.mrf.mxu0
        %3601 = vmatprep.mubr.f32.mxu0 0.0
        %3602 = vmatmul.mubr.f32.gmra.mxu0 %v3390
        %v3603 = vpop.f32.mrf.mxu0
        %v3604 = vadd.f32 %v3315, %v3603
        %v3605 = vpop.f32.mrf.mxu0
        %3606 = vmatprep.mubr.f32.mxu0 0.0
        %3607 = vmatmul.mubr.f32.gmra.mxu0 %v3393
        %v3608 = vpop.f32.mrf.mxu0
        %v3609 = vadd.f32 %v3315, %v3608
        %v3610 = vpop.f32.mrf.mxu0
        %3611 = vmatprep.mubr.f32.mxu0 0.0
        %3612 = vmatmul.mubr.f32.gmra.mxu0 %v3396
        %v3613 = vpop.f32.mrf.mxu0
        %v3614 = vadd.f32 %v3315, %v3613
        %v3615 = vpop.f32.mrf.mxu0
        %3616 = vmatprep.mubr.f32.mxu0 0.0
        %3617 = vmatmul.mubr.f32.gmra.mxu0 %v3399
        %v3618 = vpop.f32.mrf.mxu0
        %v3619 = vadd.f32 %v3315, %v3618
        %v3620 = vpop.f32.mrf.mxu0
        %3621 = vmatprep.mubr.f32.mxu0 0.0
        %3622 = vmatmul.mubr.f32.gmra.mxu0 %v3402
        %v3623 = vpop.f32.mrf.mxu0
        %v3624 = vadd.f32 %v3315, %v3623
        %v3625 = vpop.f32.mrf.mxu0
        %3626 = vmatprep.mubr.f32.mxu0 0.0
        %3627 = vmatmul.mubr.f32.gmra.mxu0 %v3405
        %v3628 = vpop.f32.mrf.mxu0
        %v3629 = vadd.f32 %v3315, %v3628
        %v3630 = vpop.f32.mrf.mxu0
        %3631 = vmatprep.mubr.f32.mxu0 0.0
        %3632 = vmatmul.mubr.f32.gmra.mxu0 %v3408
        %v3633 = vpop.f32.mrf.mxu0
        %v3634 = vadd.f32 %v3315, %v3633
        %v3635 = vpop.f32.mrf.mxu0
        %3636 = vmatprep.mubr.f32.mxu0 0.0
        %3637 = vmatmul.mubr.f32.gmra.mxu0 %v3411
        %v3638 = vpop.f32.mrf.mxu0
        %v3639 = vadd.f32 %v3315, %v3638
        %v3640 = vpop.f32.mrf.mxu0
        %3641 = vdwg.mxu0
        %v3642 = vmax.f32 %v3484, 0.0
        %v3643 = vmax.f32 %v3489, 0.0
        %v3644 = vmax.f32 %v3494, 0.0
        %v3645 = vmax.f32 %v3499, 0.0
        %v3646 = vmax.f32 %v3504, 0.0
        %v3647 = vmax.f32 %v3509, 0.0
        %v3648 = vmax.f32 %v3514, 0.0
        %v3649 = vmax.f32 %v3519, 0.0
        %v3650 = vmax.f32 %v3524, 0.0
        %v3651 = vmax.f32 %v3529, 0.0
        %v3652 = vmax.f32 %v3534, 0.0
        %v3653 = vmax.f32 %v3539, 0.0
        %v3654 = vmax.f32 %v3544, 0.0
        %v3655 = vmax.f32 %v3549, 0.0
        %v3656 = vmax.f32 %v3554, 0.0
        %v3657 = vmax.f32 %v3559, 0.0
        %v3658 = vmax.f32 %v3564, 0.0
        %v3659 = vmax.f32 %v3569, 0.0
        %v3660 = vmax.f32 %v3574, 0.0
        %v3661 = vmax.f32 %v3579, 0.0
        %v3662 = vmax.f32 %v3584, 0.0
        %v3663 = vmax.f32 %v3589, 0.0
        %v3664 = vmax.f32 %v3594, 0.0
        %v3665 = vmax.f32 %v3599, 0.0
        %v3666 = vmax.f32 %v3604, 0.0
        %v3667 = vmax.f32 %v3609, 0.0
        %v3668 = vmax.f32 %v3614, 0.0
        %v3669 = vmax.f32 %v3619, 0.0
        %v3670 = vmax.f32 %v3624, 0.0
        %v3671 = vmax.f32 %v3629, 0.0
        %v3672 = vmax.f32 %v3634, 0.0
        %v3673 = vmax.f32 %v3639, 0.0
        %v3674 = vmin.f32 %v3642, 6.0
        %v3675 = vmin.f32 %v3643, 6.0
        %v3676 = vmin.f32 %v3644, 6.0
        %v3677 = vmin.f32 %v3645, 6.0
        %v3678 = vmin.f32 %v3646, 6.0
        %v3679 = vmin.f32 %v3647, 6.0
        %v3680 = vmin.f32 %v3648, 6.0
        %v3681 = vmin.f32 %v3649, 6.0
        %v3682 = vmin.f32 %v3650, 6.0
        %v3683 = vmin.f32 %v3651, 6.0
        %v3684 = vmin.f32 %v3652, 6.0
        %v3685 = vmin.f32 %v3653, 6.0
        %v3686 = vmin.f32 %v3654, 6.0
        %v3687 = vmin.f32 %v3655, 6.0
        %v3688 = vmin.f32 %v3656, 6.0
        %v3689 = vmin.f32 %v3657, 6.0
        %v3690 = vmin.f32 %v3658, 6.0
        %v3691 = vmin.f32 %v3659, 6.0
        %v3692 = vmin.f32 %v3660, 6.0
        %v3693 = vmin.f32 %v3661, 6.0
        %v3694 = vmin.f32 %v3662, 6.0
        %v3695 = vmin.f32 %v3663, 6.0
        %v3696 = vmin.f32 %v3664, 6.0
        %v3697 = vmin.f32 %v3665, 6.0
        %v3698 = vmin.f32 %v3666, 6.0
        %v3699 = vmin.f32 %v3667, 6.0
        %v3700 = vmin.f32 %v3668, 6.0
        %v3701 = vmin.f32 %v3669, 6.0
        %v3702 = vmin.f32 %v3670, 6.0
        %v3703 = vmin.f32 %v3671, 6.0
        %v3704 = vmin.f32 %v3672, 6.0
        %v3705 = vmin.f32 %v3673, 6.0
        %v3709 = vrot.slane %v274, 1
        %v3710 = vrot.slane %v275, 1
        %v3711 = vsel %vm376, %v3709, %v3710
        %v3712 = vrot.slane %v276, 1
        %v3713 = vsel %vm376, %v3710, %v3712
        %v3714 = vrot.slane %v274, 2
        %v3715 = vrot.slane %v275, 2
        %v3716 = vsel %vm2183, %v3714, %v3715
        %v3717 = vrot.slane %v276, 2
        %v3718 = vsel %vm2183, %v3715, %v3717
        %v3719 = vrot.slane %v277, 2
        %v3720 = vrot.slane %v278, 2
        %v3721 = vsel %vm2183, %v3719, %v3720
        %v3722 = vrot.slane %v279, 2
        %v3723 = vsel %vm2183, %v3720, %v3722
        %v3724 = vrot.slane %v280, 2
        %v3725 = vrot.slane %v281, 2
        %v3726 = vsel %vm2183, %v3724, %v3725
        %v3727 = vrot.slane %v282, 2
        %v3728 = vsel %vm2183, %v3725, %v3727
        %v3729 = vrot.slane %v283, 2
        %v3730 = vrot.slane %v284, 2
        %v3731 = vsel %vm2183, %v3729, %v3730
        %v3732 = vrot.slane %v285, 2
        %v3733 = vsel %vm2183, %v3730, %v3732
        %v3734 = vrot.slane %v286, 2
        %v3735 = vrot.slane %v287, 2
        %v3736 = vsel %vm2183, %v3734, %v3735
        %v3737 = vrot.slane %v288, 2
        %v3738 = vsel %vm2183, %v3735, %v3737
        %v3739 = vrot.slane %v289, 2
        %v3740 = vrot.slane %v290, 2
        %v3741 = vsel %vm2183, %v3739, %v3740
        %v3742 = vrot.slane %v291, 2
        %v3743 = vsel %vm2183, %v3740, %v3742
        %v3744 = vrot.slane %v292, 2
        %v3745 = vrot.slane %v293, 2
        %v3746 = vsel %vm2183, %v3744, %v3745
        %v3747 = vrot.slane %v294, 2
        %v3748 = vsel %vm2183, %v3745, %v3747
        %v3749 = vrot.slane %v295, 2
        %v3750 = vrot.slane %v296, 2
        %v3751 = vsel %vm2183, %v3749, %v3750
        %v3752 = vrot.slane %v297, 2
        %v3753 = vsel %vm2183, %v3750, %v3752
        %v3754 = vrot.slane %v298, 2
        %v3755 = vrot.slane %v299, 2
        %v3756 = vsel %vm2183, %v3754, %v3755
        %v3757 = vrot.slane %v300, 2
        %v3758 = vsel %vm2183, %v3755, %v3757
        %v3759 = vrot.slane %v301, 2
        %v3760 = vrot.slane %v302, 2
        %v3761 = vsel %vm2183, %v3759, %v3760
        %v3762 = vrot.slane %v303, 2
        %v3763 = vsel %vm2183, %v3760, %v3762
        %v3764 = vrot.slane %v304, 2
        %v3765 = vrot.slane %v305, 2
        %v3766 = vsel %vm2183, %v3764, %v3765
        %v3767 = vrot.slane %v306, 2
        %v3768 = vsel %vm2183, %v3765, %v3767
        %v3769 = vrot.slane %v307, 2
        %v3770 = vrot.slane %v308, 2
        %v3771 = vsel %vm2183, %v3769, %v3770
        %v3772 = vrot.slane %v309, 2
        %v3773 = vsel %vm2183, %v3770, %v3772
        %v3774 = vrot.slane %v310, 2
        %v3775 = vrot.slane %v311, 2
        %v3776 = vsel %vm2183, %v3774, %v3775
        %v3777 = vrot.slane %v312, 2
        %v3778 = vsel %vm2183, %v3775, %v3777
        %v3779 = vrot.slane %v313, 2
        %v3780 = vrot.slane %v314, 2
        %v3781 = vsel %vm2183, %v3779, %v3780
        %v3782 = vrot.slane %v315, 2
        %v3783 = vsel %vm2183, %v3780, %v3782
        %v3784 = vrot.slane %v316, 2
        %v3785 = vrot.slane %v317, 2
        %v3786 = vsel %vm2183, %v3784, %v3785
        %v3787 = vrot.slane %v318, 2
        %v3788 = vsel %vm2183, %v3785, %v3787
        %v3789 = vrot.slane %v319, 2
        %v3790 = vrot.slane %v320, 2
        %v3791 = vsel %vm2183, %v3789, %v3790
        %v3792 = vrot.slane %v321, 2
        %v3793 = vsel %vm2183, %v3790, %v3792
        %v3794 = vrot.slane %v322, 2
        %v3795 = vrot.slane %v323, 2
        %v3796 = vsel %vm2183, %v3794, %v3795
        %v3797 = vrot.slane %v324, 2
        %v3798 = vsel %vm2183, %v3795, %v3797
        %v3802 = vrot.slane %v325, 1
        %v3803 = vrot.slane %v326, 1
        %v3804 = vsel %vm376, %v3802, %v3803
        %v3805 = vrot.slane %v327, 1
        %v3806 = vsel %vm376, %v3803, %v3805
        %v3807 = vrot.slane %v325, 2
        %v3808 = vrot.slane %v326, 2
        %v3809 = vsel %vm2183, %v3807, %v3808
        %v3810 = vrot.slane %v327, 2
        %v3811 = vsel %vm2183, %v3808, %v3810
        %3812 = vrot.lane.b32.xlu0 %v3711, 3
        %v3813 = vpop.permute.xlu0 %3812
        %3814 = vrot.lane.b32.xlu0 %v3713, 3
        %v3815 = vpop.permute.xlu0 %3814
        %3816 = vrot.lane.b32.xlu0 %v1248, 3
        %v3817 = vpop.permute.xlu0 %3816
        %3818 = vrot.lane.b32.xlu0 %v1250, 3
        %v3819 = vpop.permute.xlu0 %3818
        %3820 = vrot.lane.b32.xlu0 %v1253, 3
        %v3821 = vpop.permute.xlu0 %3820
        %3822 = vrot.lane.b32.xlu0 %v1255, 3
        %v3823 = vpop.permute.xlu0 %3822
        %3824 = vrot.lane.b32.xlu0 %v1258, 3
        %v3825 = vpop.permute.xlu0 %3824
        %3826 = vrot.lane.b32.xlu0 %v1260, 3
        %v3827 = vpop.permute.xlu0 %3826
        %3828 = vrot.lane.b32.xlu0 %v1263, 3
        %v3829 = vpop.permute.xlu0 %3828
        %3830 = vrot.lane.b32.xlu0 %v1265, 3
        %v3831 = vpop.permute.xlu0 %3830
        %3832 = vrot.lane.b32.xlu0 %v1268, 3
        %v3833 = vpop.permute.xlu0 %3832
        %3834 = vrot.lane.b32.xlu0 %v1270, 3
        %v3835 = vpop.permute.xlu0 %3834
        %3836 = vrot.lane.b32.xlu0 %v1273, 3
        %v3837 = vpop.permute.xlu0 %3836
        %3838 = vrot.lane.b32.xlu0 %v1275, 3
        %v3839 = vpop.permute.xlu0 %3838
        %3840 = vrot.lane.b32.xlu0 %v1278, 3
        %v3841 = vpop.permute.xlu0 %3840
        %3842 = vrot.lane.b32.xlu0 %v1280, 3
        %v3843 = vpop.permute.xlu0 %3842
        %3844 = vrot.lane.b32.xlu0 %v1283, 3
        %v3845 = vpop.permute.xlu0 %3844
        %3846 = vrot.lane.b32.xlu0 %v1285, 3
        %v3847 = vpop.permute.xlu0 %3846
        %3848 = vrot.lane.b32.xlu0 %v1288, 3
        %v3849 = vpop.permute.xlu0 %3848
        %3850 = vrot.lane.b32.xlu0 %v1290, 3
        %v3851 = vpop.permute.xlu0 %3850
        %3852 = vrot.lane.b32.xlu0 %v1293, 3
        %v3853 = vpop.permute.xlu0 %3852
        %3854 = vrot.lane.b32.xlu0 %v1295, 3
        %v3855 = vpop.permute.xlu0 %3854
        %3856 = vrot.lane.b32.xlu0 %v1298, 3
        %v3857 = vpop.permute.xlu0 %3856
        %3858 = vrot.lane.b32.xlu0 %v1300, 3
        %v3859 = vpop.permute.xlu0 %3858
        %3860 = vrot.lane.b32.xlu0 %v1303, 3
        %v3861 = vpop.permute.xlu0 %3860
        %3862 = vrot.lane.b32.xlu0 %v1305, 3
        %v3863 = vpop.permute.xlu0 %3862
        %3864 = vrot.lane.b32.xlu0 %v1308, 3
        %v3865 = vpop.permute.xlu0 %3864
        %3866 = vrot.lane.b32.xlu0 %v1310, 3
        %v3867 = vpop.permute.xlu0 %3866
        %3868 = vrot.lane.b32.xlu0 %v1313, 3
        %v3869 = vpop.permute.xlu0 %3868
        %3870 = vrot.lane.b32.xlu0 %v1315, 3
        %v3871 = vpop.permute.xlu0 %3870
        %3872 = vrot.lane.b32.xlu0 %v1318, 3
        %v3873 = vpop.permute.xlu0 %3872
        %3874 = vrot.lane.b32.xlu0 %v1320, 3
        %v3875 = vpop.permute.xlu0 %3874
        %3908 = vrot.lane.b32.xlu0 %v3716, 6
        %v3909 = vpop.permute.xlu0 %3908
        %3910 = vrot.lane.b32.xlu0 %v3718, 6
        %v3911 = vpop.permute.xlu0 %3910
        %3912 = vrot.lane.b32.xlu0 %v3721, 6
        %v3913 = vpop.permute.xlu0 %3912
        %3914 = vrot.lane.b32.xlu0 %v3723, 6
        %v3915 = vpop.permute.xlu0 %3914
        %3916 = vrot.lane.b32.xlu0 %v3726, 6
        %v3917 = vpop.permute.xlu0 %3916
        %3918 = vrot.lane.b32.xlu0 %v3728, 6
        %v3919 = vpop.permute.xlu0 %3918
        %3920 = vrot.lane.b32.xlu0 %v3731, 6
        %v3921 = vpop.permute.xlu0 %3920
        %3922 = vrot.lane.b32.xlu0 %v3733, 6
        %v3923 = vpop.permute.xlu0 %3922
        %3924 = vrot.lane.b32.xlu0 %v3736, 6
        %v3925 = vpop.permute.xlu0 %3924
        %3926 = vrot.lane.b32.xlu0 %v3738, 6
        %v3927 = vpop.permute.xlu0 %3926
        %3928 = vrot.lane.b32.xlu0 %v3741, 6
        %v3929 = vpop.permute.xlu0 %3928
        %3930 = vrot.lane.b32.xlu0 %v3743, 6
        %v3931 = vpop.permute.xlu0 %3930
        %3932 = vrot.lane.b32.xlu0 %v3746, 6
        %v3933 = vpop.permute.xlu0 %3932
        %3934 = vrot.lane.b32.xlu0 %v3748, 6
        %v3935 = vpop.permute.xlu0 %3934
        %3936 = vrot.lane.b32.xlu0 %v3751, 6
        %v3937 = vpop.permute.xlu0 %3936
        %3938 = vrot.lane.b32.xlu0 %v3753, 6
        %v3939 = vpop.permute.xlu0 %3938
        %3940 = vrot.lane.b32.xlu0 %v3756, 6
        %v3941 = vpop.permute.xlu0 %3940
        %3942 = vrot.lane.b32.xlu0 %v3758, 6
        %v3943 = vpop.permute.xlu0 %3942
        %3944 = vrot.lane.b32.xlu0 %v3761, 6
        %v3945 = vpop.permute.xlu0 %3944
        %3946 = vrot.lane.b32.xlu0 %v3763, 6
        %v3947 = vpop.permute.xlu0 %3946
        %3948 = vrot.lane.b32.xlu0 %v3766, 6
        %v3949 = vpop.permute.xlu0 %3948
        %3950 = vrot.lane.b32.xlu0 %v3768, 6
        %v3951 = vpop.permute.xlu0 %3950
        %3952 = vrot.lane.b32.xlu0 %v3771, 6
        %v3953 = vpop.permute.xlu0 %3952
        %3954 = vrot.lane.b32.xlu0 %v3773, 6
        %v3955 = vpop.permute.xlu0 %3954
        %3956 = vrot.lane.b32.xlu0 %v3776, 6
        %v3957 = vpop.permute.xlu0 %3956
        %3958 = vrot.lane.b32.xlu0 %v3778, 6
        %v3959 = vpop.permute.xlu0 %3958
        %3960 = vrot.lane.b32.xlu0 %v3781, 6
        %v3961 = vpop.permute.xlu0 %3960
        %3962 = vrot.lane.b32.xlu0 %v3783, 6
        %v3963 = vpop.permute.xlu0 %3962
        %3964 = vrot.lane.b32.xlu0 %v3786, 6
        %v3965 = vpop.permute.xlu0 %3964
        %3966 = vrot.lane.b32.xlu0 %v3788, 6
        %v3967 = vpop.permute.xlu0 %3966
        %3968 = vrot.lane.b32.xlu0 %v3791, 6
        %v3969 = vpop.permute.xlu0 %3968
        %3970 = vrot.lane.b32.xlu0 %v3793, 6
        %v3971 = vpop.permute.xlu0 %3970
        %4004 = vrot.lane.b32.xlu0 %v277, 9
        %v4005 = vpop.permute.xlu0 %4004
        %4006 = vrot.lane.b32.xlu0 %v278, 9
        %v4007 = vpop.permute.xlu0 %4006
        %4008 = vrot.lane.b32.xlu0 %v280, 9
        %v4009 = vpop.permute.xlu0 %4008
        %4010 = vrot.lane.b32.xlu0 %v281, 9
        %v4011 = vpop.permute.xlu0 %4010
        %4012 = vrot.lane.b32.xlu0 %v283, 9
        %v4013 = vpop.permute.xlu0 %4012
        %4014 = vrot.lane.b32.xlu0 %v284, 9
        %v4015 = vpop.permute.xlu0 %4014
        %4016 = vrot.lane.b32.xlu0 %v286, 9
        %v4017 = vpop.permute.xlu0 %4016
        %4018 = vrot.lane.b32.xlu0 %v287, 9
        %v4019 = vpop.permute.xlu0 %4018
        %4020 = vrot.lane.b32.xlu0 %v289, 9
        %v4021 = vpop.permute.xlu0 %4020
        %4022 = vrot.lane.b32.xlu0 %v290, 9
        %v4023 = vpop.permute.xlu0 %4022
        %4024 = vrot.lane.b32.xlu0 %v292, 9
        %v4025 = vpop.permute.xlu0 %4024
        %4026 = vrot.lane.b32.xlu0 %v293, 9
        %v4027 = vpop.permute.xlu0 %4026
        %4028 = vrot.lane.b32.xlu0 %v295, 9
        %v4029 = vpop.permute.xlu0 %4028
        %4030 = vrot.lane.b32.xlu0 %v296, 9
        %v4031 = vpop.permute.xlu0 %4030
        %4032 = vrot.lane.b32.xlu0 %v298, 9
        %v4033 = vpop.permute.xlu0 %4032
        %4034 = vrot.lane.b32.xlu0 %v299, 9
        %v4035 = vpop.permute.xlu0 %4034
        %4036 = vrot.lane.b32.xlu0 %v301, 9
        %v4037 = vpop.permute.xlu0 %4036
        %4038 = vrot.lane.b32.xlu0 %v302, 9
        %v4039 = vpop.permute.xlu0 %4038
        %4040 = vrot.lane.b32.xlu0 %v304, 9
        %v4041 = vpop.permute.xlu0 %4040
        %4042 = vrot.lane.b32.xlu0 %v305, 9
        %v4043 = vpop.permute.xlu0 %4042
        %4044 = vrot.lane.b32.xlu0 %v307, 9
        %v4045 = vpop.permute.xlu0 %4044
        %4046 = vrot.lane.b32.xlu0 %v308, 9
        %v4047 = vpop.permute.xlu0 %4046
        %4048 = vrot.lane.b32.xlu0 %v310, 9
        %v4049 = vpop.permute.xlu0 %4048
        %4050 = vrot.lane.b32.xlu0 %v311, 9
        %v4051 = vpop.permute.xlu0 %4050
        %4052 = vrot.lane.b32.xlu0 %v313, 9
        %v4053 = vpop.permute.xlu0 %4052
        %4054 = vrot.lane.b32.xlu0 %v314, 9
        %v4055 = vpop.permute.xlu0 %4054
        %4056 = vrot.lane.b32.xlu0 %v316, 9
        %v4057 = vpop.permute.xlu0 %4056
        %4058 = vrot.lane.b32.xlu0 %v317, 9
        %v4059 = vpop.permute.xlu0 %4058
        %4060 = vrot.lane.b32.xlu0 %v319, 9
        %v4061 = vpop.permute.xlu0 %4060
        %4062 = vrot.lane.b32.xlu0 %v320, 9
        %v4063 = vpop.permute.xlu0 %4062
        %4064 = vrot.lane.b32.xlu0 %v322, 9
        %v4065 = vpop.permute.xlu0 %4064
        %4066 = vrot.lane.b32.xlu0 %v323, 9
        %v4067 = vpop.permute.xlu0 %4066
        %4100 = vrot.lane.b32.xlu0 %v1248, 12
        %v4101 = vpop.permute.xlu0 %4100
        %4102 = vrot.lane.b32.xlu0 %v1250, 12
        %v4103 = vpop.permute.xlu0 %4102
        %4104 = vrot.lane.b32.xlu0 %v1253, 12
        %v4105 = vpop.permute.xlu0 %4104
        %4106 = vrot.lane.b32.xlu0 %v1255, 12
        %v4107 = vpop.permute.xlu0 %4106
        %4108 = vrot.lane.b32.xlu0 %v1258, 12
        %v4109 = vpop.permute.xlu0 %4108
        %4110 = vrot.lane.b32.xlu0 %v1260, 12
        %v4111 = vpop.permute.xlu0 %4110
        %4112 = vrot.lane.b32.xlu0 %v1263, 12
        %v4113 = vpop.permute.xlu0 %4112
        %4114 = vrot.lane.b32.xlu0 %v1265, 12
        %v4115 = vpop.permute.xlu0 %4114
        %4116 = vrot.lane.b32.xlu0 %v1268, 12
        %v4117 = vpop.permute.xlu0 %4116
        %4118 = vrot.lane.b32.xlu0 %v1270, 12
        %v4119 = vpop.permute.xlu0 %4118
        %4120 = vrot.lane.b32.xlu0 %v1273, 12
        %v4121 = vpop.permute.xlu0 %4120
        %4122 = vrot.lane.b32.xlu0 %v1275, 12
        %v4123 = vpop.permute.xlu0 %4122
        %4124 = vrot.lane.b32.xlu0 %v1278, 12
        %v4125 = vpop.permute.xlu0 %4124
        %4126 = vrot.lane.b32.xlu0 %v1280, 12
        %v4127 = vpop.permute.xlu0 %4126
        %4128 = vrot.lane.b32.xlu0 %v1283, 12
        %v4129 = vpop.permute.xlu0 %4128
        %4130 = vrot.lane.b32.xlu0 %v1285, 12
        %v4131 = vpop.permute.xlu0 %4130
        %4132 = vrot.lane.b32.xlu0 %v1288, 12
        %v4133 = vpop.permute.xlu0 %4132
        %4134 = vrot.lane.b32.xlu0 %v1290, 12
        %v4135 = vpop.permute.xlu0 %4134
        %4136 = vrot.lane.b32.xlu0 %v1293, 12
        %v4137 = vpop.permute.xlu0 %4136
        %4138 = vrot.lane.b32.xlu0 %v1295, 12
        %v4139 = vpop.permute.xlu0 %4138
        %4140 = vrot.lane.b32.xlu0 %v1298, 12
        %v4141 = vpop.permute.xlu0 %4140
        %4142 = vrot.lane.b32.xlu0 %v1300, 12
        %v4143 = vpop.permute.xlu0 %4142
        %4144 = vrot.lane.b32.xlu0 %v1303, 12
        %v4145 = vpop.permute.xlu0 %4144
        %4146 = vrot.lane.b32.xlu0 %v1305, 12
        %v4147 = vpop.permute.xlu0 %4146
        %4148 = vrot.lane.b32.xlu0 %v1308, 12
        %v4149 = vpop.permute.xlu0 %4148
        %4150 = vrot.lane.b32.xlu0 %v1310, 12
        %v4151 = vpop.permute.xlu0 %4150
        %4152 = vrot.lane.b32.xlu0 %v1313, 12
        %v4153 = vpop.permute.xlu0 %4152
        %4154 = vrot.lane.b32.xlu0 %v1315, 12
        %v4155 = vpop.permute.xlu0 %4154
        %4156 = vrot.lane.b32.xlu0 %v1318, 12
        %v4157 = vpop.permute.xlu0 %4156
        %4158 = vrot.lane.b32.xlu0 %v1320, 12
        %v4159 = vpop.permute.xlu0 %4158
        %4160 = vrot.lane.b32.xlu0 %v1323, 12
        %v4161 = vpop.permute.xlu0 %4160
        %4162 = vrot.lane.b32.xlu0 %v1325, 12
        %v4163 = vpop.permute.xlu0 %4162
        %4196 = vrot.lane.b32.xlu0 %v3721, 15
        %v4197 = vpop.permute.xlu0 %4196
        %4198 = vrot.lane.b32.xlu0 %v3723, 15
        %v4199 = vpop.permute.xlu0 %4198
        %4200 = vrot.lane.b32.xlu0 %v3726, 15
        %v4201 = vpop.permute.xlu0 %4200
        %4202 = vrot.lane.b32.xlu0 %v3728, 15
        %v4203 = vpop.permute.xlu0 %4202
        %4204 = vrot.lane.b32.xlu0 %v3731, 15
        %v4205 = vpop.permute.xlu0 %4204
        %4206 = vrot.lane.b32.xlu0 %v3733, 15
        %v4207 = vpop.permute.xlu0 %4206
        %4208 = vrot.lane.b32.xlu0 %v3736, 15
        %v4209 = vpop.permute.xlu0 %4208
        %4210 = vrot.lane.b32.xlu0 %v3738, 15
        %v4211 = vpop.permute.xlu0 %4210
        %4212 = vrot.lane.b32.xlu0 %v3741, 15
        %v4213 = vpop.permute.xlu0 %4212
        %4214 = vrot.lane.b32.xlu0 %v3743, 15
        %v4215 = vpop.permute.xlu0 %4214
        %4216 = vrot.lane.b32.xlu0 %v3746, 15
        %v4217 = vpop.permute.xlu0 %4216
        %4218 = vrot.lane.b32.xlu0 %v3748, 15
        %v4219 = vpop.permute.xlu0 %4218
        %4220 = vrot.lane.b32.xlu0 %v3751, 15
        %v4221 = vpop.permute.xlu0 %4220
        %4222 = vrot.lane.b32.xlu0 %v3753, 15
        %v4223 = vpop.permute.xlu0 %4222
        %4224 = vrot.lane.b32.xlu0 %v3756, 15
        %v4225 = vpop.permute.xlu0 %4224
        %4226 = vrot.lane.b32.xlu0 %v3758, 15
        %v4227 = vpop.permute.xlu0 %4226
        %4228 = vrot.lane.b32.xlu0 %v3761, 15
        %v4229 = vpop.permute.xlu0 %4228
        %4230 = vrot.lane.b32.xlu0 %v3763, 15
        %v4231 = vpop.permute.xlu0 %4230
        %4232 = vrot.lane.b32.xlu0 %v3766, 15
        %v4233 = vpop.permute.xlu0 %4232
        %4234 = vrot.lane.b32.xlu0 %v3768, 15
        %v4235 = vpop.permute.xlu0 %4234
        %4236 = vrot.lane.b32.xlu0 %v3771, 15
        %v4237 = vpop.permute.xlu0 %4236
        %4238 = vrot.lane.b32.xlu0 %v3773, 15
        %v4239 = vpop.permute.xlu0 %4238
        %4240 = vrot.lane.b32.xlu0 %v3776, 15
        %v4241 = vpop.permute.xlu0 %4240
        %4242 = vrot.lane.b32.xlu0 %v3778, 15
        %v4243 = vpop.permute.xlu0 %4242
        %4244 = vrot.lane.b32.xlu0 %v3781, 15
        %v4245 = vpop.permute.xlu0 %4244
        %4246 = vrot.lane.b32.xlu0 %v3783, 15
        %v4247 = vpop.permute.xlu0 %4246
        %4248 = vrot.lane.b32.xlu0 %v3786, 15
        %v4249 = vpop.permute.xlu0 %4248
        %4250 = vrot.lane.b32.xlu0 %v3788, 15
        %v4251 = vpop.permute.xlu0 %4250
        %4252 = vrot.lane.b32.xlu0 %v3791, 15
        %v4253 = vpop.permute.xlu0 %4252
        %4254 = vrot.lane.b32.xlu0 %v3793, 15
        %v4255 = vpop.permute.xlu0 %4254
        %4256 = vrot.lane.b32.xlu0 %v3796, 15
        %v4257 = vpop.permute.xlu0 %4256
        %4258 = vrot.lane.b32.xlu0 %v3798, 15
        %v4259 = vpop.permute.xlu0 %4258
        %4292 = vrot.lane.b32.xlu0 %v280, 18
        %v4293 = vpop.permute.xlu0 %4292
        %4294 = vrot.lane.b32.xlu0 %v281, 18
        %v4295 = vpop.permute.xlu0 %4294
        %4296 = vrot.lane.b32.xlu0 %v283, 18
        %v4297 = vpop.permute.xlu0 %4296
        %4298 = vrot.lane.b32.xlu0 %v284, 18
        %v4299 = vpop.permute.xlu0 %4298
        %4300 = vrot.lane.b32.xlu0 %v286, 18
        %v4301 = vpop.permute.xlu0 %4300
        %4302 = vrot.lane.b32.xlu0 %v287, 18
        %v4303 = vpop.permute.xlu0 %4302
        %4304 = vrot.lane.b32.xlu0 %v289, 18
        %v4305 = vpop.permute.xlu0 %4304
        %4306 = vrot.lane.b32.xlu0 %v290, 18
        %v4307 = vpop.permute.xlu0 %4306
        %4308 = vrot.lane.b32.xlu0 %v292, 18
        %v4309 = vpop.permute.xlu0 %4308
        %4310 = vrot.lane.b32.xlu0 %v293, 18
        %v4311 = vpop.permute.xlu0 %4310
        %4312 = vrot.lane.b32.xlu0 %v295, 18
        %v4313 = vpop.permute.xlu0 %4312
        %4314 = vrot.lane.b32.xlu0 %v296, 18
        %v4315 = vpop.permute.xlu0 %4314
        %4316 = vrot.lane.b32.xlu0 %v298, 18
        %v4317 = vpop.permute.xlu0 %4316
        %4318 = vrot.lane.b32.xlu0 %v299, 18
        %v4319 = vpop.permute.xlu0 %4318
        %4320 = vrot.lane.b32.xlu0 %v301, 18
        %v4321 = vpop.permute.xlu0 %4320
        %4322 = vrot.lane.b32.xlu0 %v302, 18
        %v4323 = vpop.permute.xlu0 %4322
        %4324 = vrot.lane.b32.xlu0 %v304, 18
        %v4325 = vpop.permute.xlu0 %4324
        %4326 = vrot.lane.b32.xlu0 %v305, 18
        %v4327 = vpop.permute.xlu0 %4326
        %4328 = vrot.lane.b32.xlu0 %v307, 18
        %v4329 = vpop.permute.xlu0 %4328
        %4330 = vrot.lane.b32.xlu0 %v308, 18
        %v4331 = vpop.permute.xlu0 %4330
        %4332 = vrot.lane.b32.xlu0 %v310, 18
        %v4333 = vpop.permute.xlu0 %4332
        %4334 = vrot.lane.b32.xlu0 %v311, 18
        %v4335 = vpop.permute.xlu0 %4334
        %4336 = vrot.lane.b32.xlu0 %v313, 18
        %v4337 = vpop.permute.xlu0 %4336
        %4338 = vrot.lane.b32.xlu0 %v314, 18
        %v4339 = vpop.permute.xlu0 %4338
        %4340 = vrot.lane.b32.xlu0 %v316, 18
        %v4341 = vpop.permute.xlu0 %4340
        %4342 = vrot.lane.b32.xlu0 %v317, 18
        %v4343 = vpop.permute.xlu0 %4342
        %4344 = vrot.lane.b32.xlu0 %v319, 18
        %v4345 = vpop.permute.xlu0 %4344
        %4346 = vrot.lane.b32.xlu0 %v320, 18
        %v4347 = vpop.permute.xlu0 %4346
        %4348 = vrot.lane.b32.xlu0 %v322, 18
        %v4349 = vpop.permute.xlu0 %4348
        %4350 = vrot.lane.b32.xlu0 %v323, 18
        %v4351 = vpop.permute.xlu0 %4350
        %4352 = vrot.lane.b32.xlu0 %v325, 18
        %v4353 = vpop.permute.xlu0 %4352
        %4354 = vrot.lane.b32.xlu0 %v326, 18
        %v4355 = vpop.permute.xlu0 %4354
        %4388 = vrot.lane.b32.xlu0 %v1253, 21
        %v4389 = vpop.permute.xlu0 %4388
        %4390 = vrot.lane.b32.xlu0 %v1255, 21
        %v4391 = vpop.permute.xlu0 %4390
        %4392 = vrot.lane.b32.xlu0 %v1258, 21
        %v4393 = vpop.permute.xlu0 %4392
        %4394 = vrot.lane.b32.xlu0 %v1260, 21
        %v4395 = vpop.permute.xlu0 %4394
        %4396 = vrot.lane.b32.xlu0 %v1263, 21
        %v4397 = vpop.permute.xlu0 %4396
        %4398 = vrot.lane.b32.xlu0 %v1265, 21
        %v4399 = vpop.permute.xlu0 %4398
        %4400 = vrot.lane.b32.xlu0 %v1268, 21
        %v4401 = vpop.permute.xlu0 %4400
        %4402 = vrot.lane.b32.xlu0 %v1270, 21
        %v4403 = vpop.permute.xlu0 %4402
        %4404 = vrot.lane.b32.xlu0 %v1273, 21
        %v4405 = vpop.permute.xlu0 %4404
        %4406 = vrot.lane.b32.xlu0 %v1275, 21
        %v4407 = vpop.permute.xlu0 %4406
        %4408 = vrot.lane.b32.xlu0 %v1278, 21
        %v4409 = vpop.permute.xlu0 %4408
        %4410 = vrot.lane.b32.xlu0 %v1280, 21
        %v4411 = vpop.permute.xlu0 %4410
        %4412 = vrot.lane.b32.xlu0 %v1283, 21
        %v4413 = vpop.permute.xlu0 %4412
        %4414 = vrot.lane.b32.xlu0 %v1285, 21
        %v4415 = vpop.permute.xlu0 %4414
        %4416 = vrot.lane.b32.xlu0 %v1288, 21
        %v4417 = vpop.permute.xlu0 %4416
        %4418 = vrot.lane.b32.xlu0 %v1290, 21
        %v4419 = vpop.permute.xlu0 %4418
        %4420 = vrot.lane.b32.xlu0 %v1293, 21
        %v4421 = vpop.permute.xlu0 %4420
        %4422 = vrot.lane.b32.xlu0 %v1295, 21
        %v4423 = vpop.permute.xlu0 %4422
        %4424 = vrot.lane.b32.xlu0 %v1298, 21
        %v4425 = vpop.permute.xlu0 %4424
        %4426 = vrot.lane.b32.xlu0 %v1300, 21
        %v4427 = vpop.permute.xlu0 %4426
        %4428 = vrot.lane.b32.xlu0 %v1303, 21
        %v4429 = vpop.permute.xlu0 %4428
        %4430 = vrot.lane.b32.xlu0 %v1305, 21
        %v4431 = vpop.permute.xlu0 %4430
        %4432 = vrot.lane.b32.xlu0 %v1308, 21
        %v4433 = vpop.permute.xlu0 %4432
        %4434 = vrot.lane.b32.xlu0 %v1310, 21
        %v4435 = vpop.permute.xlu0 %4434
        %4436 = vrot.lane.b32.xlu0 %v1313, 21
        %v4437 = vpop.permute.xlu0 %4436
        %4438 = vrot.lane.b32.xlu0 %v1315, 21
        %v4439 = vpop.permute.xlu0 %4438
        %4440 = vrot.lane.b32.xlu0 %v1318, 21
        %v4441 = vpop.permute.xlu0 %4440
        %4442 = vrot.lane.b32.xlu0 %v1320, 21
        %v4443 = vpop.permute.xlu0 %4442
        %4444 = vrot.lane.b32.xlu0 %v1323, 21
        %v4445 = vpop.permute.xlu0 %4444
        %4446 = vrot.lane.b32.xlu0 %v1325, 21
        %v4447 = vpop.permute.xlu0 %4446
        %4448 = vrot.lane.b32.xlu0 %v3804, 21
        %v4449 = vpop.permute.xlu0 %4448
        %4450 = vrot.lane.b32.xlu0 %v3806, 21
        %v4451 = vpop.permute.xlu0 %4450
        %4484 = vrot.lane.b32.xlu0 %v3726, 24
        %v4485 = vpop.permute.xlu0 %4484
        %4486 = vrot.lane.b32.xlu0 %v3728, 24
        %v4487 = vpop.permute.xlu0 %4486
        %4488 = vrot.lane.b32.xlu0 %v3731, 24
        %v4489 = vpop.permute.xlu0 %4488
        %4490 = vrot.lane.b32.xlu0 %v3733, 24
        %v4491 = vpop.permute.xlu0 %4490
        %4492 = vrot.lane.b32.xlu0 %v3736, 24
        %v4493 = vpop.permute.xlu0 %4492
        %4494 = vrot.lane.b32.xlu0 %v3738, 24
        %v4495 = vpop.permute.xlu0 %4494
        %4496 = vrot.lane.b32.xlu0 %v3741, 24
        %v4497 = vpop.permute.xlu0 %4496
        %4498 = vrot.lane.b32.xlu0 %v3743, 24
        %v4499 = vpop.permute.xlu0 %4498
        %4500 = vrot.lane.b32.xlu0 %v3746, 24
        %v4501 = vpop.permute.xlu0 %4500
        %4502 = vrot.lane.b32.xlu0 %v3748, 24
        %v4503 = vpop.permute.xlu0 %4502
        %4504 = vrot.lane.b32.xlu0 %v3751, 24
        %v4505 = vpop.permute.xlu0 %4504
        %4506 = vrot.lane.b32.xlu0 %v3753, 24
        %v4507 = vpop.permute.xlu0 %4506
        %4508 = vrot.lane.b32.xlu0 %v3756, 24
        %v4509 = vpop.permute.xlu0 %4508
        %4510 = vrot.lane.b32.xlu0 %v3758, 24
        %v4511 = vpop.permute.xlu0 %4510
        %4512 = vrot.lane.b32.xlu0 %v3761, 24
        %v4513 = vpop.permute.xlu0 %4512
        %4514 = vrot.lane.b32.xlu0 %v3763, 24
        %v4515 = vpop.permute.xlu0 %4514
        %4516 = vrot.lane.b32.xlu0 %v3766, 24
        %v4517 = vpop.permute.xlu0 %4516
        %4518 = vrot.lane.b32.xlu0 %v3768, 24
        %v4519 = vpop.permute.xlu0 %4518
        %4520 = vrot.lane.b32.xlu0 %v3771, 24
        %v4521 = vpop.permute.xlu0 %4520
        %4522 = vrot.lane.b32.xlu0 %v3773, 24
        %v4523 = vpop.permute.xlu0 %4522
        %4524 = vrot.lane.b32.xlu0 %v3776, 24
        %v4525 = vpop.permute.xlu0 %4524
        %4526 = vrot.lane.b32.xlu0 %v3778, 24
        %v4527 = vpop.permute.xlu0 %4526
        %4528 = vrot.lane.b32.xlu0 %v3781, 24
        %v4529 = vpop.permute.xlu0 %4528
        %4530 = vrot.lane.b32.xlu0 %v3783, 24
        %v4531 = vpop.permute.xlu0 %4530
        %4532 = vrot.lane.b32.xlu0 %v3786, 24
        %v4533 = vpop.permute.xlu0 %4532
        %4534 = vrot.lane.b32.xlu0 %v3788, 24
        %v4535 = vpop.permute.xlu0 %4534
        %4536 = vrot.lane.b32.xlu0 %v3791, 24
        %v4537 = vpop.permute.xlu0 %4536
        %4538 = vrot.lane.b32.xlu0 %v3793, 24
        %v4539 = vpop.permute.xlu0 %4538
        %4540 = vrot.lane.b32.xlu0 %v3796, 24
        %v4541 = vpop.permute.xlu0 %4540
        %4542 = vrot.lane.b32.xlu0 %v3798, 24
        %v4543 = vpop.permute.xlu0 %4542
        %4544 = vrot.lane.b32.xlu0 %v3809, 24
        %v4545 = vpop.permute.xlu0 %4544
        %4546 = vrot.lane.b32.xlu0 %v3811, 24
        %v4547 = vpop.permute.xlu0 %4546
        %v4580 = vsel %vm1153, %v274, %v3813
        %v4581 = vsel %vm1153, %v275, %v3815
        %v4582 = vsel %vm1153, %v277, %v3817
        %v4583 = vsel %vm1153, %v278, %v3819
        %v4584 = vsel %vm1153, %v280, %v3821
        %v4585 = vsel %vm1153, %v281, %v3823
        %v4586 = vsel %vm1153, %v283, %v3825
        %v4587 = vsel %vm1153, %v284, %v3827
        %v4588 = vsel %vm1153, %v286, %v3829
        %v4589 = vsel %vm1153, %v287, %v3831
        %v4590 = vsel %vm1153, %v289, %v3833
        %v4591 = vsel %vm1153, %v290, %v3835
        %v4592 = vsel %vm1153, %v292, %v3837
        %v4593 = vsel %vm1153, %v293, %v3839
        %v4594 = vsel %vm1153, %v295, %v3841
        %v4595 = vsel %vm1153, %v296, %v3843
        %v4596 = vsel %vm1153, %v298, %v3845
        %v4597 = vsel %vm1153, %v299, %v3847
        %v4598 = vsel %vm1153, %v301, %v3849
        %v4599 = vsel %vm1153, %v302, %v3851
        %v4600 = vsel %vm1153, %v304, %v3853
        %v4601 = vsel %vm1153, %v305, %v3855
        %v4602 = vsel %vm1153, %v307, %v3857
        %v4603 = vsel %vm1153, %v308, %v3859
        %v4604 = vsel %vm1153, %v310, %v3861
        %v4605 = vsel %vm1153, %v311, %v3863
        %v4606 = vsel %vm1153, %v313, %v3865
        %v4607 = vsel %vm1153, %v314, %v3867
        %v4608 = vsel %vm1153, %v316, %v3869
        %v4609 = vsel %vm1153, %v317, %v3871
        %v4610 = vsel %vm1153, %v319, %v3873
        %v4611 = vsel %vm1153, %v320, %v3875
        %v4612 = vsel %vm1156, %v4580, %v3909
        %v4613 = vsel %vm1156, %v4581, %v3911
        %v4614 = vsel %vm1156, %v4582, %v3913
        %v4615 = vsel %vm1156, %v4583, %v3915
        %v4616 = vsel %vm1156, %v4584, %v3917
        %v4617 = vsel %vm1156, %v4585, %v3919
        %v4618 = vsel %vm1156, %v4586, %v3921
        %v4619 = vsel %vm1156, %v4587, %v3923
        %v4620 = vsel %vm1156, %v4588, %v3925
        %v4621 = vsel %vm1156, %v4589, %v3927
        %v4622 = vsel %vm1156, %v4590, %v3929
        %v4623 = vsel %vm1156, %v4591, %v3931
        %v4624 = vsel %vm1156, %v4592, %v3933
        %v4625 = vsel %vm1156, %v4593, %v3935
        %v4626 = vsel %vm1156, %v4594, %v3937
        %v4627 = vsel %vm1156, %v4595, %v3939
        %v4628 = vsel %vm1156, %v4596, %v3941
        %v4629 = vsel %vm1156, %v4597, %v3943
        %v4630 = vsel %vm1156, %v4598, %v3945
        %v4631 = vsel %vm1156, %v4599, %v3947
        %v4632 = vsel %vm1156, %v4600, %v3949
        %v4633 = vsel %vm1156, %v4601, %v3951
        %v4634 = vsel %vm1156, %v4602, %v3953
        %v4635 = vsel %vm1156, %v4603, %v3955
        %v4636 = vsel %vm1156, %v4604, %v3957
        %v4637 = vsel %vm1156, %v4605, %v3959
        %v4638 = vsel %vm1156, %v4606, %v3961
        %v4639 = vsel %vm1156, %v4607, %v3963
        %v4640 = vsel %vm1156, %v4608, %v3965
        %v4641 = vsel %vm1156, %v4609, %v3967
        %v4642 = vsel %vm1156, %v4610, %v3969
        %v4643 = vsel %vm1156, %v4611, %v3971
        %v4644 = vsel %vm1159, %v4612, %v4005
        %v4645 = vsel %vm1159, %v4613, %v4007
        %v4646 = vsel %vm1159, %v4614, %v4009
        %v4647 = vsel %vm1159, %v4615, %v4011
        %v4648 = vsel %vm1159, %v4616, %v4013
        %v4649 = vsel %vm1159, %v4617, %v4015
        %v4650 = vsel %vm1159, %v4618, %v4017
        %v4651 = vsel %vm1159, %v4619, %v4019
        %v4652 = vsel %vm1159, %v4620, %v4021
        %v4653 = vsel %vm1159, %v4621, %v4023
        %v4654 = vsel %vm1159, %v4622, %v4025
        %v4655 = vsel %vm1159, %v4623, %v4027
        %v4656 = vsel %vm1159, %v4624, %v4029
        %v4657 = vsel %vm1159, %v4625, %v4031
        %v4658 = vsel %vm1159, %v4626, %v4033
        %v4659 = vsel %vm1159, %v4627, %v4035
        %v4660 = vsel %vm1159, %v4628, %v4037
        %v4661 = vsel %vm1159, %v4629, %v4039
        %v4662 = vsel %vm1159, %v4630, %v4041
        %v4663 = vsel %vm1159, %v4631, %v4043
        %v4664 = vsel %vm1159, %v4632, %v4045
        %v4665 = vsel %vm1159, %v4633, %v4047
        %v4666 = vsel %vm1159, %v4634, %v4049
        %v4667 = vsel %vm1159, %v4635, %v4051
        %v4668 = vsel %vm1159, %v4636, %v4053
        %v4669 = vsel %vm1159, %v4637, %v4055
        %v4670 = vsel %vm1159, %v4638, %v4057
        %v4671 = vsel %vm1159, %v4639, %v4059
        %v4672 = vsel %vm1159, %v4640, %v4061
        %v4673 = vsel %vm1159, %v4641, %v4063
        %v4674 = vsel %vm1159, %v4642, %v4065
        %v4675 = vsel %vm1159, %v4643, %v4067
        %v4676 = vsel %vm1162, %v4644, %v4101
        %v4677 = vsel %vm1162, %v4645, %v4103
        %v4678 = vsel %vm1162, %v4646, %v4105
        %v4679 = vsel %vm1162, %v4647, %v4107
        %v4680 = vsel %vm1162, %v4648, %v4109
        %v4681 = vsel %vm1162, %v4649, %v4111
        %v4682 = vsel %vm1162, %v4650, %v4113
        %v4683 = vsel %vm1162, %v4651, %v4115
        %v4684 = vsel %vm1162, %v4652, %v4117
        %v4685 = vsel %vm1162, %v4653, %v4119
        %v4686 = vsel %vm1162, %v4654, %v4121
        %v4687 = vsel %vm1162, %v4655, %v4123
        %v4688 = vsel %vm1162, %v4656, %v4125
        %v4689 = vsel %vm1162, %v4657, %v4127
        %v4690 = vsel %vm1162, %v4658, %v4129
        %v4691 = vsel %vm1162, %v4659, %v4131
        %v4692 = vsel %vm1162, %v4660, %v4133
        %v4693 = vsel %vm1162, %v4661, %v4135
        %v4694 = vsel %vm1162, %v4662, %v4137
        %v4695 = vsel %vm1162, %v4663, %v4139
        %v4696 = vsel %vm1162, %v4664, %v4141
        %v4697 = vsel %vm1162, %v4665, %v4143
        %v4698 = vsel %vm1162, %v4666, %v4145
        %v4699 = vsel %vm1162, %v4667, %v4147
        %v4700 = vsel %vm1162, %v4668, %v4149
        %v4701 = vsel %vm1162, %v4669, %v4151
        %v4702 = vsel %vm1162, %v4670, %v4153
        %v4703 = vsel %vm1162, %v4671, %v4155
        %v4704 = vsel %vm1162, %v4672, %v4157
        %v4705 = vsel %vm1162, %v4673, %v4159
        %v4706 = vsel %vm1162, %v4674, %v4161
        %v4707 = vsel %vm1162, %v4675, %v4163
        %v4708 = vsel %vm1165, %v4676, %v4197
        %v4709 = vsel %vm1165, %v4677, %v4199
        %v4710 = vsel %vm1165, %v4678, %v4201
        %v4711 = vsel %vm1165, %v4679, %v4203
        %v4712 = vsel %vm1165, %v4680, %v4205
        %v4713 = vsel %vm1165, %v4681, %v4207
        %v4714 = vsel %vm1165, %v4682, %v4209
        %v4715 = vsel %vm1165, %v4683, %v4211
        %v4716 = vsel %vm1165, %v4684, %v4213
        %v4717 = vsel %vm1165, %v4685, %v4215
        %v4718 = vsel %vm1165, %v4686, %v4217
        %v4719 = vsel %vm1165, %v4687, %v4219
        %v4720 = vsel %vm1165, %v4688, %v4221
        %v4721 = vsel %vm1165, %v4689, %v4223
        %v4722 = vsel %vm1165, %v4690, %v4225
        %v4723 = vsel %vm1165, %v4691, %v4227
        %v4724 = vsel %vm1165, %v4692, %v4229
        %v4725 = vsel %vm1165, %v4693, %v4231
        %v4726 = vsel %vm1165, %v4694, %v4233
        %v4727 = vsel %vm1165, %v4695, %v4235
        %v4728 = vsel %vm1165, %v4696, %v4237
        %v4729 = vsel %vm1165, %v4697, %v4239
        %v4730 = vsel %vm1165, %v4698, %v4241
        %v4731 = vsel %vm1165, %v4699, %v4243
        %v4732 = vsel %vm1165, %v4700, %v4245
        %v4733 = vsel %vm1165, %v4701, %v4247
        %v4734 = vsel %vm1165, %v4702, %v4249
        %v4735 = vsel %vm1165, %v4703, %v4251
        %v4736 = vsel %vm1165, %v4704, %v4253
        %v4737 = vsel %vm1165, %v4705, %v4255
        %v4738 = vsel %vm1165, %v4706, %v4257
        %v4739 = vsel %vm1165, %v4707, %v4259
        %v4740 = vsel %vm1168, %v4708, %v4293
        %v4741 = vsel %vm1168, %v4709, %v4295
        %v4742 = vsel %vm1168, %v4710, %v4297
        %v4743 = vsel %vm1168, %v4711, %v4299
        %v4744 = vsel %vm1168, %v4712, %v4301
        %v4745 = vsel %vm1168, %v4713, %v4303
        %v4746 = vsel %vm1168, %v4714, %v4305
        %v4747 = vsel %vm1168, %v4715, %v4307
        %v4748 = vsel %vm1168, %v4716, %v4309
        %v4749 = vsel %vm1168, %v4717, %v4311
        %v4750 = vsel %vm1168, %v4718, %v4313
        %v4751 = vsel %vm1168, %v4719, %v4315
        %v4752 = vsel %vm1168, %v4720, %v4317
        %v4753 = vsel %vm1168, %v4721, %v4319
        %v4754 = vsel %vm1168, %v4722, %v4321
        %v4755 = vsel %vm1168, %v4723, %v4323
        %v4756 = vsel %vm1168, %v4724, %v4325
        %v4757 = vsel %vm1168, %v4725, %v4327
        %v4758 = vsel %vm1168, %v4726, %v4329
        %v4759 = vsel %vm1168, %v4727, %v4331
        %v4760 = vsel %vm1168, %v4728, %v4333
        %v4761 = vsel %vm1168, %v4729, %v4335
        %v4762 = vsel %vm1168, %v4730, %v4337
        %v4763 = vsel %vm1168, %v4731, %v4339
        %v4764 = vsel %vm1168, %v4732, %v4341
        %v4765 = vsel %vm1168, %v4733, %v4343
        %v4766 = vsel %vm1168, %v4734, %v4345
        %v4767 = vsel %vm1168, %v4735, %v4347
        %v4768 = vsel %vm1168, %v4736, %v4349
        %v4769 = vsel %vm1168, %v4737, %v4351
        %v4770 = vsel %vm1168, %v4738, %v4353
        %v4771 = vsel %vm1168, %v4739, %v4355
        %v4772 = vsel %vm1171, %v4740, %v4389
        %v4773 = vsel %vm1171, %v4741, %v4391
        %v4774 = vsel %vm1171, %v4742, %v4393
        %v4775 = vsel %vm1171, %v4743, %v4395
        %v4776 = vsel %vm1171, %v4744, %v4397
        %v4777 = vsel %vm1171, %v4745, %v4399
        %v4778 = vsel %vm1171, %v4746, %v4401
        %v4779 = vsel %vm1171, %v4747, %v4403
        %v4780 = vsel %vm1171, %v4748, %v4405
        %v4781 = vsel %vm1171, %v4749, %v4407
        %v4782 = vsel %vm1171, %v4750, %v4409
        %v4783 = vsel %vm1171, %v4751, %v4411
        %v4784 = vsel %vm1171, %v4752, %v4413
        %v4785 = vsel %vm1171, %v4753, %v4415
        %v4786 = vsel %vm1171, %v4754, %v4417
        %v4787 = vsel %vm1171, %v4755, %v4419
        %v4788 = vsel %vm1171, %v4756, %v4421
        %v4789 = vsel %vm1171, %v4757, %v4423
        %v4790 = vsel %vm1171, %v4758, %v4425
        %v4791 = vsel %vm1171, %v4759, %v4427
        %v4792 = vsel %vm1171, %v4760, %v4429
        %v4793 = vsel %vm1171, %v4761, %v4431
        %v4794 = vsel %vm1171, %v4762, %v4433
        %v4795 = vsel %vm1171, %v4763, %v4435
        %v4796 = vsel %vm1171, %v4764, %v4437
        %v4797 = vsel %vm1171, %v4765, %v4439
        %v4798 = vsel %vm1171, %v4766, %v4441
        %v4799 = vsel %vm1171, %v4767, %v4443
        %v4800 = vsel %vm1171, %v4768, %v4445
        %v4801 = vsel %vm1171, %v4769, %v4447
        %v4802 = vsel %vm1171, %v4770, %v4449
        %v4803 = vsel %vm1171, %v4771, %v4451
        %v4804 = vsel %vm1174, %v4772, %v4485
        %v4805 = vsel %vm1174, %v4773, %v4487
        %v4806 = vsel %vm1174, %v4774, %v4489
        %v4807 = vsel %vm1174, %v4775, %v4491
        %v4808 = vsel %vm1174, %v4776, %v4493
        %v4809 = vsel %vm1174, %v4777, %v4495
        %v4810 = vsel %vm1174, %v4778, %v4497
        %v4811 = vsel %vm1174, %v4779, %v4499
        %v4812 = vsel %vm1174, %v4780, %v4501
        %v4813 = vsel %vm1174, %v4781, %v4503
        %v4814 = vsel %vm1174, %v4782, %v4505
        %v4815 = vsel %vm1174, %v4783, %v4507
        %v4816 = vsel %vm1174, %v4784, %v4509
        %v4817 = vsel %vm1174, %v4785, %v4511
        %v4818 = vsel %vm1174, %v4786, %v4513
        %v4819 = vsel %vm1174, %v4787, %v4515
        %v4820 = vsel %vm1174, %v4788, %v4517
        %v4821 = vsel %vm1174, %v4789, %v4519
        %v4822 = vsel %vm1174, %v4790, %v4521
        %v4823 = vsel %vm1174, %v4791, %v4523
        %v4824 = vsel %vm1174, %v4792, %v4525
        %v4825 = vsel %vm1174, %v4793, %v4527
        %v4826 = vsel %vm1174, %v4794, %v4529
        %v4827 = vsel %vm1174, %v4795, %v4531
        %v4828 = vsel %vm1174, %v4796, %v4533
        %v4829 = vsel %vm1174, %v4797, %v4535
        %v4830 = vsel %vm1174, %v4798, %v4537
        %v4831 = vsel %vm1174, %v4799, %v4539
        %v4832 = vsel %vm1174, %v4800, %v4541
        %v4833 = vsel %vm1174, %v4801, %v4543
        %v4834 = vsel %vm1174, %v4802, %v4545
        %v4835 = vsel %vm1174, %v4803, %v4547
        %v4837 = vsel %vm1177, %v4804, 0
        %v4840 = vsel %vm1177, %v4805, 0
        %v4843 = vsel %vm1177, %v4806, 0
        %v4846 = vsel %vm1177, %v4807, 0
        %v4849 = vsel %vm1177, %v4808, 0
        %v4852 = vsel %vm1177, %v4809, 0
        %v4855 = vsel %vm1177, %v4810, 0
        %v4858 = vsel %vm1177, %v4811, 0
        %v4861 = vsel %vm1177, %v4812, 0
        %v4864 = vsel %vm1177, %v4813, 0
        %v4867 = vsel %vm1177, %v4814, 0
        %v4870 = vsel %vm1177, %v4815, 0
        %v4873 = vsel %vm1177, %v4816, 0
        %v4876 = vsel %vm1177, %v4817, 0
        %v4879 = vsel %vm1177, %v4818, 0
        %v4882 = vsel %vm1177, %v4819, 0
        %v4885 = vsel %vm1177, %v4820, 0
        %v4888 = vsel %vm1177, %v4821, 0
        %v4891 = vsel %vm1177, %v4822, 0
        %v4894 = vsel %vm1177, %v4823, 0
        %v4897 = vsel %vm1177, %v4824, 0
        %v4900 = vsel %vm1177, %v4825, 0
        %v4903 = vsel %vm1177, %v4826, 0
        %v4906 = vsel %vm1177, %v4827, 0
        %v4909 = vsel %vm1177, %v4828, 0
        %v4912 = vsel %vm1177, %v4829, 0
        %v4915 = vsel %vm1177, %v4830, 0
        %v4918 = vsel %vm1177, %v4831, 0
        %v4921 = vsel %vm1177, %v4832, 0
        %v4924 = vsel %vm1177, %v4833, 0
        %v4927 = vsel %vm1177, %v4834, 0
        %v4930 = vsel %vm1177, %v4835, 0
        %4932 = vmatprep.subr.mxu0 0.0
        %4933 = vmatpush1.msra.mxu0 0.0
        %4934 = vmatprep.subr.mxu0 0.0
        %4935 = vmatpush1.msra.mxu0 0.0
        %4936 = vmatprep.subr.mxu0 0.0
        %4937 = vmatpush1.msra.mxu0 0.0
        %4938 = vmatprep.subr.mxu0 0.0
        %4939 = vmatpush1.msra.mxu0 0.0
        %4940 = vmatprep.subr.mxu0 0.0
        %4941 = vmatpush1.msra.mxu0 0.0
        %4942 = vmatprep.subr.mxu0 0.0
        %4943 = vmatpush1.msra.mxu0 0.0
        %4944 = vmatprep.subr.mxu0 0.0
        %4945 = vmatpush1.msra.mxu0 0.0
        %4946 = vmatprep.subr.mxu0 0.0
        %4947 = vmatpush1.msra.mxu0 0.0
        %4948 = vmatprep.subr.mxu0 0.0
        %4949 = vmatpush1.msra.mxu0 0.0
        %4950 = vmatprep.subr.mxu0 0.0
        %4951 = vmatpush1.msra.mxu0 0.0
        %4952 = vmatprep.subr.mxu0 0.0
        %4953 = vmatpush1.msra.mxu0 0.0
        %4954 = vmatprep.subr.mxu0 0.0
        %4955 = vmatpush1.msra.mxu0 0.0
        %4956 = vmatprep.subr.mxu0 0.0
        %4957 = vmatpush1.msra.mxu0 %v3415
        %4958 = vmatprep.subr.mxu0 0.0
        %4959 = vmatpush1.msra.mxu0 %v3308
        %4960 = vmatprep.subr.mxu0 0.0
        %4961 = vmatpush1.msra.mxu0 %v3307
        %4962 = vmatprep.subr.mxu0 0.0
        %4963 = vmatpush1.msra.mxu0 %v3306
        %4964 = vmatprep.subr.mxu0 0.0
        %4965 = vmatpush2.msra.mxu0 0.0
        %4966 = vmatprep.subr.mxu0 0.0
        %4967 = vmatpush2.msra.mxu0 0.0
        %4968 = vmatprep.subr.mxu0 0.0
        %4969 = vmatpush2.msra.mxu0 0.0
        %4970 = vmatprep.subr.mxu0 0.0
        %4971 = vmatpush2.msra.mxu0 0.0
        %4972 = vmatprep.subr.mxu0 0.0
        %4973 = vmatpush2.msra.mxu0 0.0
        %4974 = vmatprep.subr.mxu0 0.0
        %4975 = vmatpush2.msra.mxu0 0.0
        %4976 = vmatprep.subr.mxu0 0.0
        %4977 = vmatpush2.msra.mxu0 0.0
        %4978 = vmatprep.subr.mxu0 0.0
        %4979 = vmatpush2.msra.mxu0 0.0
        %4980 = vmatprep.subr.mxu0 0.0
        %4981 = vmatpush2.msra.mxu0 0.0
        %4982 = vmatprep.subr.mxu0 0.0
        %4983 = vmatpush2.msra.mxu0 0.0
        %4984 = vmatprep.subr.mxu0 0.0
        %4985 = vmatpush2.msra.mxu0 0.0
        %4986 = vmatprep.subr.mxu0 0.0
        %4987 = vmatpush2.msra.mxu0 0.0
        %4988 = vmatprep.subr.mxu0 0.0
        %4989 = vmatpush2.msra.mxu0 0.0
        %4990 = vmatprep.subr.mxu0 0.0
        %4991 = vmatpush2.msra.mxu0 0.0
        %4992 = vmatprep.subr.mxu0 0.0
        %4993 = vmatpush2.msra.mxu0 0.0
        %4994 = vmatprep.subr.mxu0 0.0
        %4995 = vmatpush2.msra.mxu0 0.0
        %4996 = vmatprep.mubr.f32.mxu0 0.0
        %4997 = vmatmul.mubr.f32.gmra.mxu0 %v4837
        %v4998 = vpop.f32.mrf.mxu0
        %v4999 = vadd.f32 %v3315, %v4998
        %v5000 = vpop.f32.mrf.mxu0
        %5001 = vmatprep.mubr.f32.mxu0 0.0
        %5002 = vmatmul.mubr.f32.gmra.mxu0 %v4840
        %v5003 = vpop.f32.mrf.mxu0
        %v5004 = vadd.f32 %v3315, %v5003
        %v5005 = vpop.f32.mrf.mxu0
        %5006 = vmatprep.mubr.f32.mxu0 0.0
        %5007 = vmatmul.mubr.f32.gmra.mxu0 %v4843
        %v5008 = vpop.f32.mrf.mxu0
        %v5009 = vadd.f32 %v3315, %v5008
        %v5010 = vpop.f32.mrf.mxu0
        %5011 = vmatprep.mubr.f32.mxu0 0.0
        %5012 = vmatmul.mubr.f32.gmra.mxu0 %v4846
        %v5013 = vpop.f32.mrf.mxu0
        %v5014 = vadd.f32 %v3315, %v5013
        %v5015 = vpop.f32.mrf.mxu0
        %5016 = vmatprep.mubr.f32.mxu0 0.0
        %5017 = vmatmul.mubr.f32.gmra.mxu0 %v4849
        %v5018 = vpop.f32.mrf.mxu0
        %v5019 = vadd.f32 %v3315, %v5018
        %v5020 = vpop.f32.mrf.mxu0
        %5021 = vmatprep.mubr.f32.mxu0 0.0
        %5022 = vmatmul.mubr.f32.gmra.mxu0 %v4852
        %v5023 = vpop.f32.mrf.mxu0
        %v5024 = vadd.f32 %v3315, %v5023
        %v5025 = vpop.f32.mrf.mxu0
        %5026 = vmatprep.mubr.f32.mxu0 0.0
        %5027 = vmatmul.mubr.f32.gmra.mxu0 %v4855
        %v5028 = vpop.f32.mrf.mxu0
        %v5029 = vadd.f32 %v3315, %v5028
        %v5030 = vpop.f32.mrf.mxu0
        %5031 = vmatprep.mubr.f32.mxu0 0.0
        %5032 = vmatmul.mubr.f32.gmra.mxu0 %v4858
        %v5033 = vpop.f32.mrf.mxu0
        %v5034 = vadd.f32 %v3315, %v5033
        %v5035 = vpop.f32.mrf.mxu0
        %5036 = vmatprep.mubr.f32.mxu0 0.0
        %5037 = vmatmul.mubr.f32.gmra.mxu0 %v4861
        %v5038 = vpop.f32.mrf.mxu0
        %v5039 = vadd.f32 %v3315, %v5038
        %v5040 = vpop.f32.mrf.mxu0
        %5041 = vmatprep.mubr.f32.mxu0 0.0
        %5042 = vmatmul.mubr.f32.gmra.mxu0 %v4864
        %v5043 = vpop.f32.mrf.mxu0
        %v5044 = vadd.f32 %v3315, %v5043
        %v5045 = vpop.f32.mrf.mxu0
        %5046 = vmatprep.mubr.f32.mxu0 0.0
        %5047 = vmatmul.mubr.f32.gmra.mxu0 %v4867
        %v5048 = vpop.f32.mrf.mxu0
        %v5049 = vadd.f32 %v3315, %v5048
        %v5050 = vpop.f32.mrf.mxu0
        %5051 = vmatprep.mubr.f32.mxu0 0.0
        %5052 = vmatmul.mubr.f32.gmra.mxu0 %v4870
        %v5053 = vpop.f32.mrf.mxu0
        %v5054 = vadd.f32 %v3315, %v5053
        %v5055 = vpop.f32.mrf.mxu0
        %5056 = vmatprep.mubr.f32.mxu0 0.0
        %5057 = vmatmul.mubr.f32.gmra.mxu0 %v4873
        %v5058 = vpop.f32.mrf.mxu0
        %v5059 = vadd.f32 %v3315, %v5058
        %v5060 = vpop.f32.mrf.mxu0
        %5061 = vmatprep.mubr.f32.mxu0 0.0
        %5062 = vmatmul.mubr.f32.gmra.mxu0 %v4876
        %v5063 = vpop.f32.mrf.mxu0
        %v5064 = vadd.f32 %v3315, %v5063
        %v5065 = vpop.f32.mrf.mxu0
        %5066 = vmatprep.mubr.f32.mxu0 0.0
        %5067 = vmatmul.mubr.f32.gmra.mxu0 %v4879
        %v5068 = vpop.f32.mrf.mxu0
        %v5069 = vadd.f32 %v3315, %v5068
        %v5070 = vpop.f32.mrf.mxu0
        %5071 = vmatprep.mubr.f32.mxu0 0.0
        %5072 = vmatmul.mubr.f32.gmra.mxu0 %v4882
        %v5073 = vpop.f32.mrf.mxu0
        %v5074 = vadd.f32 %v3315, %v5073
        %v5075 = vpop.f32.mrf.mxu0
        %5076 = vmatprep.mubr.f32.mxu0 0.0
        %5077 = vmatmul.mubr.f32.gmra.mxu0 %v4885
        %v5078 = vpop.f32.mrf.mxu0
        %v5079 = vadd.f32 %v3315, %v5078
        %v5080 = vpop.f32.mrf.mxu0
        %5081 = vmatprep.mubr.f32.mxu0 0.0
        %5082 = vmatmul.mubr.f32.gmra.mxu0 %v4888
        %v5083 = vpop.f32.mrf.mxu0
        %v5084 = vadd.f32 %v3315, %v5083
        %v5085 = vpop.f32.mrf.mxu0
        %5086 = vmatprep.mubr.f32.mxu0 0.0
        %5087 = vmatmul.mubr.f32.gmra.mxu0 %v4891
        %v5088 = vpop.f32.mrf.mxu0
        %v5089 = vadd.f32 %v3315, %v5088
        %v5090 = vpop.f32.mrf.mxu0
        %5091 = vmatprep.mubr.f32.mxu0 0.0
        %5092 = vmatmul.mubr.f32.gmra.mxu0 %v4894
        %v5093 = vpop.f32.mrf.mxu0
        %v5094 = vadd.f32 %v3315, %v5093
        %v5095 = vpop.f32.mrf.mxu0
        %5096 = vmatprep.mubr.f32.mxu0 0.0
        %5097 = vmatmul.mubr.f32.gmra.mxu0 %v4897
        %v5098 = vpop.f32.mrf.mxu0
        %v5099 = vadd.f32 %v3315, %v5098
        %v5100 = vpop.f32.mrf.mxu0
        %5101 = vmatprep.mubr.f32.mxu0 0.0
        %5102 = vmatmul.mubr.f32.gmra.mxu0 %v4900
        %v5103 = vpop.f32.mrf.mxu0
        %v5104 = vadd.f32 %v3315, %v5103
        %v5105 = vpop.f32.mrf.mxu0
        %5106 = vmatprep.mubr.f32.mxu0 0.0
        %5107 = vmatmul.mubr.f32.gmra.mxu0 %v4903
        %v5108 = vpop.f32.mrf.mxu0
        %v5109 = vadd.f32 %v3315, %v5108
        %v5110 = vpop.f32.mrf.mxu0
        %5111 = vmatprep.mubr.f32.mxu0 0.0
        %5112 = vmatmul.mubr.f32.gmra.mxu0 %v4906
        %v5113 = vpop.f32.mrf.mxu0
        %v5114 = vadd.f32 %v3315, %v5113
        %v5115 = vpop.f32.mrf.mxu0
        %5116 = vmatprep.mubr.f32.mxu0 0.0
        %5117 = vmatmul.mubr.f32.gmra.mxu0 %v4909
        %v5118 = vpop.f32.mrf.mxu0
        %v5119 = vadd.f32 %v3315, %v5118
        %v5120 = vpop.f32.mrf.mxu0
        %5121 = vmatprep.mubr.f32.mxu0 0.0
        %5122 = vmatmul.mubr.f32.gmra.mxu0 %v4912
        %v5123 = vpop.f32.mrf.mxu0
        %v5124 = vadd.f32 %v3315, %v5123
        %v5125 = vpop.f32.mrf.mxu0
        %5126 = vmatprep.mubr.f32.mxu0 0.0
        %5127 = vmatmul.mubr.f32.gmra.mxu0 %v4915
        %v5128 = vpop.f32.mrf.mxu0
        %v5129 = vadd.f32 %v3315, %v5128
        %v5130 = vpop.f32.mrf.mxu0
        %5131 = vmatprep.mubr.f32.mxu0 0.0
        %5132 = vmatmul.mubr.f32.gmra.mxu0 %v4918
        %v5133 = vpop.f32.mrf.mxu0
        %v5134 = vadd.f32 %v3315, %v5133
        %v5135 = vpop.f32.mrf.mxu0
        %5136 = vmatprep.mubr.f32.mxu0 0.0
        %5137 = vmatmul.mubr.f32.gmra.mxu0 %v4921
        %v5138 = vpop.f32.mrf.mxu0
        %v5139 = vadd.f32 %v3315, %v5138
        %v5140 = vpop.f32.mrf.mxu0
        %5141 = vmatprep.mubr.f32.mxu0 0.0
        %5142 = vmatmul.mubr.f32.gmra.mxu0 %v4924
        %v5143 = vpop.f32.mrf.mxu0
        %v5144 = vadd.f32 %v3315, %v5143
        %v5145 = vpop.f32.mrf.mxu0
        %5146 = vmatprep.mubr.f32.mxu0 0.0
        %5147 = vmatmul.mubr.f32.gmra.mxu0 %v4927
        %v5148 = vpop.f32.mrf.mxu0
        %v5149 = vadd.f32 %v3315, %v5148
        %v5150 = vpop.f32.mrf.mxu0
        %5151 = vmatprep.mubr.f32.mxu0 0.0
        %5152 = vmatmul.mubr.f32.gmra.mxu0 %v4930
        %v5153 = vpop.f32.mrf.mxu0
        %v5154 = vadd.f32 %v3315, %v5153
        %v5155 = vpop.f32.mrf.mxu0
        %5156 = vdwg.mxu0
        %v5157 = vmax.f32 %v4999, 0.0
        %v5158 = vmax.f32 %v5004, 0.0
        %v5159 = vmax.f32 %v5009, 0.0
        %v5160 = vmax.f32 %v5014, 0.0
        %v5161 = vmax.f32 %v5019, 0.0
        %v5162 = vmax.f32 %v5024, 0.0
        %v5163 = vmax.f32 %v5029, 0.0
        %v5164 = vmax.f32 %v5034, 0.0
        %v5165 = vmax.f32 %v5039, 0.0
        %v5166 = vmax.f32 %v5044, 0.0
        %v5167 = vmax.f32 %v5049, 0.0
        %v5168 = vmax.f32 %v5054, 0.0
        %v5169 = vmax.f32 %v5059, 0.0
        %v5170 = vmax.f32 %v5064, 0.0
        %v5171 = vmax.f32 %v5069, 0.0
        %v5172 = vmax.f32 %v5074, 0.0
        %v5173 = vmax.f32 %v5079, 0.0
        %v5174 = vmax.f32 %v5084, 0.0
        %v5175 = vmax.f32 %v5089, 0.0
        %v5176 = vmax.f32 %v5094, 0.0
        %v5177 = vmax.f32 %v5099, 0.0
        %v5178 = vmax.f32 %v5104, 0.0
        %v5179 = vmax.f32 %v5109, 0.0
        %v5180 = vmax.f32 %v5114, 0.0
        %v5181 = vmax.f32 %v5119, 0.0
        %v5182 = vmax.f32 %v5124, 0.0
        %v5183 = vmax.f32 %v5129, 0.0
        %v5184 = vmax.f32 %v5134, 0.0
        %v5185 = vmax.f32 %v5139, 0.0
        %v5186 = vmax.f32 %v5144, 0.0
        %v5187 = vmax.f32 %v5149, 0.0
        %v5188 = vmax.f32 %v5154, 0.0
        %v5189 = vmin.f32 %v5157, 6.0
        %v5190 = vmin.f32 %v5158, 6.0
        %v5191 = vmin.f32 %v5159, 6.0
        %v5192 = vmin.f32 %v5160, 6.0
        %v5193 = vmin.f32 %v5161, 6.0
        %v5194 = vmin.f32 %v5162, 6.0
        %v5195 = vmin.f32 %v5163, 6.0
        %v5196 = vmin.f32 %v5164, 6.0
        %v5197 = vmin.f32 %v5165, 6.0
        %v5198 = vmin.f32 %v5166, 6.0
        %v5199 = vmin.f32 %v5167, 6.0
        %v5200 = vmin.f32 %v5168, 6.0
        %v5201 = vmin.f32 %v5169, 6.0
        %v5202 = vmin.f32 %v5170, 6.0
        %v5203 = vmin.f32 %v5171, 6.0
        %v5204 = vmin.f32 %v5172, 6.0
        %v5205 = vmin.f32 %v5173, 6.0
        %v5206 = vmin.f32 %v5174, 6.0
        %v5207 = vmin.f32 %v5175, 6.0
        %v5208 = vmin.f32 %v5176, 6.0
        %v5209 = vmin.f32 %v5177, 6.0
        %v5210 = vmin.f32 %v5178, 6.0
        %v5211 = vmin.f32 %v5179, 6.0
        %v5212 = vmin.f32 %v5180, 6.0
        %v5213 = vmin.f32 %v5181, 6.0
        %v5214 = vmin.f32 %v5182, 6.0
        %v5215 = vmin.f32 %v5183, 6.0
        %v5216 = vmin.f32 %v5184, 6.0
        %v5217 = vmin.f32 %v5185, 6.0
        %v5218 = vmin.f32 %v5186, 6.0
        %v5219 = vmin.f32 %v5187, 6.0
        %v5220 = vmin.f32 %v5188, 6.0
        %v5221 = vsub.f32 %v3674, %v5189
        %v5222 = vsub.f32 %v3675, %v5190
        %v5223 = vsub.f32 %v3676, %v5191
        %v5224 = vsub.f32 %v3677, %v5192
        %v5225 = vsub.f32 %v3678, %v5193
        %v5226 = vsub.f32 %v3679, %v5194
        %v5227 = vsub.f32 %v3680, %v5195
        %v5228 = vsub.f32 %v3681, %v5196
        %v5229 = vsub.f32 %v3682, %v5197
        %v5230 = vsub.f32 %v3683, %v5198
        %v5231 = vsub.f32 %v3684, %v5199
        %v5232 = vsub.f32 %v3685, %v5200
        %v5233 = vsub.f32 %v3686, %v5201
        %v5234 = vsub.f32 %v3687, %v5202
        %v5235 = vsub.f32 %v3688, %v5203
        %v5236 = vsub.f32 %v3689, %v5204
        %v5237 = vsub.f32 %v3690, %v5205
        %v5238 = vsub.f32 %v3691, %v5206
        %v5239 = vsub.f32 %v3692, %v5207
        %v5240 = vsub.f32 %v3693, %v5208
        %v5241 = vsub.f32 %v3694, %v5209
        %v5242 = vsub.f32 %v3695, %v5210
        %v5243 = vsub.f32 %v3696, %v5211
        %v5244 = vsub.f32 %v3697, %v5212
        %v5245 = vsub.f32 %v3698, %v5213
        %v5246 = vsub.f32 %v3699, %v5214
        %v5247 = vsub.f32 %v3700, %v5215
        %v5248 = vsub.f32 %v3701, %v5216
        %v5249 = vsub.f32 %v3702, %v5217
        %v5250 = vsub.f32 %v3703, %v5218
        %v5251 = vsub.f32 %v3704, %v5219
        %v5252 = vsub.f32 %v3705, %v5220
        %s5253 = sld [smem:[#allocation2 + $0x3]]
        %v5254 = vmul.f32 %v5221, %v5221
        %v5255 = vmul.f32 %v5222, %v5222
        %v5256 = vmul.f32 %v5223, %v5223
        %v5257 = vmul.f32 %v5224, %v5224
        %v5258 = vmul.f32 %v5225, %v5225
        %v5259 = vmul.f32 %v5226, %v5226
        %v5260 = vmul.f32 %v5227, %v5227
        %v5261 = vmul.f32 %v5228, %v5228
        %v5262 = vmul.f32 %v5229, %v5229
        %v5263 = vmul.f32 %v5230, %v5230
        %v5264 = vmul.f32 %v5231, %v5231
        %v5265 = vmul.f32 %v5232, %v5232
        %v5266 = vmul.f32 %v5233, %v5233
        %v5267 = vmul.f32 %v5234, %v5234
        %v5268 = vmul.f32 %v5235, %v5235
        %v5269 = vmul.f32 %v5236, %v5236
        %v5270 = vmul.f32 %v5237, %v5237
        %v5271 = vmul.f32 %v5238, %v5238
        %v5272 = vmul.f32 %v5239, %v5239
        %v5273 = vmul.f32 %v5240, %v5240
        %v5274 = vmul.f32 %v5241, %v5241
        %v5275 = vmul.f32 %v5242, %v5242
        %v5276 = vmul.f32 %v5243, %v5243
        %v5277 = vmul.f32 %v5244, %v5244
        %v5278 = vmul.f32 %v5245, %v5245
        %v5279 = vmul.f32 %v5246, %v5246
        %v5280 = vmul.f32 %v5247, %v5247
        %v5281 = vmul.f32 %v5248, %v5248
        %v5282 = vmul.f32 %v5249, %v5249
        %v5283 = vmul.f32 %v5250, %v5250
        %v5284 = vmul.f32 %v5251, %v5251
        %v5285 = vmul.f32 %v5252, %v5252
        %v5286 = vadd.f32 %v5254, %v5255
        %v5287 = vadd.f32 %v5286, %v5256
        %v5288 = vadd.f32 %v5287, %v5257
        %v5289 = vadd.f32 %v5288, %v5258
        %v5290 = vadd.f32 %v5289, %v5259
        %v5291 = vadd.f32 %v5290, %v5260
        %v5292 = vadd.f32 %v5291, %v5261
        %v5293 = vadd.f32 %v5292, %v5262
        %v5294 = vadd.f32 %v5293, %v5263
        %v5295 = vadd.f32 %v5294, %v5264
        %v5296 = vadd.f32 %v5295, %v5265
        %v5297 = vadd.f32 %v5296, %v5266
        %v5298 = vadd.f32 %v5297, %v5267
        %v5299 = vadd.f32 %v5298, %v5268
        %v5300 = vadd.f32 %v5299, %v5269
        %v5301 = vadd.f32 %v5300, %v5270
        %v5302 = vadd.f32 %v5301, %v5271
        %v5303 = vadd.f32 %v5302, %v5272
        %v5304 = vadd.f32 %v5303, %v5273
        %v5305 = vadd.f32 %v5304, %v5274
        %v5306 = vadd.f32 %v5305, %v5275
        %v5307 = vadd.f32 %v5306, %v5276
        %v5308 = vadd.f32 %v5307, %v5277
        %v5309 = vadd.f32 %v5308, %v5278
        %v5310 = vadd.f32 %v5309, %v5279
        %v5311 = vadd.f32 %v5310, %v5280
        %v5312 = vadd.f32 %v5311, %v5281
        %v5313 = vadd.f32 %v5312, %v5282
        %v5314 = vadd.f32 %v5313, %v5283
        %v5315 = vadd.f32 %v5314, %v5284
        %v5316 = vadd.f32 %v5315, %v5285
        %5317 = vadd.xlane.f32.xlu0 %v5316
        %v5318 = vpop.xlane.xlu0 %5317
        %v5319 = vrot.slane %v5318, 4
        %v5320 = vadd.f32 %v5318, %v5319
        %v5321 = vrot.slane %v5320, 2
        %v5322 = vadd.f32 %v5320, %v5321
        %v5323 = vrot.slane %v5322, 1
        %v5324 = vadd.f32 %v5322, %v5323
        %s5325 = vtos %v5324
        %s5326 = sadd.f32 %s5253, %s5325
        %s5327 = scalar_lea.smem [#allocation2], 3
        %5328 = sst [smem:[%s5327]] %s5326
        %p5329 = scmp.eq.s32.totalorder %s16, 1
        // Predicated region
        $region41: #{generator_loss.3} parent=35 // pred_check
          %p5330 = pneg %p5329
        $region42: #{generator_loss.3} parent=35 // pred_check_branch
          %5332 = sbr.rel (%p5330) target = $region44
        $region43: #{generator_loss.3} parent=35 // pred_region
          %s5333 = sld [smem:[#allocation2]]
          %s5334 = scalar_lea.smem [#allocation3], 0
          %5335 = sst [smem:[%s5334]] %s5333
          %s5336 = sld [smem:[#allocation2 + $0x1]]
          %s5337 = scalar_lea.smem [#allocation3], 1
          %5338 = sst [smem:[%s5337]] %s5336
          %s5339 = sld [smem:[#allocation2 + $0x2]]
          %s5340 = scalar_lea.smem [#allocation3], 2
          %5341 = sst [smem:[%s5340]] %s5339
          %s5342 = sld [smem:[#allocation2 + $0x3]]
          %s5343 = scalar_lea.smem [#allocation3], 3
          %5344 = sst [smem:[%s5343]] %s5342
          %s5345 = sld [smem:[#allocation2 + $0x4]]
          %s5346 = scalar_lea.smem [#allocation3], 4
          %5347 = sst [smem:[%s5346]] %s5345
          %s5348 = sld [smem:[#allocation2 + $0x5]]
          %s5349 = scalar_lea.smem [#allocation3], 5
          %5350 = sst [smem:[%s5349]] %s5348
          %s5351 = scalar_lea.smem [#allocation3], 6
          %5352 = sst [smem:[%s5351]] 0.0
          %s5353 = scalar_lea.smem [#allocation3], 7
          %5354 = sst [smem:[%s5353]] 0.0
        $region44: #{generator_loss.3} parent=35 // pred_fallthru
          _
        // Predicated region
        $region45: #{generator_loss.3} parent=35 // pred_check
          %p5355 = pneg %p123
        $region46: #{generator_loss.3} parent=35 // pred_check_branch
          %5357 = sbr.rel (%p5355) target = $region48
        $region47: #{generator_loss.3} parent=35 // pred_region
          %s5359 = ssub.s32 16, 16
          %5360 = vsyncadd [#allocation4], %s5359
          %s5362 = sshll.u32 %s4, 4
          %s5363 = int_to_ptr.vmem [resolvable:$true] %s5362
          %5365 = dma.smem_to_vmem [#allocation3], 16, %s5363, [#allocation4]
        $region48: #{generator_loss.3} parent=35 // pred_fallthru
          _
        // Predicated region
        $region49: #{generator_loss.3} parent=35 // pred_check
          %p5366 = pneg %p123
        $region50: #{generator_loss.3} parent=35 // pred_check_branch
          %5368 = sbr.rel (%p5366) target = $region52
        $region51: #{generator_loss.3} parent=35 // pred_region
          %5369 = dma.done [#allocation4], 16
        $region52: #{generator_loss.3} parent=35 // pred_fallthru
          _
        %5370 = sfence
      $region36: #{generator_loss.3} parent=5 // pred_fallthru
        _
      %p5371 = scmp.le.s32.totalorder 2, %s11
      // Predicated region
      $region53: #{generator_loss.3} parent=5 // pred_check
        %p5372 = pneg %p5371
      $region54: #{generator_loss.3} parent=5 // pred_check_branch
        %5374 = sbr.rel (%p5372) target = $region56
      $region55: #{generator_loss.3} parent=5 // pred_region
        %s5375 = ssub.s32 %s11, 2
      $region56: #{generator_loss.3} parent=5 // pred_fallthru
        _
    $region6: #{generator_loss.3} parent=1 // loop_footer
      %s15 = sadd.s32 1, %s11
    $region7: #{generator_loss.3} parent=1 // loop_footer_branch
      %10 = sbr.rel target = $region3
    $region8: #{generator_loss.3} parent=1 // loop_exit
      _
    %5376 = vsyncpa [#allocation4], 1
    %s5377 = scalar_lea.sflag [#allocation4], 1
    %5378 = vsyncpa %s5377, 1

</llo_original>
